<compile_context>
chip_gen: v6e
topology: v6e:2x2x1
jax: 0.10.0
libtpu: 0.0.40
codegen_flags: <defaults>
</compile_context>

<pallas_src>
import functools

import numpy as np
import jax
import jax.numpy as jnp
from jax import lax
from jax.experimental import pallas as pl
from jax.experimental.pallas import tpu as pltpu

LANE = 128          # node-feature stream is lane-padded to this
MLP_HID_PAD = 256   # 2*C = 160 padded up to a lane multiple
NEG_SLOPE = 0.2


# ----------------------------------------------------------------------------
# small helpers
# ----------------------------------------------------------------------------
def _round_up(x, m):
    return ((x + m - 1) // m) * m


def _sigmoid(x):
    return 1.0 / (1.0 + jnp.exp(-x))


def _softplus(x):
    return jnp.where(x > 20.0, x, jnp.log(1.0 + jnp.exp(jnp.minimum(x, 20.0))))


# ----------------------------------------------------------------------------
# Kernel 1: fused node embedding + GAT projection + attention logit terms
#   x_node = x_uni @ W_uni + (bias ++ sin-PE)          (bf16 MXU, f32 acc)
#   xs     = lin_gat(x_node)                            (bf16 MXU, f32 acc)
#   a_src  = xs @ att_src   (per-node, row layout)      hoisted out of attention
#   a_dst  = xs @ att_dst   (per-node, column layout)
# ----------------------------------------------------------------------------
def _embed_gat_kernel(xu_ref, wu_ref, bpe_ref, gw_ref, asrc_ref, adst_ref,
                      xnode_ref, xs_ref, asrc_row_ref, adst_col_ref):
    xn = (jnp.dot(xu_ref[...], wu_ref[...], preferred_element_type=jnp.float32)
          + bpe_ref[...].astype(jnp.float32))
    xnode_ref[...] = xn
    xs = jnp.dot(xn.astype(jnp.bfloat16), gw_ref[...],
                 preferred_element_type=jnp.float32)
    xs_ref[...] = xs.astype(jnp.bfloat16)
    adst_col_ref[...] = jnp.sum(xs * adst_ref[...], axis=-1, keepdims=True)
    asrc_row_ref[...] = lax.dot_general(
        asrc_ref[...], xs, (((1,), (1,)), ((), ())),
        preferred_element_type=jnp.float32)


def embed_and_project_pallas(x_uni_bf16, w_uni, bias_pe, gat_wT, att_src,
                             att_dst, tr):
    n, k = x_uni_bf16.shape
    cp = w_uni.shape[1]
    return pl.pallas_call(
        _embed_gat_kernel,
        out_shape=(
            jax.ShapeDtypeStruct((n, cp), jnp.float32),   # x_node
            jax.ShapeDtypeStruct((n, cp), jnp.bfloat16),  # xs (keys/values)
            jax.ShapeDtypeStruct((1, n), jnp.float32),    # a_src (row layout)
            jax.ShapeDtypeStruct((n, 1), jnp.float32),    # a_dst (col layout)
        ),
        grid=(n // tr,),
        in_specs=[
            pl.BlockSpec((tr, k), lambda i: (i, 0)),
            pl.BlockSpec((k, cp), lambda i: (0, 0)),
            pl.BlockSpec((tr, cp), lambda i: (i, 0)),
            pl.BlockSpec((cp, cp), lambda i: (0, 0)),
            pl.BlockSpec((1, cp), lambda i: (0, 0)),
            pl.BlockSpec((1, cp), lambda i: (0, 0)),
        ],
        out_specs=(
            pl.BlockSpec((tr, cp), lambda i: (i, 0)),
            pl.BlockSpec((tr, cp), lambda i: (i, 0)),
            pl.BlockSpec((1, tr), lambda i: (0, i)),
            pl.BlockSpec((tr, 1), lambda i: (i, 0)),
        ),
        compiler_params=pltpu.CompilerParams(
            dimension_semantics=("parallel",),
            vmem_limit_bytes=32 * 1024 * 1024,
        ),
    )(x_uni_bf16, w_uni, bias_pe, gat_wT, att_src, att_dst)


# ----------------------------------------------------------------------------
# Kernel 2: GATConv attention (heads=1), online softmax tiled over (query, key)
#   blocks.  Mask streams as int8; xs / alpha are bf16 MXU operands with f32
#   accumulation; norm1 (eval BN) and the GATConv bias are folded into the
#   epilogue; padded query rows (empty softmax) are written as exact zeros.
# ----------------------------------------------------------------------------
def _gat_attn_kernel(xs_ref, asrc_ref, adst_ref, mask_ref, scale_ref, shift_ref,
                     o_ref, m_s, l_s, acc_s, *, neg_slope):
    kb = pl.program_id(1)

    @pl.when(kb == 0)
    def _():
        m_s[...] = jnp.full(m_s.shape, -jnp.inf, jnp.float32)
        l_s[...] = jnp.zeros(l_s.shape, jnp.float32)
        acc_s[...] = jnp.zeros(acc_s.shape, jnp.float32)

    logits = adst_ref[...] + asrc_ref[...]                         # [tq,1]+[1,tk]
    logits = jnp.where(logits >= 0.0, logits, neg_slope * logits)  # leaky_relu
    valid = mask_ref[...] != 0
    logits = jnp.where(valid, logits, -1e30)

    m_prev = m_s[...]
    m_new = jnp.maximum(m_prev, jnp.max(logits, axis=-1, keepdims=True))
    corr = jnp.exp(m_prev - m_new)
    p = jnp.where(valid, jnp.exp(logits - m_new), 0.0)
    l_s[...] = corr * l_s[...] + jnp.sum(p, axis=-1, keepdims=True)
    acc_s[...] = corr * acc_s[...] + jnp.dot(
        p.astype(jnp.bfloat16), xs_ref[...], preferred_element_type=jnp.float32)
    m_s[...] = m_new

    @pl.when(kb == pl.num_programs(1) - 1)
    def _():
        l = l_s[...]
        out = acc_s[...] * pl.reciprocal(l, approx=True)
        out = out * scale_ref[...] + shift_ref[...]
        o_ref[...] = jnp.where(l > 0.0, out, 0.0)      # zero padded/fake rows


def gat_attention_pallas(xs, asrc_row, adst_col, adj_mask, scale, shift, tq, tk):
    n, cp = xs.shape
    return pl.pallas_call(
        functools.partial(_gat_attn_kernel, neg_slope=NEG_SLOPE),
        out_shape=jax.ShapeDtypeStruct((n, cp), jnp.float32),
        grid=(n // tq, n // tk),
        in_specs=[
            pl.BlockSpec((tk, cp), lambda q, k: (k, 0)),   # keys/values (bf16)
            pl.BlockSpec((1, tk), lambda q, k: (0, k)),    # a_src row block
            pl.BlockSpec((tq, 1), lambda q, k: (q, 0)),    # a_dst col block
            pl.BlockSpec((tq, tk), lambda q, k: (q, k)),   # int8 adjacency
            pl.BlockSpec((1, cp), lambda q, k: (0, 0)),
            pl.BlockSpec((1, cp), lambda q, k: (0, 0)),
        ],
        out_specs=pl.BlockSpec((tq, cp), lambda q, k: (q, 0)),
        scratch_shapes=[
            pltpu.VMEM((tq, 1), jnp.float32),      # running max
            pltpu.VMEM((tq, 1), jnp.float32),      # running denom
            pltpu.VMEM((tq, cp), jnp.float32),     # running numerator
        ],
        compiler_params=pltpu.CompilerParams(
            dimension_semantics=("parallel", "arbitrary"),
            vmem_limit_bytes=32 * 1024 * 1024,
        ),
    )(xs, asrc_row, adst_col, adj_mask, scale, shift)


# ----------------------------------------------------------------------------
# Kernel 3: Mamba (grid over graphs).  All matmuls batched over L, lane-aligned
#   (in_proj -> 256 lanes with x in [0,128) and z in [128,256); dt_proj folded
#   into x_proj; B/C as two clean [128,16] matmuls).  Only the state recurrence
#   h = dA*h + dBu runs serially (unrolled fori_loop, VPU-only body).  norm2 is
#   folded into out_proj.
# ----------------------------------------------------------------------------
def _mamba_kernel(xd_ref, inw_ref, convw_ref, convb_ref, dtw_ref, dtb_ref,
                  bw_ref, cw_ref, alogT_ref, dvec_ref, outw_ref, outb_ref,
                  o_ref, dA_s, dBu_s, h_s, *, L, S, K):
    DP = o_ref.shape[-1]    # 128 = lane-padded d_inner

    # ---- in_proj (batched over all L tokens of this graph) ----
    xz = jnp.dot(xd_ref[...], inw_ref[...], preferred_element_type=jnp.float32)
    x_in = xz[:, :DP]       # lane-aligned slice
    z_in = xz[:, DP:]

    # ---- causal depthwise conv1d + SiLU (batched; K tiny & static) ----
    convw = convw_ref[...]
    acc = jnp.zeros((L, DP), jnp.float32) + convb_ref[...]
    for k in range(K):
        s = K - 1 - k
        if s >= L:
            continue
        if s == 0:
            shifted = x_in
        else:
            shifted = jnp.concatenate(
                [jnp.zeros((s, DP), jnp.float32), x_in[:L - s, :]], axis=0)
        acc = acc + convw[k:k + 1, :] * shifted
    xc = acc * _sigmoid(acc)                                        # SiLU

    # ---- x_proj with dt_proj folded in (lane-aligned), B/C projections ----
    dt = _softplus(
        jnp.dot(xc, dtw_ref[...], preferred_element_type=jnp.float32)
        + dtb_ref[...])                                             # [L, 128]
    Bt = jnp.dot(xc, bw_ref[...], preferred_element_type=jnp.float32)  # [L, S]
    Ct = jnp.dot(xc, cw_ref[...], preferred_element_type=jnp.float32)  # [L, S]

    A_T = -jnp.exp(alogT_ref[...])                                  # [S, 128]
    dA_s[...] = jnp.exp(dt[:, None, :] * A_T[None, :, :])           # [L, S, 128]
    dBu_s[...] = (dt * xc)[:, None, :] * Bt[:, :, None]             # [L, S, 128]

    # ---- sequential selective scan: VPU-only body, unrolled ----
    def body(t, h):
        h = dA_s[t] * h + dBu_s[t]
        h_s[t] = h
        return h

    lax.fori_loop(0, L, body, jnp.zeros((S, DP), jnp.float32),
                  unroll=max(1, min(L, 8)))

    # ---- batched readout, gate, out_proj (norm2 folded) ----
    # TODO(synk): for very long Lmax, chunk the L axis / bf16 the (L,S,128)
    # scratch buffers to stay inside v7x's 64 MiB VMEM.
    yc = jnp.sum(h_s[...] * Ct[:, :, None], axis=1)                 # [L, 128]
    y = (yc + dvec_ref[...] * xc) * (z_in * _sigmoid(z_in))         # SiLU(z) gate
    o_ref[...] = (jnp.dot(y, outw_ref[...], preferred_element_type=jnp.float32)
                  + outb_ref[...])


def mamba_forward_pallas(mp, xd_dense):
    """xd_dense: [B, L, 128] (lane-padded dense batch) -> [B, L, 128]."""
    nb, L, cp = xd_dense.shape
    S = mp["A_logT"].shape[0]
    K = mp["conv_w"].shape[0]

    def full2(a):
        return pl.BlockSpec(a.shape, lambda g: (0, 0))

    return pl.pallas_call(
        functools.partial(_mamba_kernel, L=L, S=S, K=K),
        out_shape=jax.ShapeDtypeStruct((nb, L, cp), jnp.float32),
        grid=(nb,),
        in_specs=[
            pl.BlockSpec((None, L, cp), lambda g: (g, 0, 0)),
            full2(mp["in_wT"]), full2(mp["conv_w"]), full2(mp["conv_b"]),
            full2(mp["dt_fullT"]), full2(mp["dt_b"]),
            full2(mp["B_wT"]), full2(mp["C_wT"]),
            full2(mp["A_logT"]), full2(mp["D"]),
            full2(mp["out_wT"]), full2(mp["out_b"]),
        ],
        out_specs=pl.BlockSpec((None, L, cp), lambda g: (g, 0, 0)),
        scratch_shapes=[
            pltpu.VMEM((L, S, cp), jnp.float32),   # dA
            pltpu.VMEM((L, S, cp), jnp.float32),   # dB*u
            pltpu.VMEM((L, S, cp), jnp.float32),   # h history
        ],
        compiler_params=pltpu.CompilerParams(
            dimension_semantics=("parallel",),
            vmem_limit_bytes=32 * 1024 * 1024,
        ),
    )(xd_dense, mp["in_wT"], mp["conv_w"], mp["conv_b"], mp["dt_fullT"],
      mp["dt_b"], mp["B_wT"], mp["C_wT"], mp["A_logT"], mp["D"],
      mp["out_wT"], mp["out_b"])


# ----------------------------------------------------------------------------
# Kernel 4: fused block tail  out = relu(norm3((hg+hm) + MLP(hg+hm))) * valid
#   (bf16 MLP weights, f32 accumulation; padded rows forced to exact zero)
# ----------------------------------------------------------------------------
def _block_tail_kernel(hg_ref, hm_ref, valid_ref, w1_ref, b1_ref, w2_ref,
                       b2_ref, s3_ref, t3_ref, o_ref):
    out = hg_ref[...] + hm_ref[...]
    h = jnp.dot(out.astype(jnp.bfloat16), w1_ref[...],
                preferred_element_type=jnp.float32) + b1_ref[...]
    h = jnp.maximum(h, 0.0)
    h = jnp.dot(h.astype(jnp.bfloat16), w2_ref[...],
                preferred_element_type=jnp.float32) + b2_ref[...]
    out = out + h
    out = out * s3_ref[...] + t3_ref[...]
    o_ref[...] = jnp.maximum(out, 0.0) * valid_ref[...]


def block_tail_pallas(h_gat, h_m, valid_col, w1, b1, w2, b2, s3, t3, tr):
    n, cp = h_gat.shape
    hp = w1.shape[1]
    return pl.pallas_call(
        _block_tail_kernel,
        out_shape=jax.ShapeDtypeStruct((n, cp), jnp.float32),
        grid=(n // tr,),
        in_specs=[
            pl.BlockSpec((tr, cp), lambda i: (i, 0)),
            pl.BlockSpec((tr, cp), lambda i: (i, 0)),
            pl.BlockSpec((tr, 1), lambda i: (i, 0)),
            pl.BlockSpec((cp, hp), lambda i: (0, 0)),
            pl.BlockSpec((1, hp), lambda i: (0, 0)),
            pl.BlockSpec((hp, cp), lambda i: (0, 0)),
            pl.BlockSpec((1, cp), lambda i: (0, 0)),
            pl.BlockSpec((1, cp), lambda i: (0, 0)),
            pl.BlockSpec((1, cp), lambda i: (0, 0)),
        ],
        out_specs=pl.BlockSpec((tr, cp), lambda i: (i, 0)),
        compiler_params=pltpu.CompilerParams(
            dimension_semantics=("parallel",),
            vmem_limit_bytes=32 * 1024 * 1024,
        ),
    )(h_gat, h_m, valid_col, w1, b1, w2, b2, s3, t3)


# ----------------------------------------------------------------------------
# Kernel 5: fused head — node-tiled global mean pool (accumulated) + 80->40->
#   20->1 MLP in the last grid step.
# ----------------------------------------------------------------------------
def _head_kernel(pool_ref, xr_ref, w1_ref, b1_ref, w2_ref, b2_ref, w3_ref,
                 b3_ref, pooled_ref, pred_ref):
    i = pl.program_id(0)

    @pl.when(i == 0)
    def _():
        pooled_ref[...] = jnp.zeros(pooled_ref.shape, jnp.float32)

    pooled_ref[...] += jnp.dot(pool_ref[...], xr_ref[...],
                               preferred_element_type=jnp.float32)

    @pl.when(i == pl.num_programs(0) - 1)
    def _():
        pooled = pooled_ref[...]
        h = jnp.maximum(
            jnp.dot(pooled, w1_ref[...], preferred_element_type=jnp.float32)
            + b1_ref[...], 0.0)
        h = jnp.maximum(
            jnp.dot(h, w2_ref[...], preferred_element_type=jnp.float32)
            + b2_ref[...], 0.0)
        pred_ref[...] = (
            jnp.dot(h, w3_ref[...], preferred_element_type=jnp.float32)
            + b3_ref[...])


def head_pallas(pool_mat, xr, w1, b1, w2, b2, w3, b3, th):
    b = pool_mat.shape[0]
    n_pad, cp = xr.shape
    return pl.pallas_call(
        _head_kernel,
        out_shape=(jax.ShapeDtypeStruct((b, cp), jnp.float32),
                   jax.ShapeDtypeStruct((b, 1), jnp.float32)),
        grid=(n_pad // th,),
        in_specs=[
            pl.BlockSpec((b, th), lambda i: (0, i)),
            pl.BlockSpec((th, cp), lambda i: (i, 0)),
            pl.BlockSpec(w1.shape, lambda i: (0, 0)),
            pl.BlockSpec(b1.shape, lambda i: (0, 0)),
            pl.BlockSpec(w2.shape, lambda i: (0, 0)),
            pl.BlockSpec(b2.shape, lambda i: (0, 0)),
            pl.BlockSpec(w3.shape, lambda i: (0, 0)),
            pl.BlockSpec(b3.shape, lambda i: (0, 0)),
        ],
        out_specs=(pl.BlockSpec((b, cp), lambda i: (0, 0)),
                   pl.BlockSpec((b, 1), lambda i: (0, 0))),
        compiler_params=pltpu.CompilerParams(
            dimension_semantics=("arbitrary",),
            vmem_limit_bytes=32 * 1024 * 1024,
        ),
    )(pool_mat, xr, w1, b1, w2, b2, w3, b3)


# ----------------------------------------------------------------------------
# glue: sinusoidal PE (index plumbing, stays in JAX)
# ----------------------------------------------------------------------------
def sin_pe(pos, d):
    half = d // 2
    denom = 10000.0 ** (2.0 * jnp.arange(half, dtype=jnp.float32) / d)
    ang = pos[:, None] / denom[None, :]
    emb = jnp.zeros((pos.shape[0], d), jnp.float32)
    emb = emb.at[:, 0::2].set(jnp.sin(ang))
    emb = emb.at[:, 1::2].set(jnp.cos(ang))
    return emb


# ----------------------------------------------------------------------------
# full forward (jit-wrapped at call site)
# ----------------------------------------------------------------------------
def forward(params, x_raw, edge_cat, edge_cont, adj_mask, batch_ids, pos_ids,
            pool_mat, *, dense_shape):
    nb, lmax = dense_shape
    n = x_raw.shape[0]
    cp = LANE

    # tile selection: 512-row streaming tiles for large graphs (85% of HBM
    # roofline vs ~29% at 128), 256-row attention query tile; tiny graphs use a
    # single full-extent block.
    if n <= 512:
        n_pad = _round_up(n, 8)
        tr = tq = tk = th = n_pad
    else:
        n_pad = _round_up(n, 512)
        tr = tk = th = 512
        tq = 256

    lp = params["layer0"]

    # ---- fused node embedding + GAT projection + attention logit terms ----
    x_uni = jnp.pad(x_raw[:, 2:2 + 1024],
                    ((0, n_pad - n), (0, 0))).astype(jnp.bfloat16)
    pe = jnp.concatenate([sin_pe(x_raw[:, 0], 8), sin_pe(x_raw[:, 1], 8)], axis=-1)
    bias_pe = jnp.concatenate(
        [jnp.broadcast_to(params["uni_b"], (n, 64)), pe], axis=1)           # [N, 80]
    bias_pe = jnp.pad(bias_pe, ((0, n_pad - n), (0, cp - 80))).astype(jnp.bfloat16)

    x_node, xs, asrc_row, adst_col = embed_and_project_pallas(
        x_uni, params["uni_wT"], bias_pe,
        lp["gat_wT"], lp["att_src"], lp["att_dst"], tr)

    # edge features are computed in the reference but ignored by GATConv
    # (edge_dim=None); kept as cheap glue -> DCE'd under jit.
    _e = (edge_cont @ params["edge_lin_wT"] + params["edge_lin_b"]
          + params["edge_emb"][edge_cat])                                   # noqa: F841

    # ---- GAT attention (online softmax over key blocks; norm1+bias folded) ----
    adj_pad = jnp.pad(adj_mask, ((0, n_pad - n), (0, n_pad - n)))           # int8
    h_gat = gat_attention_pallas(xs, asrc_row, adst_col, adj_pad,
                                 lp["n1_scale"], lp["n1_shift"], tq, tk)

    # ---- Mamba branch: to_dense_batch -> Mamba (norm2 folded) -> un-batch ----
    # TODO(synk): replace the XLA scatter/gather round-trip with a
    # scalar-prefetch Pallas gather (PrefetchScalarGridSpec + pl.Element).
    xd = jnp.zeros((nb, lmax, cp), jnp.float32).at[batch_ids, pos_ids].set(x_node[:n])
    hm_dense = mamba_forward_pallas(lp["mamba"], xd)
    h_m = jnp.pad(hm_dense[batch_ids, pos_ids], ((0, n_pad - n), (0, 0)))

    # ---- fused (add + MLP + residual + norm3 + ReLU), padded rows zeroed ----
    valid_col = (jnp.arange(n_pad) < n).astype(jnp.float32).reshape(n_pad, 1)
    xr = block_tail_pallas(h_gat, h_m, valid_col,
                           lp["mlp_w1T"], lp["mlp_b1"],
                           lp["mlp_w2T"], lp["mlp_b2"],
                           lp["n3_scale"], lp["n3_shift"], tr)

    # ---- fused (tiled global mean pool + prediction MLP) ----
    pool_pad = jnp.pad(pool_mat, ((0, 0), (0, n_pad - n)))
    pooled_pad, pred = head_pallas(pool_pad, xr,
                                   params["f1_wT"], params["f1_b"],
                                   params["f2_wT"], params["f2_b"],
                                   params["f3_wT"], params["f3_b"], th)
    return pred, pooled_pad[:, :80]


# ----------------------------------------------------------------------------
# parameters: raw (torch-layout) init + kernel-ready preparation (pad + folds)
# ----------------------------------------------------------------------------
def init_params(key):
    ks = jax.random.split(key, 24)

    def w(i, shape, scale=0.1):
        return scale * jax.random.normal(ks[i], shape, jnp.float32)

    C = 80      # hidden = uni_hidden(64) + sin_pe_dim(16); heads = 1
    Di = 80     # mamba d_inner = expand * d_model
    S = 16      # d_state
    R = 5       # dt_rank = ceil(80 / 16)
    K = 4       # d_conv

    def bn():
        return {"gamma": jnp.ones((C,), jnp.float32),
                "beta": jnp.zeros((C,), jnp.float32),
                "mean": jnp.zeros((C,), jnp.float32),
                "var": jnp.ones((C,), jnp.float32)}

    return {
        "uni_wT": w(0, (1024, 64), 0.03), "uni_b": w(1, (64,), 0.03),
        "edge_emb": w(2, (21, 16)),
        "edge_lin_wT": w(3, (2, 16)), "edge_lin_b": w(4, (16,)),
        "f1_wT": w(5, (C, C // 2)), "f1_b": jnp.zeros((C // 2,), jnp.float32),
        "f2_wT": w(6, (C // 2, C // 4)), "f2_b": jnp.zeros((C // 4,), jnp.float32),
        "f3_wT": w(7, (C // 4, 1)), "f3_b": jnp.zeros((1,), jnp.float32),
        "layer0": {
            "gat_wT": w(8, (C, C)),
            "gat_att_src": w(9, (C,)), "gat_att_dst": w(10, (C,)),
            "gat_bias": jnp.zeros((C,), jnp.float32),
            "norm1": bn(), "norm2": bn(), "norm3": bn(),
            "mlp_w1T": w(11, (C, 2 * C)), "mlp_b1": jnp.zeros((2 * C,), jnp.float32),
            "mlp_w2T": w(12, (2 * C, C)), "mlp_b2": jnp.zeros((C,), jnp.float32),
            "mamba": {
                "in_wT": w(13, (C, 2 * Di)),
                "conv_w": w(14, (K, Di)), "conv_b": jnp.zeros((Di,), jnp.float32),
                "xproj_dt_wT": w(15, (Di, R)),
                "xproj_B_wT": w(16, (Di, S)),
                "xproj_C_wT": w(17, (Di, S)),
                "dt_wT": w(18, (R, Di)), "dt_b": w(19, (Di,)),
                "A_log": jnp.broadcast_to(
                    jnp.log(jnp.arange(1, S + 1, dtype=jnp.float32)), (Di, S)),
                "D": jnp.ones((Di,), jnp.float32),
                "out_wT": w(20, (Di, C)),
            },
        },
    }


def _bn_affine(p):
    scale = p["gamma"] * lax.rsqrt(p["var"] + 1e-5)
    shift = p["beta"] - p["mean"] * scale
    return scale, shift


def _pad2(a, rows, cols):
    return jnp.pad(a, ((0, rows - a.shape[0]), (0, cols - a.shape[1])))


def _pad_row(v, cols):
    v = v.reshape(1, -1)
    return jnp.pad(v, ((0, 0), (0, cols - v.shape[1])))


def prepare_params(raw):
    """Lane-pad weights, cast MXU operands to bf16, fold eval-mode BatchNorms
    and fold dt_proj into x_proj (exact: composition of two linears)."""
    cp = LANE
    lp = raw["layer0"]
    mm = lp["mamba"]
    s1, t1 = _bn_affine(lp["norm1"])
    s2, t2 = _bn_affine(lp["norm2"])
    s3, t3 = _bn_affine(lp["norm3"])
    C = lp["gat_wT"].shape[0]
    Di = mm["D"].shape[0]
    S = mm["A_log"].shape[1]

    # in_proj laid out as 256 lanes: x branch in [0,128), z branch in [128,256)
    in_w = jnp.zeros((cp, 2 * cp), jnp.float32)
    in_w = in_w.at[:C, :Di].set(mm["in_wT"][:, :Di])
    in_w = in_w.at[:C, cp:cp + Di].set(mm["in_wT"][:, Di:])

    return {
        "uni_wT": _pad2(raw["uni_wT"], 1024, cp).astype(jnp.bfloat16),
        "uni_b": raw["uni_b"],
        "edge_emb": raw["edge_emb"],
        "edge_lin_wT": raw["edge_lin_wT"], "edge_lin_b": raw["edge_lin_b"],
        "f1_wT": _pad2(raw["f1_wT"], cp, cp), "f1_b": _pad_row(raw["f1_b"], cp),
        "f2_wT": _pad2(raw["f2_wT"], cp, cp), "f2_b": _pad_row(raw["f2_b"], cp),
        "f3_wT": _pad2(raw["f3_wT"], cp, 1), "f3_b": raw["f3_b"].reshape(1, 1),
        "layer0": {
            "gat_wT": _pad2(lp["gat_wT"], cp, cp).astype(jnp.bfloat16),
            "att_src": _pad_row(lp["gat_att_src"], cp),
            "att_dst": _pad_row(lp["gat_att_dst"], cp),
            "n1_scale": _pad_row(s1, cp),
            "n1_shift": _pad_row(lp["gat_bias"] * s1 + t1, cp),   # bias + norm1
            "mlp_w1T": _pad2(lp["mlp_w1T"], cp, MLP_HID_PAD).astype(jnp.bfloat16),
            "mlp_b1": _pad_row(lp["mlp_b1"], MLP_HID_PAD),
            "mlp_w2T": _pad2(lp["mlp_w2T"], MLP_HID_PAD, cp).astype(jnp.bfloat16),
            "mlp_b2": _pad_row(lp["mlp_b2"], cp),
            "n3_scale": _pad_row(s3, cp), "n3_shift": _pad_row(t3, cp),
            "mamba": {
                "in_wT": in_w,
                "conv_w": _pad2(mm["conv_w"], mm["conv_w"].shape[0], cp),
                "conv_b": _pad_row(mm["conv_b"], cp),
                "dt_fullT": _pad2(mm["xproj_dt_wT"] @ mm["dt_wT"], cp, cp),
                "dt_b": _pad_row(mm["dt_b"], cp),
                "B_wT": _pad2(mm["xproj_B_wT"], cp, S),
                "C_wT": _pad2(mm["xproj_C_wT"], cp, S),
                "A_logT": _pad2(mm["A_log"].T, S, cp),
                "D": _pad_row(mm["D"], cp),
                "out_wT": _pad2(mm["out_wT"] * s2[None, :], cp, cp),  # norm2 fold
                "out_b": _pad_row(t2, cp),
            },
        },
    }


# ----------------------------------------------------------------------------
if __name__ == "__main__":
    key = jax.random.PRNGKey(0)
    kp, kx, ke = jax.random.split(key, 3)
    params = prepare_params(init_params(kp))

    # two small graphs (7 and 5 nodes), bidirectional path edges within each graph
    sizes = [7, 5]
    B = len(sizes)
    N = sum(sizes)
    Lmax = max(sizes)
    batch_np = np.concatenate([np.full(s, b, np.int32) for b, s in enumerate(sizes)])
    pos_np = np.concatenate([np.arange(s, dtype=np.int32) for s in sizes])

    src, dst, off = [], [], 0
    for s in sizes:
        for i in range(s - 1):
            src += [off + i, off + i + 1]
            dst += [off + i + 1, off + i]
        off += s
    E = len(src)

    adj = np.zeros((N, N), np.int8)
    adj[np.array(dst), np.array(src)] = 1            # mask[target, source]
    adj[np.arange(N), np.arange(N)] = 1              # GATConv add_self_loops
    pool = np.zeros((B, N), np.float32)
    for b, s in enumerate(sizes):
        pool[b, batch_np == b] = 1.0 / s

    # dataset.x : [N, 2 + 1024]  (x coord, y coord, 1024 UNI features)
    feats = 0.5 * jax.random.normal(kx, (N, 1024), jnp.float32)
    xy = jnp.stack([jnp.asarray(pos_np, jnp.float32),
                    jnp.asarray(batch_np, jnp.float32) * 3.0 + 1.0], axis=1)
    x_raw = jnp.concatenate([xy, feats], axis=1)

    # dataset.edge_attr : [E, 3]  (categorical id in [0, 21), 2 continuous)
    edge_cont = 0.3 * jax.random.normal(ke, (E, 2), jnp.float32)
    edge_cat = jnp.asarray((np.arange(E) * 5) % 21, jnp.int32)

    fwd = jax.jit(forward, static_argnames=("dense_shape",))
    pred, pooled = fwd(params, x_raw, edge_cat, edge_cont,
                       jnp.asarray(adj), jnp.asarray(batch_np),
                       jnp.asarray(pos_np), jnp.asarray(pool),
                       dense_shape=(B, Lmax))
    jax.block_until_ready((pred, pooled))

    assert pred.shape == (B, 1) and pooled.shape == (B, 80)
    assert bool(jnp.all(jnp.isfinite(pred))) and bool(jnp.all(jnp.isfinite(pooled)))
    print("KERNEL_OK")
</pallas_src>

<mosaic_0001>
module attributes {stable_mosaic.version = 11 : i64} {
  func.func @_gat_attn_kernel(%arg0: i32, %arg1: i32, %arg2: memref<16x128xbf16, #tpu.memory_space<vmem>>, %arg3: memref<1x16xf32, #tpu.memory_space<vmem>>, %arg4: memref<16x1xf32, #tpu.memory_space<vmem>>, %arg5: memref<16x16xi8, #tpu.memory_space<vmem>>, %arg6: memref<1x128xf32, #tpu.memory_space<vmem>>, %arg7: memref<1x128xf32, #tpu.memory_space<vmem>>, %arg8: memref<16x128xf32, #tpu.memory_space<vmem>>, %arg9: memref<16x1xf32, #tpu.memory_space<vmem>>, %arg10: memref<16x1xf32, #tpu.memory_space<vmem>>, %arg11: memref<16x128xf32, #tpu.memory_space<vmem>>) attributes {dimension_semantics = [#tpu.dimension_semantics<parallel>, #tpu.dimension_semantics<arbitrary>], iteration_bounds = array<i64: 1, 1>, scalar_prefetch = 0 : i64, scratch_operands = 3 : i64, tpu.core_type = #tpu.core_type<tc>, window_params = [{transform_indices = @transform_0, window_bounds = array<i64: 16, 128>}, {transform_indices = @transform_1, window_bounds = array<i64: 1, 16>}, {transform_indices = @transform_2, window_bounds = array<i64: 16, 1>}, {transform_indices = @transform_3, window_bounds = array<i64: 16, 16>}, {pipeline_mode = #tpu.pipeline_mode<synchronous>, transform_indices = @transform_4, window_bounds = array<i64: 1, 128>}, {pipeline_mode = #tpu.pipeline_mode<synchronous>, transform_indices = @transform_5, window_bounds = array<i64: 1, 128>}, {transform_indices = @transform_6, window_bounds = array<i64: 16, 128>}]} {
    %c0_i32 = arith.constant 0 : i32
    %0 = arith.cmpi eq, %arg1, %c0_i32 : i32
    %1 = arith.extui %0 : i1 to i32
    %c0_i32_0 = arith.constant 0 : i32
    %2 = arith.cmpi ne, %1, %c0_i32_0 : i32
    scf.if %2 {
      %cst_28 = arith.constant 0xFF800000 : f32
      %47 = vector.broadcast %cst_28 : f32 to vector<16x1xf32>
      %c0_29 = arith.constant 0 : index
      %c0_30 = arith.constant 0 : index
      %48 = vector.load %arg9[%c0_29, %c0_30] : memref<16x1xf32, #tpu.memory_space<vmem>>, vector<16x1xf32>
      tpu.vector_store %arg9[%c0_29, %c0_30], %47 {strides = array<i32>} : memref<16x1xf32, #tpu.memory_space<vmem>>, vector<16x1xf32>,
      %cst_31 = arith.constant 0.000000e+00 : f32
      %49 = vector.broadcast %cst_31 : f32 to vector<16x1xf32>
      %c0_32 = arith.constant 0 : index
      %c0_33 = arith.constant 0 : index
      %50 = vector.load %arg10[%c0_32, %c0_33] : memref<16x1xf32, #tpu.memory_space<vmem>>, vector<16x1xf32>
      tpu.vector_store %arg10[%c0_32, %c0_33], %49 {strides = array<i32>} : memref<16x1xf32, #tpu.memory_space<vmem>>, vector<16x1xf32>,
      %cst_34 = arith.constant 0.000000e+00 : f32
      %51 = vector.broadcast %cst_34 : f32 to vector<16x128xf32>
      %c0_35 = arith.constant 0 : index
      %c0_36 = arith.constant 0 : index
      %52 = vector.load %arg11[%c0_35, %c0_36] : memref<16x128xf32, #tpu.memory_space<vmem>>, vector<16x128xf32>
      tpu.vector_store %arg11[%c0_35, %c0_36], %51 {strides = array<i32>} : memref<16x128xf32, #tpu.memory_space<vmem>>, vector<16x128xf32>,
    } else {
    }
    %c0 = arith.constant 0 : index
    %c0_1 = arith.constant 0 : index
    %3 = vector.load %arg4[%c0, %c0_1] : memref<16x1xf32, #tpu.memory_space<vmem>>, vector<16x1xf32>
    %c0_2 = arith.constant 0 : index
    %c0_3 = arith.constant 0 : index
    %4 = vector.load %arg3[%c0_2, %c0_3] : memref<1x16xf32, #tpu.memory_space<vmem>>, vector<1x16xf32>
    %5 = vector.broadcast %3 : vector<16x1xf32> to vector<16x16xf32>
    %6 = vector.broadcast %4 : vector<1x16xf32> to vector<16x16xf32>
    %7 = arith.addf %5, %6 : vector<16x16xf32>
    %cst = arith.constant 0.000000e+00 : f32
    %8 = vector.broadcast %cst : f32 to vector<16x16xf32>
    %9 = arith.cmpf oge, %7, %8 : vector<16x16xf32>
    %cst_4 = arith.constant 2.000000e-01 : f32
    %10 = vector.broadcast %cst_4 : f32 to vector<16x16xf32>
    %11 = arith.mulf %10, %7 : vector<16x16xf32>
    %12 = arith.select %9, %7, %11 : vector<16x16xi1>, vector<16x16xf32>
    %c0_5 = arith.constant 0 : index
    %c0_6 = arith.constant 0 : index
    %13 = vector.load %arg5[%c0_5, %c0_6] : memref<16x16xi8, #tpu.memory_space<vmem>>, vector<16x16xi8>
    %c0_i8 = arith.constant 0 : i8
    %14 = vector.broadcast %c0_i8 : i8 to vector<16x16xi8>
    %15 = arith.cmpi ne, %13, %14 : vector<16x16xi8>
    %cst_7 = arith.constant -1.000000e+30 : f32
    %16 = vector.broadcast %cst_7 : f32 to vector<16x16xf32>
    %17 = arith.select %15, %12, %16 : vector<16x16xi1>, vector<16x16xf32>
    %c0_8 = arith.constant 0 : index
    %c0_9 = arith.constant 0 : index
    %18 = vector.load %arg9[%c0_8, %c0_9] : memref<16x1xf32, #tpu.memory_space<vmem>>, vector<16x1xf32>
    %cst_10 = arith.constant dense<0xFF800000> : vector<16xf32>
    %19 = vector.multi_reduction <maximumf>, %17, %cst_10 [1] : vector<16x16xf32> to vector<16xf32>
    %20 = vector.shape_cast %19 : vector<16xf32> to vector<16x1xf32>
    %21 = arith.maximumf %18, %20 : vector<16x1xf32>
    %22 = arith.subf %18, %21 : vector<16x1xf32>
    %23 = math.exp %22 : vector<16x1xf32>
    %24 = vector.broadcast %21 : vector<16x1xf32> to vector<16x16xf32>
    %25 = arith.subf %17, %24 : vector<16x16xf32>
    %26 = math.exp %25 : vector<16x16xf32>
    %cst_11 = arith.constant 0.000000e+00 : f32
    %27 = vector.broadcast %cst_11 : f32 to vector<16x16xf32>
    %28 = arith.select %15, %26, %27 : vector<16x16xi1>, vector<16x16xf32>
    %c0_12 = arith.constant 0 : index
    %c0_13 = arith.constant 0 : index
    %29 = vector.load %arg10[%c0_12, %c0_13] : memref<16x1xf32, #tpu.memory_space<vmem>>, vector<16x1xf32>
    %30 = arith.mulf %23, %29 : vector<16x1xf32>
    %cst_14 = arith.constant dense<0.000000e+00> : vector<16xf32>
    %31 = vector.multi_reduction <add>, %28, %cst_14 [1] : vector<16x16xf32> to vector<16xf32>
    %32 = vector.shape_cast %31 : vector<16xf32> to vector<16x1xf32>
    %33 = arith.addf %30, %32 : vector<16x1xf32>
    %c0_15 = arith.constant 0 : index
    %c0_16 = arith.constant 0 : index
    %34 = vector.load %arg10[%c0_15, %c0_16] : memref<16x1xf32, #tpu.memory_space<vmem>>, vector<16x1xf32>
    tpu.vector_store %arg10[%c0_15, %c0_16], %33 {strides = array<i32>} : memref<16x1xf32, #tpu.memory_space<vmem>>, vector<16x1xf32>,
    %c0_17 = arith.constant 0 : index
    %c0_18 = arith.constant 0 : index
    %35 = vector.load %arg11[%c0_17, %c0_18] : memref<16x128xf32, #tpu.memory_space<vmem>>, vector<16x128xf32>
    %36 = vector.broadcast %23 : vector<16x1xf32> to vector<16x128xf32>
    %37 = arith.mulf %36, %35 : vector<16x128xf32>
    %38 = arith.truncf %28 : vector<16x16xf32> to vector<16x16xbf16>
    %c0_19 = arith.constant 0 : index
    %c0_20 = arith.constant 0 : index
    %39 = vector.load %arg2[%c0_19, %c0_20] : memref<16x128xbf16, #tpu.memory_space<vmem>>, vector<16x128xbf16>
    %cst_21 = arith.constant dense<0.000000e+00> : vector<16x128xf32>
    %40 = tpu.matmul %38, %39, %cst_21 {dimension_numbers = #tpu.dot_dimension_numbers<[1], [0], [0], [1], [0, 0, 1, 1], [], []>} : vector<16x16xbf16>, vector<16x128xbf16>, vector<16x128xf32> -> vector<16x128xf32>
    %41 = arith.addf %37, %40 : vector<16x128xf32>
    %c0_22 = arith.constant 0 : index
    %c0_23 = arith.constant 0 : index
    %42 = vector.load %arg11[%c0_22, %c0_23] : memref<16x128xf32, #tpu.memory_space<vmem>>, vector<16x128xf32>
    tpu.vector_store %arg11[%c0_22, %c0_23], %41 {strides = array<i32>} : memref<16x128xf32, #tpu.memory_space<vmem>>, vector<16x128xf32>,
    %c0_24 = arith.constant 0 : index
    %c0_25 = arith.constant 0 : index
    %43 = vector.load %arg9[%c0_24, %c0_25] : memref<16x1xf32, #tpu.memory_space<vmem>>, vector<16x1xf32>
    tpu.vector_store %arg9[%c0_24, %c0_25], %21 {strides = array<i32>} : memref<16x1xf32, #tpu.memory_space<vmem>>, vector<16x1xf32>,
    %c0_i32_26 = arith.constant 0 : i32
    %44 = arith.cmpi eq, %arg1, %c0_i32_26 : i32
    %45 = arith.extui %44 : i1 to i32
    %c0_i32_27 = arith.constant 0 : i32
    %46 = arith.cmpi ne, %45, %c0_i32_27 : i32
    scf.if %46 {
      %c0_28 = arith.constant 0 : index
      %c0_29 = arith.constant 0 : index
      %47 = vector.load %arg10[%c0_28, %c0_29] : memref<16x1xf32, #tpu.memory_space<vmem>>, vector<16x1xf32>
      %c0_30 = arith.constant 0 : index
      %c0_31 = arith.constant 0 : index
      %48 = vector.load %arg11[%c0_30, %c0_31] : memref<16x128xf32, #tpu.memory_space<vmem>>, vector<16x128xf32>
      %49 = tpu.reciprocal %47 {approx = true} : vector<16x1xf32> -> vector<16x1xf32>
      %50 = vector.broadcast %49 : vector<16x1xf32> to vector<16x128xf32>
      %51 = arith.mulf %48, %50 : vector<16x128xf32>
      %c0_32 = arith.constant 0 : index
      %c0_33 = arith.constant 0 : index
      %52 = vector.load %arg6[%c0_32, %c0_33] : memref<1x128xf32, #tpu.memory_space<vmem>>, vector<1x128xf32>
      %53 = vector.broadcast %52 : vector<1x128xf32> to vector<16x128xf32>
      %54 = arith.mulf %51, %53 : vector<16x128xf32>
      %c0_34 = arith.constant 0 : index
      %c0_35 = arith.constant 0 : index
      %55 = vector.load %arg7[%c0_34, %c0_35] : memref<1x128xf32, #tpu.memory_space<vmem>>, vector<1x128xf32>
      %56 = vector.broadcast %55 : vector<1x128xf32> to vector<16x128xf32>
      %57 = arith.addf %54, %56 : vector<16x128xf32>
      %cst_36 = arith.constant 0.000000e+00 : f32
      %58 = vector.broadcast %cst_36 : f32 to vector<16x1xf32>
      %59 = arith.cmpf ogt, %47, %58 : vector<16x1xf32>
      %cst_37 = arith.constant 0.000000e+00 : f32
      %60 = vector.shape_cast %59 : vector<16x1xi1> to vector<16x1xi1>
      %61 = vector.broadcast %60 : vector<16x1xi1> to vector<16x128xi1>
      %62 = vector.broadcast %cst_37 : f32 to vector<16x128xf32>
      %63 = arith.select %61, %57, %62 : vector<16x128xi1>, vector<16x128xf32>
      %c0_38 = arith.constant 0 : index
      %c0_39 = arith.constant 0 : index
      %64 = vector.load %arg8[%c0_38, %c0_39] : memref<16x128xf32, #tpu.memory_space<vmem>>, vector<16x128xf32>
      tpu.vector_store %arg8[%c0_38, %c0_39], %63 {strides = array<i32>} : memref<16x128xf32, #tpu.memory_space<vmem>>, vector<16x128xf32>,
    } else {
    }
    return
  }
  func.func @transform_0(%arg0: i32, %arg1: i32) -> (i32, i32) {
    %c0_i32 = arith.constant 0 : i32
    %c0_i32_0 = arith.constant 0 : i32
    return %arg1, %c0_i32 : i32, i32
  }
  func.func @transform_1(%arg0: i32, %arg1: i32) -> (i32, i32) {
    %c0_i32 = arith.constant 0 : i32
    %c0_i32_0 = arith.constant 0 : i32
    return %c0_i32, %arg1 : i32, i32
  }
  func.func @transform_2(%arg0: i32, %arg1: i32) -> (i32, i32) {
    %c0_i32 = arith.constant 0 : i32
    %c0_i32_0 = arith.constant 0 : i32
    return %arg0, %c0_i32 : i32, i32
  }
  func.func @transform_3(%arg0: i32, %arg1: i32) -> (i32, i32) {
    %c0_i32 = arith.constant 0 : i32
    return %arg0, %arg1 : i32, i32
  }
  func.func @transform_4(%arg0: i32, %arg1: i32) -> (i32, i32) {
    %c0_i32 = arith.constant 0 : i32
    %c0_i32_0 = arith.constant 0 : i32
    %c0_i32_1 = arith.constant 0 : i32
    return %c0_i32, %c0_i32_0 : i32, i32
  }
  func.func @transform_5(%arg0: i32, %arg1: i32) -> (i32, i32) {
    %c0_i32 = arith.constant 0 : i32
    %c0_i32_0 = arith.constant 0 : i32
    %c0_i32_1 = arith.constant 0 : i32
    return %c0_i32, %c0_i32_0 : i32, i32
  }
  func.func @transform_6(%arg0: i32, %arg1: i32) -> (i32, i32) {
    %c0_i32 = arith.constant 0 : i32
    %c0_i32_0 = arith.constant 0 : i32
    return %arg0, %c0_i32 : i32, i32
  }
}

module attributes {stable_mosaic.version = 11 : i64} {
  func.func @_embed_gat_kernel(%arg0: i32, %arg1: memref<16x1024xbf16, #tpu.memory_space<vmem>>, %arg2: memref<1024x128xbf16, #tpu.memory_space<vmem>>, %arg3: memref<16x128xbf16, #tpu.memory_space<vmem>>, %arg4: memref<128x128xbf16, #tpu.memory_space<vmem>>, %arg5: memref<1x128xf32, #tpu.memory_space<vmem>>, %arg6: memref<1x128xf32, #tpu.memory_space<vmem>>, %arg7: memref<16x128xf32, #tpu.memory_space<vmem>>, %arg8: memref<16x128xbf16, #tpu.memory_space<vmem>>, %arg9: memref<1x16xf32, #tpu.memory_space<vmem>>, %arg10: memref<16x1xf32, #tpu.memory_space<vmem>>) attributes {dimension_semantics = [#tpu.dimension_semantics<parallel>], iteration_bounds = array<i64: 1>, scalar_prefetch = 0 : i64, scratch_operands = 0 : i64, tpu.core_type = #tpu.core_type<tc>, window_params = [{transform_indices = @transform_0, window_bounds = array<i64: 16, 1024>}, {pipeline_mode = #tpu.pipeline_mode<synchronous>, transform_indices = @transform_1, window_bounds = array<i64: 1024, 128>}, {transform_indices = @transform_2, window_bounds = array<i64: 16, 128>}, {pipeline_mode = #tpu.pipeline_mode<synchronous>, transform_indices = @transform_3, window_bounds = array<i64: 128, 128>}, {pipeline_mode = #tpu.pipeline_mode<synchronous>, transform_indices = @transform_4, window_bounds = array<i64: 1, 128>}, {pipeline_mode = #tpu.pipeline_mode<synchronous>, transform_indices = @transform_5, window_bounds = array<i64: 1, 128>}, {transform_indices = @transform_6, window_bounds = array<i64: 16, 128>}, {transform_indices = @transform_7, window_bounds = array<i64: 16, 128>}, {transform_indices = @transform_8, window_bounds = array<i64: 1, 16>}, {transform_indices = @transform_9, window_bounds = array<i64: 16, 1>}]} {
    %c0 = arith.constant 0 : index
    %c0_0 = arith.constant 0 : index
    %0 = vector.load %arg1[%c0, %c0_0] : memref<16x1024xbf16, #tpu.memory_space<vmem>>, vector<16x1024xbf16>
    %c0_1 = arith.constant 0 : index
    %c0_2 = arith.constant 0 : index
    %1 = vector.load %arg2[%c0_1, %c0_2] : memref<1024x128xbf16, #tpu.memory_space<vmem>>, vector<1024x128xbf16>
    %cst = arith.constant dense<0.000000e+00> : vector<16x128xf32>
    %2 = tpu.matmul %0, %1, %cst {dimension_numbers = #tpu.dot_dimension_numbers<[1], [0], [0], [1], [0, 0, 1, 1], [], []>} : vector<16x1024xbf16>, vector<1024x128xbf16>, vector<16x128xf32> -> vector<16x128xf32>
    %c0_3 = arith.constant 0 : index
    %c0_4 = arith.constant 0 : index
    %3 = vector.load %arg3[%c0_3, %c0_4] : memref<16x128xbf16, #tpu.memory_space<vmem>>, vector<16x128xbf16>
    %4 = arith.extf %3 : vector<16x128xbf16> to vector<16x128xf32>
    %5 = arith.addf %2, %4 : vector<16x128xf32>
    %c0_5 = arith.constant 0 : index
    %c0_6 = arith.constant 0 : index
    %6 = vector.load %arg7[%c0_5, %c0_6] : memref<16x128xf32, #tpu.memory_space<vmem>>, vector<16x128xf32>
    tpu.vector_store %arg7[%c0_5, %c0_6], %5 {strides = array<i32>} : memref<16x128xf32, #tpu.memory_space<vmem>>, vector<16x128xf32>,
    %7 = arith.truncf %5 : vector<16x128xf32> to vector<16x128xbf16>
    %c0_7 = arith.constant 0 : index
    %c0_8 = arith.constant 0 : index
    %8 = vector.load %arg4[%c0_7, %c0_8] : memref<128x128xbf16, #tpu.memory_space<vmem>>, vector<128x128xbf16>
    %cst_9 = arith.constant dense<0.000000e+00> : vector<16x128xf32>
    %9 = tpu.matmul %7, %8, %cst_9 {dimension_numbers = #tpu.dot_dimension_numbers<[1], [0], [0], [1], [0, 0, 1, 1], [], []>} : vector<16x128xbf16>, vector<128x128xbf16>, vector<16x128xf32> -> vector<16x128xf32>
    %10 = arith.truncf %9 : vector<16x128xf32> to vector<16x128xbf16>
    %c0_10 = arith.constant 0 : index
    %c0_11 = arith.constant 0 : index
    %11 = vector.load %arg8[%c0_10, %c0_11] : memref<16x128xbf16, #tpu.memory_space<vmem>>, vector<16x128xbf16>
    tpu.vector_store %arg8[%c0_10, %c0_11], %10 {strides = array<i32>} : memref<16x128xbf16, #tpu.memory_space<vmem>>, vector<16x128xbf16>,
    %c0_12 = arith.constant 0 : index
    %c0_13 = arith.constant 0 : index
    %12 = vector.load %arg6[%c0_12, %c0_13] : memref<1x128xf32, #tpu.memory_space<vmem>>, vector<1x128xf32>
    %13 = vector.broadcast %12 : vector<1x128xf32> to vector<16x128xf32>
    %14 = arith.mulf %9, %13 : vector<16x128xf32>
    %cst_14 = arith.constant dense<0.000000e+00> : vector<16xf32>
    %15 = vector.multi_reduction <add>, %14, %cst_14 [1] : vector<16x128xf32> to vector<16xf32>
    %16 = vector.shape_cast %15 : vector<16xf32> to vector<16x1xf32>
    %c0_15 = arith.constant 0 : index
    %c0_16 = arith.constant 0 : index
    %17 = vector.load %arg10[%c0_15, %c0_16] : memref<16x1xf32, #tpu.memory_space<vmem>>, vector<16x1xf32>
    tpu.vector_store %arg10[%c0_15, %c0_16], %16 {strides = array<i32>} : memref<16x1xf32, #tpu.memory_space<vmem>>, vector<16x1xf32>,
    %c0_17 = arith.constant 0 : index
    %c0_18 = arith.constant 0 : index
    %18 = vector.load %arg5[%c0_17, %c0_18] : memref<1x128xf32, #tpu.memory_space<vmem>>, vector<1x128xf32>
    %cst_19 = arith.constant dense<0.000000e+00> : vector<1x16xf32>
    %19 = tpu.matmul %18, %9, %cst_19 {dimension_numbers = #tpu.dot_dimension_numbers<[1], [1], [0], [0], [0, 0, 1, 0], [], []>} : vector<1x128xf32>, vector<16x128xf32>, vector<1x16xf32> -> vector<1x16xf32>
    %c0_20 = arith.constant 0 : index
    %c0_21 = arith.constant 0 : index
    %20 = vector.load %arg9[%c0_20, %c0_21] : memref<1x16xf32, #tpu.memory_space<vmem>>, vector<1x16xf32>
    tpu.vector_store %arg9[%c0_20, %c0_21], %19 {strides = array<i32>} : memref<1x16xf32, #tpu.memory_space<vmem>>, vector<1x16xf32>,
    return
  }
  func.func @transform_0(%arg0: i32) -> (i32, i32) {
    %c0_i32 = arith.constant 0 : i32
    %c0_i32_0 = arith.constant 0 : i32
    return %arg0, %c0_i32 : i32, i32
  }
  func.func @transform_1(%arg0: i32) -> (i32, i32) {
    %c0_i32 = arith.constant 0 : i32
    %c0_i32_0 = arith.constant 0 : i32
    %c0_i32_1 = arith.constant 0 : i32
    return %c0_i32, %c0_i32_0 : i32, i32
  }
  func.func @transform_2(%arg0: i32) -> (i32, i32) {
    %c0_i32 = arith.constant 0 : i32
    %c0_i32_0 = arith.constant 0 : i32
    return %arg0, %c0_i32 : i32, i32
  }
  func.func @transform_3(%arg0: i32) -> (i32, i32) {
    %c0_i32 = arith.constant 0 : i32
    %c0_i32_0 = arith.constant 0 : i32
    %c0_i32_1 = arith.constant 0 : i32
    return %c0_i32, %c0_i32_0 : i32, i32
  }
  func.func @transform_4(%arg0: i32) -> (i32, i32) {
    %c0_i32 = arith.constant 0 : i32
    %c0_i32_0 = arith.constant 0 : i32
    %c0_i32_1 = arith.constant 0 : i32
    return %c0_i32, %c0_i32_0 : i32, i32
  }
  func.func @transform_5(%arg0: i32) -> (i32, i32) {
    %c0_i32 = arith.constant 0 : i32
    %c0_i32_0 = arith.constant 0 : i32
    %c0_i32_1 = arith.constant 0 : i32
    return %c0_i32, %c0_i32_0 : i32, i32
  }
  func.func @transform_6(%arg0: i32) -> (i32, i32) {
    %c0_i32 = arith.constant 0 : i32
    %c0_i32_0 = arith.constant 0 : i32
    return %arg0, %c0_i32 : i32, i32
  }
  func.func @transform_7(%arg0: i32) -> (i32, i32) {
    %c0_i32 = arith.constant 0 : i32
    %c0_i32_0 = arith.constant 0 : i32
    return %arg0, %c0_i32 : i32, i32
  }
  func.func @transform_8(%arg0: i32) -> (i32, i32) {
    %c0_i32 = arith.constant 0 : i32
    %c0_i32_0 = arith.constant 0 : i32
    return %c0_i32, %arg0 : i32, i32
  }
  func.func @transform_9(%arg0: i32) -> (i32, i32) {
    %c0_i32 = arith.constant 0 : i32
    %c0_i32_0 = arith.constant 0 : i32
    return %arg0, %c0_i32 : i32, i32
  }
}

module attributes {stable_mosaic.version = 11 : i64} {
  func.func @_mamba_kernel(%arg0: i32, %arg1: memref<1x7x128xf32, #tpu.memory_space<vmem>>, %arg2: memref<128x256xf32, #tpu.memory_space<vmem>>, %arg3: memref<4x128xf32, #tpu.memory_space<vmem>>, %arg4: memref<1x128xf32, #tpu.memory_space<vmem>>, %arg5: memref<128x128xf32, #tpu.memory_space<vmem>>, %arg6: memref<1x128xf32, #tpu.memory_space<vmem>>, %arg7: memref<128x16xf32, #tpu.memory_space<vmem>>, %arg8: memref<128x16xf32, #tpu.memory_space<vmem>>, %arg9: memref<16x128xf32, #tpu.memory_space<vmem>>, %arg10: memref<1x128xf32, #tpu.memory_space<vmem>>, %arg11: memref<128x128xf32, #tpu.memory_space<vmem>>, %arg12: memref<1x128xf32, #tpu.memory_space<vmem>>, %arg13: memref<1x7x128xf32, #tpu.memory_space<vmem>>, %arg14: memref<7x16x128xf32, #tpu.memory_space<vmem>>, %arg15: memref<7x16x128xf32, #tpu.memory_space<vmem>>, %arg16: memref<7x16x128xf32, #tpu.memory_space<vmem>>) attributes {dimension_semantics = [#tpu.dimension_semantics<parallel>], iteration_bounds = array<i64: 2>, scalar_prefetch = 0 : i64, scratch_operands = 3 : i64, tpu.core_type = #tpu.core_type<tc>, window_params = [{transform_indices = @transform_0, window_bounds = array<i64: 1, 7, 128>}, {pipeline_mode = #tpu.pipeline_mode<synchronous>, transform_indices = @transform_1, window_bounds = array<i64: 128, 256>}, {pipeline_mode = #tpu.pipeline_mode<synchronous>, transform_indices = @transform_2, window_bounds = array<i64: 4, 128>}, {pipeline_mode = #tpu.pipeline_mode<synchronous>, transform_indices = @transform_3, window_bounds = array<i64: 1, 128>}, {pipeline_mode = #tpu.pipeline_mode<synchronous>, transform_indices = @transform_4, window_bounds = array<i64: 128, 128>}, {pipeline_mode = #tpu.pipeline_mode<synchronous>, transform_indices = @transform_5, window_bounds = array<i64: 1, 128>}, {pipeline_mode = #tpu.pipeline_mode<synchronous>, transform_indices = @transform_6, window_bounds = array<i64: 128, 16>}, {pipeline_mode = #tpu.pipeline_mode<synchronous>, transform_indices = @transform_7, window_bounds = array<i64: 128, 16>}, {pipeline_mode = #tpu.pipeline_mode<synchronous>, transform_indices = @transform_8, window_bounds = array<i64: 16, 128>}, {pipeline_mode = #tpu.pipeline_mode<synchronous>, transform_indices = @transform_9, window_bounds = array<i64: 1, 128>}, {pipeline_mode = #tpu.pipeline_mode<synchronous>, transform_indices = @transform_10, window_bounds = array<i64: 128, 128>}, {pipeline_mode = #tpu.pipeline_mode<synchronous>, transform_indices = @transform_11, window_bounds = array<i64: 1, 128>}, {transform_indices = @transform_12, window_bounds = array<i64: 1, 7, 128>}]} {
    %c0 = arith.constant 0 : index
    %c0_0 = arith.constant 0 : index
    %c0_1 = arith.constant 0 : index
    %0 = vector.load %arg1[%c0, %c0_0, %c0_1] : memref<1x7x128xf32, #tpu.memory_space<vmem>>, vector<1x7x128xf32>
    %1 = vector.shape_cast %0 : vector<1x7x128xf32> to vector<7x128xf32>
    %c0_2 = arith.constant 0 : index
    %c0_3 = arith.constant 0 : index
    %2 = vector.load %arg2[%c0_2, %c0_3] : memref<128x256xf32, #tpu.memory_space<vmem>>, vector<128x256xf32>
    %cst = arith.constant dense<0.000000e+00> : vector<7x256xf32>
    %3 = tpu.matmul %1, %2, %cst {dimension_numbers = #tpu.dot_dimension_numbers<[1], [0], [0], [1], [0, 0, 1, 1], [], []>} : vector<7x128xf32>, vector<128x256xf32>, vector<7x256xf32> -> vector<7x256xf32>
    %4 = vector.extract_strided_slice %3 {offsets = [0, 0], sizes = [7, 128], strides = [1, 1]} : vector<7x256xf32> to vector<7x128xf32>
    %5 = vector.extract_strided_slice %3 {offsets = [0, 128], sizes = [7, 128], strides = [1, 1]} : vector<7x256xf32> to vector<7x128xf32>
    %c0_4 = arith.constant 0 : index
    %c0_5 = arith.constant 0 : index
    %6 = vector.load %arg3[%c0_4, %c0_5] : memref<4x128xf32, #tpu.memory_space<vmem>>, vector<4x128xf32>
    %cst_6 = arith.constant 0.000000e+00 : f32
    %7 = vector.broadcast %cst_6 : f32 to vector<7x128xf32>
    %c0_7 = arith.constant 0 : index
    %c0_8 = arith.constant 0 : index
    %8 = vector.load %arg4[%c0_7, %c0_8] : memref<1x128xf32, #tpu.memory_space<vmem>>, vector<1x128xf32>
    %9 = vector.broadcast %8 : vector<1x128xf32> to vector<7x128xf32>
    %10 = arith.addf %7, %9 : vector<7x128xf32>
    %cst_9 = arith.constant 0.000000e+00 : f32
    %11 = vector.broadcast %cst_9 : f32 to vector<3x128xf32>
    %12 = vector.extract_strided_slice %4 {offsets = [0, 0], sizes = [4, 128], strides = [1, 1]} : vector<7x128xf32> to vector<4x128xf32>
    %13 = tpu.concatenate %11, %12 in 0 : vector<3x128xf32>, vector<4x128xf32> -> vector<7x128xf32>
    %14 = vector.extract_strided_slice %6 {offsets = [0, 0], sizes = [1, 128], strides = [1, 1]} : vector<4x128xf32> to vector<1x128xf32>
    %15 = vector.broadcast %14 : vector<1x128xf32> to vector<7x128xf32>
    %16 = arith.mulf %15, %13 : vector<7x128xf32>
    %17 = arith.addf %10, %16 : vector<7x128xf32>
    %cst_10 = arith.constant 0.000000e+00 : f32
    %18 = vector.broadcast %cst_10 : f32 to vector<2x128xf32>
    %19 = vector.extract_strided_slice %4 {offsets = [0, 0], sizes = [5, 128], strides = [1, 1]} : vector<7x128xf32> to vector<5x128xf32>
    %20 = tpu.concatenate %18, %19 in 0 : vector<2x128xf32>, vector<5x128xf32> -> vector<7x128xf32>
    %21 = vector.extract_strided_slice %6 {offsets = [1, 0], sizes = [1, 128], strides = [1, 1]} : vector<4x128xf32> to vector<1x128xf32>
    %22 = vector.broadcast %21 : vector<1x128xf32> to vector<7x128xf32>
    %23 = arith.mulf %22, %20 : vector<7x128xf32>
    %24 = arith.addf %17, %23 : vector<7x128xf32>
    %cst_11 = arith.constant 0.000000e+00 : f32
    %25 = vector.broadcast %cst_11 : f32 to vector<1x128xf32>
    %26 = vector.extract_strided_slice %4 {offsets = [0, 0], sizes = [6, 128], strides = [1, 1]} : vector<7x128xf32> to vector<6x128xf32>
    %27 = tpu.concatenate %25, %26 in 0 : vector<1x128xf32>, vector<6x128xf32> -> vector<7x128xf32>
    %28 = vector.extract_strided_slice %6 {offsets = [2, 0], sizes = [1, 128], strides = [1, 1]} : vector<4x128xf32> to vector<1x128xf32>
    %29 = vector.broadcast %28 : vector<1x128xf32> to vector<7x128xf32>
    %30 = arith.mulf %29, %27 : vector<7x128xf32>
    %31 = arith.addf %24, %30 : vector<7x128xf32>
    %32 = vector.extract_strided_slice %6 {offsets = [3, 0], sizes = [1, 128], strides = [1, 1]} : vector<4x128xf32> to vector<1x128xf32>
    %33 = vector.broadcast %32 : vector<1x128xf32> to vector<7x128xf32>
    %34 = arith.mulf %33, %4 : vector<7x128xf32>
    %35 = arith.addf %31, %34 : vector<7x128xf32>
    %cst_12 = arith.constant 0.000000e+00 : f32
    %36 = vector.broadcast %cst_12 : f32 to vector<7x128xf32>
    %37 = arith.subf %36, %35 : vector<7x128xf32>
    %38 = math.exp %37 : vector<7x128xf32>
    %cst_13 = arith.constant 1.000000e+00 : f32
    %39 = vector.broadcast %cst_13 : f32 to vector<7x128xf32>
    %40 = arith.addf %39, %38 : vector<7x128xf32>
    %cst_14 = arith.constant 1.000000e+00 : f32
    %41 = vector.broadcast %cst_14 : f32 to vector<7x128xf32>
    %42 = arith.divf %41, %40 : vector<7x128xf32>
    %43 = arith.mulf %35, %42 : vector<7x128xf32>
    %c0_15 = arith.constant 0 : index
    %c0_16 = arith.constant 0 : index
    %44 = vector.load %arg5[%c0_15, %c0_16] : memref<128x128xf32, #tpu.memory_space<vmem>>, vector<128x128xf32>
    %cst_17 = arith.constant dense<0.000000e+00> : vector<7x128xf32>
    %45 = tpu.matmul %43, %44, %cst_17 {dimension_numbers = #tpu.dot_dimension_numbers<[1], [0], [0], [1], [0, 0, 1, 1], [], []>} : vector<7x128xf32>, vector<128x128xf32>, vector<7x128xf32> -> vector<7x128xf32>
    %c0_18 = arith.constant 0 : index
    %c0_19 = arith.constant 0 : index
    %46 = vector.load %arg6[%c0_18, %c0_19] : memref<1x128xf32, #tpu.memory_space<vmem>>, vector<1x128xf32>
    %47 = vector.broadcast %46 : vector<1x128xf32> to vector<7x128xf32>
    %48 = arith.addf %45, %47 : vector<7x128xf32>
    %cst_20 = arith.constant 2.000000e+01 : f32
    %49 = vector.broadcast %cst_20 : f32 to vector<7x128xf32>
    %50 = arith.cmpf ogt, %48, %49 : vector<7x128xf32>
    %cst_21 = arith.constant 2.000000e+01 : f32
    %51 = vector.broadcast %cst_21 : f32 to vector<7x128xf32>
    %52 = arith.minimumf %48, %51 : vector<7x128xf32>
    %53 = math.exp %52 : vector<7x128xf32>
    %cst_22 = arith.constant 1.000000e+00 : f32
    %54 = vector.broadcast %cst_22 : f32 to vector<7x128xf32>
    %55 = arith.addf %54, %53 : vector<7x128xf32>
    %56 = math.log %55 : vector<7x128xf32>
    %57 = arith.select %50, %48, %56 : vector<7x128xi1>, vector<7x128xf32>
    %c0_23 = arith.constant 0 : index
    %c0_24 = arith.constant 0 : index
    %58 = vector.load %arg7[%c0_23, %c0_24] : memref<128x16xf32, #tpu.memory_space<vmem>>, vector<128x16xf32>
    %cst_25 = arith.constant dense<0.000000e+00> : vector<7x16xf32>
    %59 = tpu.matmul %43, %58, %cst_25 {dimension_numbers = #tpu.dot_dimension_numbers<[1], [0], [0], [1], [0, 0, 1, 1], [], []>} : vector<7x128xf32>, vector<128x16xf32>, vector<7x16xf32> -> vector<7x16xf32>
    %c0_26 = arith.constant 0 : index
    %c0_27 = arith.constant 0 : index
    %60 = vector.load %arg8[%c0_26, %c0_27] : memref<128x16xf32, #tpu.memory_space<vmem>>, vector<128x16xf32>
    %cst_28 = arith.constant dense<0.000000e+00> : vector<7x16xf32>
    %61 = tpu.matmul %43, %60, %cst_28 {dimension_numbers = #tpu.dot_dimension_numbers<[1], [0], [0], [1], [0, 0, 1, 1], [], []>} : vector<7x128xf32>, vector<128x16xf32>, vector<7x16xf32> -> vector<7x16xf32>
    %c0_29 = arith.constant 0 : index
    %c0_30 = arith.constant 0 : index
    %62 = vector.load %arg9[%c0_29, %c0_30] : memref<16x128xf32, #tpu.memory_space<vmem>>, vector<16x128xf32>
    %63 = math.exp %62 : vector<16x128xf32>
    %cst_31 = arith.constant 0.000000e+00 : f32
    %64 = vector.broadcast %cst_31 : f32 to vector<16x128xf32>
    %65 = arith.subf %64, %63 : vector<16x128xf32>
    %66 = vector.shape_cast %57 : vector<7x128xf32> to vector<7x1x128xf32>
    %67 = vector.shape_cast %65 : vector<16x128xf32> to vector<1x16x128xf32>
    %68 = vector.broadcast %66 : vector<7x1x128xf32> to vector<7x16x128xf32>
    %69 = vector.broadcast %67 : vector<1x16x128xf32> to vector<7x16x128xf32>
    %70 = arith.mulf %68, %69 : vector<7x16x128xf32>
    %71 = math.exp %70 : vector<7x16x128xf32>
    %c0_32 = arith.constant 0 : index
    %c0_33 = arith.constant 0 : index
    %c0_34 = arith.constant 0 : index
    %72 = vector.load %arg14[%c0_32, %c0_33, %c0_34] : memref<7x16x128xf32, #tpu.memory_space<vmem>>, vector<7x16x128xf32>
    tpu.vector_store %arg14[%c0_32, %c0_33, %c0_34], %71 {strides = array<i32>} : memref<7x16x128xf32, #tpu.memory_space<vmem>>, vector<7x16x128xf32>,
    %73 = arith.mulf %57, %43 : vector<7x128xf32>
    %74 = vector.shape_cast %73 : vector<7x128xf32> to vector<7x1x128xf32>
    %75 = vector.shape_cast %59 : vector<7x16xf32> to vector<7x16x1xf32>
    %76 = vector.broadcast %74 : vector<7x1x128xf32> to vector<7x16x128xf32>
    %77 = vector.broadcast %75 : vector<7x16x1xf32> to vector<7x16x128xf32>
    %78 = arith.mulf %76, %77 : vector<7x16x128xf32>
    %c0_35 = arith.constant 0 : index
    %c0_36 = arith.constant 0 : index
    %c0_37 = arith.constant 0 : index
    %79 = vector.load %arg15[%c0_35, %c0_36, %c0_37] : memref<7x16x128xf32, #tpu.memory_space<vmem>>, vector<7x16x128xf32>
    tpu.vector_store %arg15[%c0_35, %c0_36, %c0_37], %78 {strides = array<i32>} : memref<7x16x128xf32, #tpu.memory_space<vmem>>, vector<7x16x128xf32>,
    %cst_38 = arith.constant 0.000000e+00 : f32
    %80 = vector.broadcast %cst_38 : f32 to vector<16x128xf32>
    %c0_i32 = arith.constant 0 : i32
    %81 = arith.index_cast %c0_i32 : i32 to index
    %c0_39 = arith.constant 0 : index
    %c0_40 = arith.constant 0 : index
    %82 = vector.load %arg14[%81, %c0_39, %c0_40] : memref<7x16x128xf32, #tpu.memory_space<vmem>>, vector<1x16x128xf32>
    %83 = vector.shape_cast %82 : vector<1x16x128xf32> to vector<16x128xf32>
    %84 = arith.mulf %83, %80 : vector<16x128xf32>
    %85 = arith.index_cast %c0_i32 : i32 to index
    %c0_41 = arith.constant 0 : index
    %c0_42 = arith.constant 0 : index
    %86 = vector.load %arg15[%85, %c0_41, %c0_42] : memref<7x16x128xf32, #tpu.memory_space<vmem>>, vector<1x16x128xf32>
    %87 = vector.shape_cast %86 : vector<1x16x128xf32> to vector<16x128xf32>
    %88 = arith.addf %84, %87 : vector<16x128xf32>
    %89 = arith.index_cast %c0_i32 : i32 to index
    %c0_43 = arith.constant 0 : index
    %c0_44 = arith.constant 0 : index
    %90 = vector.load %arg16[%89, %c0_43, %c0_44] : memref<7x16x128xf32, #tpu.memory_space<vmem>>, vector<1x16x128xf32>
    %91 = vector.shape_cast %90 : vector<1x16x128xf32> to vector<16x128xf32>
    %92 = vector.shape_cast %88 : vector<16x128xf32> to vector<1x16x128xf32>
    tpu.vector_store %arg16[%89, %c0_43, %c0_44], %92 {strides = array<i32>} : memref<7x16x128xf32, #tpu.memory_space<vmem>>, vector<1x16x128xf32>,
    %c1_i32 = arith.constant 1 : i32
    %93 = arith.index_cast %c1_i32 : i32 to index
    %c0_45 = arith.constant 0 : index
    %c0_46 = arith.constant 0 : index
    %94 = vector.load %arg14[%93, %c0_45, %c0_46] : memref<7x16x128xf32, #tpu.memory_space<vmem>>, vector<1x16x128xf32>
    %95 = vector.shape_cast %94 : vector<1x16x128xf32> to vector<16x128xf32>
    %96 = arith.mulf %95, %88 : vector<16x128xf32>
    %97 = arith.index_cast %c1_i32 : i32 to index
    %c0_47 = arith.constant 0 : index
    %c0_48 = arith.constant 0 : index
    %98 = vector.load %arg15[%97, %c0_47, %c0_48] : memref<7x16x128xf32, #tpu.memory_space<vmem>>, vector<1x16x128xf32>
    %99 = vector.shape_cast %98 : vector<1x16x128xf32> to vector<16x128xf32>
    %100 = arith.addf %96, %99 : vector<16x128xf32>
    %101 = arith.index_cast %c1_i32 : i32 to index
    %c0_49 = arith.constant 0 : index
    %c0_50 = arith.constant 0 : index
    %102 = vector.load %arg16[%101, %c0_49, %c0_50] : memref<7x16x128xf32, #tpu.memory_space<vmem>>, vector<1x16x128xf32>
    %103 = vector.shape_cast %102 : vector<1x16x128xf32> to vector<16x128xf32>
    %104 = vector.shape_cast %100 : vector<16x128xf32> to vector<1x16x128xf32>
    tpu.vector_store %arg16[%101, %c0_49, %c0_50], %104 {strides = array<i32>} : memref<7x16x128xf32, #tpu.memory_space<vmem>>, vector<1x16x128xf32>,
    %c2_i32 = arith.constant 2 : i32
    %105 = arith.index_cast %c2_i32 : i32 to index
    %c0_51 = arith.constant 0 : index
    %c0_52 = arith.constant 0 : index
    %106 = vector.load %arg14[%105, %c0_51, %c0_52] : memref<7x16x128xf32, #tpu.memory_space<vmem>>, vector<1x16x128xf32>
    %107 = vector.shape_cast %106 : vector<1x16x128xf32> to vector<16x128xf32>
    %108 = arith.mulf %107, %100 : vector<16x128xf32>
    %109 = arith.index_cast %c2_i32 : i32 to index
    %c0_53 = arith.constant 0 : index
    %c0_54 = arith.constant 0 : index
    %110 = vector.load %arg15[%109, %c0_53, %c0_54] : memref<7x16x128xf32, #tpu.memory_space<vmem>>, vector<1x16x128xf32>
    %111 = vector.shape_cast %110 : vector<1x16x128xf32> to vector<16x128xf32>
    %112 = arith.addf %108, %111 : vector<16x128xf32>
    %113 = arith.index_cast %c2_i32 : i32 to index
    %c0_55 = arith.constant 0 : index
    %c0_56 = arith.constant 0 : index
    %114 = vector.load %arg16[%113, %c0_55, %c0_56] : memref<7x16x128xf32, #tpu.memory_space<vmem>>, vector<1x16x128xf32>
    %115 = vector.shape_cast %114 : vector<1x16x128xf32> to vector<16x128xf32>
    %116 = vector.shape_cast %112 : vector<16x128xf32> to vector<1x16x128xf32>
    tpu.vector_store %arg16[%113, %c0_55, %c0_56], %116 {strides = array<i32>} : memref<7x16x128xf32, #tpu.memory_space<vmem>>, vector<1x16x128xf32>,
    %c3_i32 = arith.constant 3 : i32
    %117 = arith.index_cast %c3_i32 : i32 to index
    %c0_57 = arith.constant 0 : index
    %c0_58 = arith.constant 0 : index
    %118 = vector.load %arg14[%117, %c0_57, %c0_58] : memref<7x16x128xf32, #tpu.memory_space<vmem>>, vector<1x16x128xf32>
    %119 = vector.shape_cast %118 : vector<1x16x128xf32> to vector<16x128xf32>
    %120 = arith.mulf %119, %112 : vector<16x128xf32>
    %121 = arith.index_cast %c3_i32 : i32 to index
    %c0_59 = arith.constant 0 : index
    %c0_60 = arith.constant 0 : index
    %122 = vector.load %arg15[%121, %c0_59, %c0_60] : memref<7x16x128xf32, #tpu.memory_space<vmem>>, vector<1x16x128xf32>
    %123 = vector.shape_cast %122 : vector<1x16x128xf32> to vector<16x128xf32>
    %124 = arith.addf %120, %123 : vector<16x128xf32>
    %125 = arith.index_cast %c3_i32 : i32 to index
    %c0_61 = arith.constant 0 : index
    %c0_62 = arith.constant 0 : index
    %126 = vector.load %arg16[%125, %c0_61, %c0_62] : memref<7x16x128xf32, #tpu.memory_space<vmem>>, vector<1x16x128xf32>
    %127 = vector.shape_cast %126 : vector<1x16x128xf32> to vector<16x128xf32>
    %128 = vector.shape_cast %124 : vector<16x128xf32> to vector<1x16x128xf32>
    tpu.vector_store %arg16[%125, %c0_61, %c0_62], %128 {strides = array<i32>} : memref<7x16x128xf32, #tpu.memory_space<vmem>>, vector<1x16x128xf32>,
    %c4_i32 = arith.constant 4 : i32
    %129 = arith.index_cast %c4_i32 : i32 to index
    %c0_63 = arith.constant 0 : index
    %c0_64 = arith.constant 0 : index
    %130 = vector.load %arg14[%129, %c0_63, %c0_64] : memref<7x16x128xf32, #tpu.memory_space<vmem>>, vector<1x16x128xf32>
    %131 = vector.shape_cast %130 : vector<1x16x128xf32> to vector<16x128xf32>
    %132 = arith.mulf %131, %124 : vector<16x128xf32>
    %133 = arith.index_cast %c4_i32 : i32 to index
    %c0_65 = arith.constant 0 : index
    %c0_66 = arith.constant 0 : index
    %134 = vector.load %arg15[%133, %c0_65, %c0_66] : memref<7x16x128xf32, #tpu.memory_space<vmem>>, vector<1x16x128xf32>
    %135 = vector.shape_cast %134 : vector<1x16x128xf32> to vector<16x128xf32>
    %136 = arith.addf %132, %135 : vector<16x128xf32>
    %137 = arith.index_cast %c4_i32 : i32 to index
    %c0_67 = arith.constant 0 : index
    %c0_68 = arith.constant 0 : index
    %138 = vector.load %arg16[%137, %c0_67, %c0_68] : memref<7x16x128xf32, #tpu.memory_space<vmem>>, vector<1x16x128xf32>
    %139 = vector.shape_cast %138 : vector<1x16x128xf32> to vector<16x128xf32>
    %140 = vector.shape_cast %136 : vector<16x128xf32> to vector<1x16x128xf32>
    tpu.vector_store %arg16[%137, %c0_67, %c0_68], %140 {strides = array<i32>} : memref<7x16x128xf32, #tpu.memory_space<vmem>>, vector<1x16x128xf32>,
    %c5_i32 = arith.constant 5 : i32
    %141 = arith.index_cast %c5_i32 : i32 to index
    %c0_69 = arith.constant 0 : index
    %c0_70 = arith.constant 0 : index
    %142 = vector.load %arg14[%141, %c0_69, %c0_70] : memref<7x16x128xf32, #tpu.memory_space<vmem>>, vector<1x16x128xf32>
    %143 = vector.shape_cast %142 : vector<1x16x128xf32> to vector<16x128xf32>
    %144 = arith.mulf %143, %136 : vector<16x128xf32>
    %145 = arith.index_cast %c5_i32 : i32 to index
    %c0_71 = arith.constant 0 : index
    %c0_72 = arith.constant 0 : index
    %146 = vector.load %arg15[%145, %c0_71, %c0_72] : memref<7x16x128xf32, #tpu.memory_space<vmem>>, vector<1x16x128xf32>
    %147 = vector.shape_cast %146 : vector<1x16x128xf32> to vector<16x128xf32>
    %148 = arith.addf %144, %147 : vector<16x128xf32>
    %149 = arith.index_cast %c5_i32 : i32 to index
    %c0_73 = arith.constant 0 : index
    %c0_74 = arith.constant 0 : index
    %150 = vector.load %arg16[%149, %c0_73, %c0_74] : memref<7x16x128xf32, #tpu.memory_space<vmem>>, vector<1x16x128xf32>
    %151 = vector.shape_cast %150 : vector<1x16x128xf32> to vector<16x128xf32>
    %152 = vector.shape_cast %148 : vector<16x128xf32> to vector<1x16x128xf32>
    tpu.vector_store %arg16[%149, %c0_73, %c0_74], %152 {strides = array<i32>} : memref<7x16x128xf32, #tpu.memory_space<vmem>>, vector<1x16x128xf32>,
    %c6_i32 = arith.constant 6 : i32
    %153 = arith.index_cast %c6_i32 : i32 to index
    %c0_75 = arith.constant 0 : index
    %c0_76 = arith.constant 0 : index
    %154 = vector.load %arg14[%153, %c0_75, %c0_76] : memref<7x16x128xf32, #tpu.memory_space<vmem>>, vector<1x16x128xf32>
    %155 = vector.shape_cast %154 : vector<1x16x128xf32> to vector<16x128xf32>
    %156 = arith.mulf %155, %148 : vector<16x128xf32>
    %157 = arith.index_cast %c6_i32 : i32 to index
    %c0_77 = arith.constant 0 : index
    %c0_78 = arith.constant 0 : index
    %158 = vector.load %arg15[%157, %c0_77, %c0_78] : memref<7x16x128xf32, #tpu.memory_space<vmem>>, vector<1x16x128xf32>
    %159 = vector.shape_cast %158 : vector<1x16x128xf32> to vector<16x128xf32>
    %160 = arith.addf %156, %159 : vector<16x128xf32>
    %161 = arith.index_cast %c6_i32 : i32 to index
    %c0_79 = arith.constant 0 : index
    %c0_80 = arith.constant 0 : index
    %162 = vector.load %arg16[%161, %c0_79, %c0_80] : memref<7x16x128xf32, #tpu.memory_space<vmem>>, vector<1x16x128xf32>
    %163 = vector.shape_cast %162 : vector<1x16x128xf32> to vector<16x128xf32>
    %164 = vector.shape_cast %160 : vector<16x128xf32> to vector<1x16x128xf32>
    tpu.vector_store %arg16[%161, %c0_79, %c0_80], %164 {strides = array<i32>} : memref<7x16x128xf32, #tpu.memory_space<vmem>>, vector<1x16x128xf32>,
    %c7_i32 = arith.constant 7 : i32
    %c0_81 = arith.constant 0 : index
    %c0_82 = arith.constant 0 : index
    %c0_83 = arith.constant 0 : index
    %165 = vector.load %arg16[%c0_81, %c0_82, %c0_83] : memref<7x16x128xf32, #tpu.memory_space<vmem>>, vector<7x16x128xf32>
    %166 = vector.shape_cast %61 : vector<7x16xf32> to vector<7x16x1xf32>
    %167 = vector.broadcast %166 : vector<7x16x1xf32> to vector<7x16x128xf32>
    %168 = arith.mulf %165, %167 : vector<7x16x128xf32>
    %cst_84 = arith.constant dense<0.000000e+00> : vector<7x128xf32>
    %169 = vector.multi_reduction <add>, %168, %cst_84 [1] : vector<7x16x128xf32> to vector<7x128xf32>
    %c0_85 = arith.constant 0 : index
    %c0_86 = arith.constant 0 : index
    %170 = vector.load %arg10[%c0_85, %c0_86] : memref<1x128xf32, #tpu.memory_space<vmem>>, vector<1x128xf32>
    %171 = vector.broadcast %170 : vector<1x128xf32> to vector<7x128xf32>
    %172 = arith.mulf %171, %43 : vector<7x128xf32>
    %173 = arith.addf %169, %172 : vector<7x128xf32>
    %cst_87 = arith.constant 0.000000e+00 : f32
    %174 = vector.broadcast %cst_87 : f32 to vector<7x128xf32>
    %175 = arith.subf %174, %5 : vector<7x128xf32>
    %176 = math.exp %175 : vector<7x128xf32>
    %cst_88 = arith.constant 1.000000e+00 : f32
    %177 = vector.broadcast %cst_88 : f32 to vector<7x128xf32>
    %178 = arith.addf %177, %176 : vector<7x128xf32>
    %cst_89 = arith.constant 1.000000e+00 : f32
    %179 = vector.broadcast %cst_89 : f32 to vector<7x128xf32>
    %180 = arith.divf %179, %178 : vector<7x128xf32>
    %181 = arith.mulf %5, %180 : vector<7x128xf32>
    %182 = arith.mulf %173, %181 : vector<7x128xf32>
    %c0_90 = arith.constant 0 : index
    %c0_91 = arith.constant 0 : index
    %183 = vector.load %arg11[%c0_90, %c0_91] : memref<128x128xf32, #tpu.memory_space<vmem>>, vector<128x128xf32>
    %cst_92 = arith.constant dense<0.000000e+00> : vector<7x128xf32>
    %184 = tpu.matmul %182, %183, %cst_92 {dimension_numbers = #tpu.dot_dimension_numbers<[1], [0], [0], [1], [0, 0, 1, 1], [], []>} : vector<7x128xf32>, vector<128x128xf32>, vector<7x128xf32> -> vector<7x128xf32>
    %c0_93 = arith.constant 0 : index
    %c0_94 = arith.constant 0 : index
    %185 = vector.load %arg12[%c0_93, %c0_94] : memref<1x128xf32, #tpu.memory_space<vmem>>, vector<1x128xf32>
    %186 = vector.broadcast %185 : vector<1x128xf32> to vector<7x128xf32>
    %187 = arith.addf %184, %186 : vector<7x128xf32>
    %c0_95 = arith.constant 0 : index
    %c0_96 = arith.constant 0 : index
    %c0_97 = arith.constant 0 : index
    %188 = vector.load %arg13[%c0_95, %c0_96, %c0_97] : memref<1x7x128xf32, #tpu.memory_space<vmem>>, vector<1x7x128xf32>
    %189 = vector.shape_cast %188 : vector<1x7x128xf32> to vector<7x128xf32>
    %190 = vector.shape_cast %187 : vector<7x128xf32> to vector<1x7x128xf32>
    tpu.vector_store %arg13[%c0_95, %c0_96, %c0_97], %190 {strides = array<i32>} : memref<1x7x128xf32, #tpu.memory_space<vmem>>, vector<1x7x128xf32>,
    return
  }
  func.func @transform_0(%arg0: i32) -> (i32, i32, i32) {
    %c0_i32 = arith.constant 0 : i32
    %c0_i32_0 = arith.constant 0 : i32
    %c0_i32_1 = arith.constant 0 : i32
    return %arg0, %c0_i32, %c0_i32_0 : i32, i32, i32
  }
  func.func @transform_1(%arg0: i32) -> (i32, i32) {
    %c0_i32 = arith.constant 0 : i32
    %c0_i32_0 = arith.constant 0 : i32
    %c0_i32_1 = arith.constant 0 : i32
    return %c0_i32, %c0_i32_0 : i32, i32
  }
  func.func @transform_2(%arg0: i32) -> (i32, i32) {
    %c0_i32 = arith.constant 0 : i32
    %c0_i32_0 = arith.constant 0 : i32
    %c0_i32_1 = arith.constant 0 : i32
    return %c0_i32, %c0_i32_0 : i32, i32
  }
  func.func @transform_3(%arg0: i32) -> (i32, i32) {
    %c0_i32 = arith.constant 0 : i32
    %c0_i32_0 = arith.constant 0 : i32
    %c0_i32_1 = arith.constant 0 : i32
    return %c0_i32, %c0_i32_0 : i32, i32
  }
  func.func @transform_4(%arg0: i32) -> (i32, i32) {
    %c0_i32 = arith.constant 0 : i32
    %c0_i32_0 = arith.constant 0 : i32
    %c0_i32_1 = arith.constant 0 : i32
    return %c0_i32, %c0_i32_0 : i32, i32
  }
  func.func @transform_5(%arg0: i32) -> (i32, i32) {
    %c0_i32 = arith.constant 0 : i32
    %c0_i32_0 = arith.constant 0 : i32
    %c0_i32_1 = arith.constant 0 : i32
    return %c0_i32, %c0_i32_0 : i32, i32
  }
  func.func @transform_6(%arg0: i32) -> (i32, i32) {
    %c0_i32 = arith.constant 0 : i32
    %c0_i32_0 = arith.constant 0 : i32
    %c0_i32_1 = arith.constant 0 : i32
    return %c0_i32, %c0_i32_0 : i32, i32
  }
  func.func @transform_7(%arg0: i32) -> (i32, i32) {
    %c0_i32 = arith.constant 0 : i32
    %c0_i32_0 = arith.constant 0 : i32
    %c0_i32_1 = arith.constant 0 : i32
    return %c0_i32, %c0_i32_0 : i32, i32
  }
  func.func @transform_8(%arg0: i32) -> (i32, i32) {
    %c0_i32 = arith.constant 0 : i32
    %c0_i32_0 = arith.constant 0 : i32
    %c0_i32_1 = arith.constant 0 : i32
    return %c0_i32, %c0_i32_0 : i32, i32
  }
  func.func @transform_9(%arg0: i32) -> (i32, i32) {
    %c0_i32 = arith.constant 0 : i32
    %c0_i32_0 = arith.constant 0 : i32
    %c0_i32_1 = arith.constant 0 : i32
    return %c0_i32, %c0_i32_0 : i32, i32
  }
  func.func @transform_10(%arg0: i32) -> (i32, i32) {
    %c0_i32 = arith.constant 0 : i32
    %c0_i32_0 = arith.constant 0 : i32
    %c0_i32_1 = arith.constant 0 : i32
    return %c0_i32, %c0_i32_0 : i32, i32
  }
  func.func @transform_11(%arg0: i32) -> (i32, i32) {
    %c0_i32 = arith.constant 0 : i32
    %c0_i32_0 = arith.constant 0 : i32
    %c0_i32_1 = arith.constant 0 : i32
    return %c0_i32, %c0_i32_0 : i32, i32
  }
  func.func @transform_12(%arg0: i32) -> (i32, i32, i32) {
    %c0_i32 = arith.constant 0 : i32
    %c0_i32_0 = arith.constant 0 : i32
    %c0_i32_1 = arith.constant 0 : i32
    return %arg0, %c0_i32, %c0_i32_0 : i32, i32, i32
  }
}

module attributes {stable_mosaic.version = 11 : i64} {
  func.func @_block_tail_kernel(%arg0: i32, %arg1: memref<16x128xf32, #tpu.memory_space<vmem>>, %arg2: memref<16x128xf32, #tpu.memory_space<vmem>>, %arg3: memref<16x1xf32, #tpu.memory_space<vmem>>, %arg4: memref<128x256xbf16, #tpu.memory_space<vmem>>, %arg5: memref<1x256xf32, #tpu.memory_space<vmem>>, %arg6: memref<256x128xbf16, #tpu.memory_space<vmem>>, %arg7: memref<1x128xf32, #tpu.memory_space<vmem>>, %arg8: memref<1x128xf32, #tpu.memory_space<vmem>>, %arg9: memref<1x128xf32, #tpu.memory_space<vmem>>, %arg10: memref<16x128xf32, #tpu.memory_space<vmem>>) attributes {dimension_semantics = [#tpu.dimension_semantics<parallel>], iteration_bounds = array<i64: 1>, scalar_prefetch = 0 : i64, scratch_operands = 0 : i64, tpu.core_type = #tpu.core_type<tc>, window_params = [{transform_indices = @transform_0, window_bounds = array<i64: 16, 128>}, {transform_indices = @transform_1, window_bounds = array<i64: 16, 128>}, {transform_indices = @transform_2, window_bounds = array<i64: 16, 1>}, {pipeline_mode = #tpu.pipeline_mode<synchronous>, transform_indices = @transform_3, window_bounds = array<i64: 128, 256>}, {pipeline_mode = #tpu.pipeline_mode<synchronous>, transform_indices = @transform_4, window_bounds = array<i64: 1, 256>}, {pipeline_mode = #tpu.pipeline_mode<synchronous>, transform_indices = @transform_5, window_bounds = array<i64: 256, 128>}, {pipeline_mode = #tpu.pipeline_mode<synchronous>, transform_indices = @transform_6, window_bounds = array<i64: 1, 128>}, {pipeline_mode = #tpu.pipeline_mode<synchronous>, transform_indices = @transform_7, window_bounds = array<i64: 1, 128>}, {pipeline_mode = #tpu.pipeline_mode<synchronous>, transform_indices = @transform_8, window_bounds = array<i64: 1, 128>}, {transform_indices = @transform_9, window_bounds = array<i64: 16, 128>}]} {
    %c0 = arith.constant 0 : index
    %c0_0 = arith.constant 0 : index
    %0 = vector.load %arg1[%c0, %c0_0] : memref<16x128xf32, #tpu.memory_space<vmem>>, vector<16x128xf32>
    %c0_1 = arith.constant 0 : index
    %c0_2 = arith.constant 0 : index
    %1 = vector.load %arg2[%c0_1, %c0_2] : memref<16x128xf32, #tpu.memory_space<vmem>>, vector<16x128xf32>
    %2 = arith.addf %0, %1 : vector<16x128xf32>
    %3 = arith.truncf %2 : vector<16x128xf32> to vector<16x128xbf16>
    %c0_3 = arith.constant 0 : index
    %c0_4 = arith.constant 0 : index
    %4 = vector.load %arg4[%c0_3, %c0_4] : memref<128x256xbf16, #tpu.memory_space<vmem>>, vector<128x256xbf16>
    %cst = arith.constant dense<0.000000e+00> : vector<16x256xf32>
    %5 = tpu.matmul %3, %4, %cst {dimension_numbers = #tpu.dot_dimension_numbers<[1], [0], [0], [1], [0, 0, 1, 1], [], []>} : vector<16x128xbf16>, vector<128x256xbf16>, vector<16x256xf32> -> vector<16x256xf32>
    %c0_5 = arith.constant 0 : index
    %c0_6 = arith.constant 0 : index
    %6 = vector.load %arg5[%c0_5, %c0_6] : memref<1x256xf32, #tpu.memory_space<vmem>>, vector<1x256xf32>
    %7 = vector.broadcast %6 : vector<1x256xf32> to vector<16x256xf32>
    %8 = arith.addf %5, %7 : vector<16x256xf32>
    %cst_7 = arith.constant 0.000000e+00 : f32
    %9 = vector.broadcast %cst_7 : f32 to vector<16x256xf32>
    %10 = arith.maximumf %8, %9 : vector<16x256xf32>
    %11 = arith.truncf %10 : vector<16x256xf32> to vector<16x256xbf16>
    %c0_8 = arith.constant 0 : index
    %c0_9 = arith.constant 0 : index
    %12 = vector.load %arg6[%c0_8, %c0_9] : memref<256x128xbf16, #tpu.memory_space<vmem>>, vector<256x128xbf16>
    %cst_10 = arith.constant dense<0.000000e+00> : vector<16x128xf32>
    %13 = tpu.matmul %11, %12, %cst_10 {dimension_numbers = #tpu.dot_dimension_numbers<[1], [0], [0], [1], [0, 0, 1, 1], [], []>} : vector<16x256xbf16>, vector<256x128xbf16>, vector<16x128xf32> -> vector<16x128xf32>
    %c0_11 = arith.constant 0 : index
    %c0_12 = arith.constant 0 : index
    %14 = vector.load %arg7[%c0_11, %c0_12] : memref<1x128xf32, #tpu.memory_space<vmem>>, vector<1x128xf32>
    %15 = vector.broadcast %14 : vector<1x128xf32> to vector<16x128xf32>
    %16 = arith.addf %13, %15 : vector<16x128xf32>
    %17 = arith.addf %2, %16 : vector<16x128xf32>
    %c0_13 = arith.constant 0 : index
    %c0_14 = arith.constant 0 : index
    %18 = vector.load %arg8[%c0_13, %c0_14] : memref<1x128xf32, #tpu.memory_space<vmem>>, vector<1x128xf32>
    %19 = vector.broadcast %18 : vector<1x128xf32> to vector<16x128xf32>
    %20 = arith.mulf %17, %19 : vector<16x128xf32>
    %c0_15 = arith.constant 0 : index
    %c0_16 = arith.constant 0 : index
    %21 = vector.load %arg9[%c0_15, %c0_16] : memref<1x128xf32, #tpu.memory_space<vmem>>, vector<1x128xf32>
    %22 = vector.broadcast %21 : vector<1x128xf32> to vector<16x128xf32>
    %23 = arith.addf %20, %22 : vector<16x128xf32>
    %cst_17 = arith.constant 0.000000e+00 : f32
    %24 = vector.broadcast %cst_17 : f32 to vector<16x128xf32>
    %25 = arith.maximumf %23, %24 : vector<16x128xf32>
    %c0_18 = arith.constant 0 : index
    %c0_19 = arith.constant 0 : index
    %26 = vector.load %arg3[%c0_18, %c0_19] : memref<16x1xf32, #tpu.memory_space<vmem>>, vector<16x1xf32>
    %27 = vector.broadcast %26 : vector<16x1xf32> to vector<16x128xf32>
    %28 = arith.mulf %25, %27 : vector<16x128xf32>
    %c0_20 = arith.constant 0 : index
    %c0_21 = arith.constant 0 : index
    %29 = vector.load %arg10[%c0_20, %c0_21] : memref<16x128xf32, #tpu.memory_space<vmem>>, vector<16x128xf32>
    tpu.vector_store %arg10[%c0_20, %c0_21], %28 {strides = array<i32>} : memref<16x128xf32, #tpu.memory_space<vmem>>, vector<16x128xf32>,
    return
  }
  func.func @transform_0(%arg0: i32) -> (i32, i32) {
    %c0_i32 = arith.constant 0 : i32
    %c0_i32_0 = arith.constant 0 : i32
    return %arg0, %c0_i32 : i32, i32
  }
  func.func @transform_1(%arg0: i32) -> (i32, i32) {
    %c0_i32 = arith.constant 0 : i32
    %c0_i32_0 = arith.constant 0 : i32
    return %arg0, %c0_i32 : i32, i32
  }
  func.func @transform_2(%arg0: i32) -> (i32, i32) {
    %c0_i32 = arith.constant 0 : i32
    %c0_i32_0 = arith.constant 0 : i32
    return %arg0, %c0_i32 : i32, i32
  }
  func.func @transform_3(%arg0: i32) -> (i32, i32) {
    %c0_i32 = arith.constant 0 : i32
    %c0_i32_0 = arith.constant 0 : i32
    %c0_i32_1 = arith.constant 0 : i32
    return %c0_i32, %c0_i32_0 : i32, i32
  }
  func.func @transform_4(%arg0: i32) -> (i32, i32) {
    %c0_i32 = arith.constant 0 : i32
    %c0_i32_0 = arith.constant 0 : i32
    %c0_i32_1 = arith.constant 0 : i32
    return %c0_i32, %c0_i32_0 : i32, i32
  }
  func.func @transform_5(%arg0: i32) -> (i32, i32) {
    %c0_i32 = arith.constant 0 : i32
    %c0_i32_0 = arith.constant 0 : i32
    %c0_i32_1 = arith.constant 0 : i32
    return %c0_i32, %c0_i32_0 : i32, i32
  }
  func.func @transform_6(%arg0: i32) -> (i32, i32) {
    %c0_i32 = arith.constant 0 : i32
    %c0_i32_0 = arith.constant 0 : i32
    %c0_i32_1 = arith.constant 0 : i32
    return %c0_i32, %c0_i32_0 : i32, i32
  }
  func.func @transform_7(%arg0: i32) -> (i32, i32) {
    %c0_i32 = arith.constant 0 : i32
    %c0_i32_0 = arith.constant 0 : i32
    %c0_i32_1 = arith.constant 0 : i32
    return %c0_i32, %c0_i32_0 : i32, i32
  }
  func.func @transform_8(%arg0: i32) -> (i32, i32) {
    %c0_i32 = arith.constant 0 : i32
    %c0_i32_0 = arith.constant 0 : i32
    %c0_i32_1 = arith.constant 0 : i32
    return %c0_i32, %c0_i32_0 : i32, i32
  }
  func.func @transform_9(%arg0: i32) -> (i32, i32) {
    %c0_i32 = arith.constant 0 : i32
    %c0_i32_0 = arith.constant 0 : i32
    return %arg0, %c0_i32 : i32, i32
  }
}

module attributes {stable_mosaic.version = 11 : i64} {
  func.func @_head_kernel(%arg0: i32, %arg1: memref<2x16xf32, #tpu.memory_space<vmem>>, %arg2: memref<16x128xf32, #tpu.memory_space<vmem>>, %arg3: memref<128x128xf32, #tpu.memory_space<vmem>>, %arg4: memref<1x128xf32, #tpu.memory_space<vmem>>, %arg5: memref<128x128xf32, #tpu.memory_space<vmem>>, %arg6: memref<1x128xf32, #tpu.memory_space<vmem>>, %arg7: memref<128x1xf32, #tpu.memory_space<vmem>>, %arg8: memref<1x1xf32, #tpu.memory_space<vmem>>, %arg9: memref<2x128xf32, #tpu.memory_space<vmem>>, %arg10: memref<2x1xf32, #tpu.memory_space<vmem>>) attributes {dimension_semantics = [#tpu.dimension_semantics<arbitrary>], iteration_bounds = array<i64: 1>, scalar_prefetch = 0 : i64, scratch_operands = 0 : i64, tpu.core_type = #tpu.core_type<tc>, window_params = [{transform_indices = @transform_0, window_bounds = array<i64: 2, 16>}, {transform_indices = @transform_1, window_bounds = array<i64: 16, 128>}, {pipeline_mode = #tpu.pipeline_mode<synchronous>, transform_indices = @transform_2, window_bounds = array<i64: 128, 128>}, {pipeline_mode = #tpu.pipeline_mode<synchronous>, transform_indices = @transform_3, window_bounds = array<i64: 1, 128>}, {pipeline_mode = #tpu.pipeline_mode<synchronous>, transform_indices = @transform_4, window_bounds = array<i64: 128, 128>}, {pipeline_mode = #tpu.pipeline_mode<synchronous>, transform_indices = @transform_5, window_bounds = array<i64: 1, 128>}, {pipeline_mode = #tpu.pipeline_mode<synchronous>, transform_indices = @transform_6, window_bounds = array<i64: 128, 1>}, {pipeline_mode = #tpu.pipeline_mode<synchronous>, transform_indices = @transform_7, window_bounds = array<i64: 1, 1>}, {pipeline_mode = #tpu.pipeline_mode<synchronous>, transform_indices = @transform_8, window_bounds = array<i64: 2, 128>}, {pipeline_mode = #tpu.pipeline_mode<synchronous>, transform_indices = @transform_9, window_bounds = array<i64: 2, 1>}]} {
    %c0_i32 = arith.constant 0 : i32
    %0 = arith.cmpi eq, %arg0, %c0_i32 : i32
    %1 = arith.extui %0 : i1 to i32
    %c0_i32_0 = arith.constant 0 : i32
    %2 = arith.cmpi ne, %1, %c0_i32_0 : i32
    scf.if %2 {
      %cst_10 = arith.constant 0.000000e+00 : f32
      %12 = vector.broadcast %cst_10 : f32 to vector<2x128xf32>
      %c0_11 = arith.constant 0 : index
      %c0_12 = arith.constant 0 : index
      %13 = vector.load %arg9[%c0_11, %c0_12] : memref<2x128xf32, #tpu.memory_space<vmem>>, vector<2x128xf32>
      tpu.vector_store %arg9[%c0_11, %c0_12], %12 {strides = array<i32>} : memref<2x128xf32, #tpu.memory_space<vmem>>, vector<2x128xf32>,
    } else {
    }
    %c0 = arith.constant 0 : index
    %c0_1 = arith.constant 0 : index
    %3 = vector.load %arg9[%c0, %c0_1] : memref<2x128xf32, #tpu.memory_space<vmem>>, vector<2x128xf32>
    %c0_2 = arith.constant 0 : index
    %c0_3 = arith.constant 0 : index
    %4 = vector.load %arg1[%c0_2, %c0_3] : memref<2x16xf32, #tpu.memory_space<vmem>>, vector<2x16xf32>
    %c0_4 = arith.constant 0 : index
    %c0_5 = arith.constant 0 : index
    %5 = vector.load %arg2[%c0_4, %c0_5] : memref<16x128xf32, #tpu.memory_space<vmem>>, vector<16x128xf32>
    %cst = arith.constant dense<0.000000e+00> : vector<2x128xf32>
    %6 = tpu.matmul %4, %5, %cst {dimension_numbers = #tpu.dot_dimension_numbers<[1], [0], [0], [1], [0, 0, 1, 1], [], []>} : vector<2x16xf32>, vector<16x128xf32>, vector<2x128xf32> -> vector<2x128xf32>
    %7 = arith.addf %3, %6 : vector<2x128xf32>
    %c0_6 = arith.constant 0 : index
    %c0_7 = arith.constant 0 : index
    %8 = vector.load %arg9[%c0_6, %c0_7] : memref<2x128xf32, #tpu.memory_space<vmem>>, vector<2x128xf32>
    tpu.vector_store %arg9[%c0_6, %c0_7], %7 {strides = array<i32>} : memref<2x128xf32, #tpu.memory_space<vmem>>, vector<2x128xf32>,
    %c0_i32_8 = arith.constant 0 : i32
    %9 = arith.cmpi eq, %arg0, %c0_i32_8 : i32
    %10 = arith.extui %9 : i1 to i32
    %c0_i32_9 = arith.constant 0 : i32
    %11 = arith.cmpi ne, %10, %c0_i32_9 : i32
    scf.if %11 {
      %c0_10 = arith.constant 0 : index
      %c0_11 = arith.constant 0 : index
      %12 = vector.load %arg9[%c0_10, %c0_11] : memref<2x128xf32, #tpu.memory_space<vmem>>, vector<2x128xf32>
      %c0_12 = arith.constant 0 : index
      %c0_13 = arith.constant 0 : index
      %13 = vector.load %arg3[%c0_12, %c0_13] : memref<128x128xf32, #tpu.memory_space<vmem>>, vector<128x128xf32>
      %cst_14 = arith.constant dense<0.000000e+00> : vector<2x128xf32>
      %14 = tpu.matmul %12, %13, %cst_14 {dimension_numbers = #tpu.dot_dimension_numbers<[1], [0], [0], [1], [0, 0, 1, 1], [], []>} : vector<2x128xf32>, vector<128x128xf32>, vector<2x128xf32> -> vector<2x128xf32>
      %c0_15 = arith.constant 0 : index
      %c0_16 = arith.constant 0 : index
      %15 = vector.load %arg4[%c0_15, %c0_16] : memref<1x128xf32, #tpu.memory_space<vmem>>, vector<1x128xf32>
      %16 = vector.broadcast %15 : vector<1x128xf32> to vector<2x128xf32>
      %17 = arith.addf %14, %16 : vector<2x128xf32>
      %cst_17 = arith.constant 0.000000e+00 : f32
      %18 = vector.broadcast %cst_17 : f32 to vector<2x128xf32>
      %19 = arith.maximumf %17, %18 : vector<2x128xf32>
      %c0_18 = arith.constant 0 : index
      %c0_19 = arith.constant 0 : index
      %20 = vector.load %arg5[%c0_18, %c0_19] : memref<128x128xf32, #tpu.memory_space<vmem>>, vector<128x128xf32>
      %cst_20 = arith.constant dense<0.000000e+00> : vector<2x128xf32>
      %21 = tpu.matmul %19, %20, %cst_20 {dimension_numbers = #tpu.dot_dimension_numbers<[1], [0], [0], [1], [0, 0, 1, 1], [], []>} : vector<2x128xf32>, vector<128x128xf32>, vector<2x128xf32> -> vector<2x128xf32>
      %c0_21 = arith.constant 0 : index
      %c0_22 = arith.constant 0 : index
      %22 = vector.load %arg6[%c0_21, %c0_22] : memref<1x128xf32, #tpu.memory_space<vmem>>, vector<1x128xf32>
      %23 = vector.broadcast %22 : vector<1x128xf32> to vector<2x128xf32>
      %24 = arith.addf %21, %23 : vector<2x128xf32>
      %cst_23 = arith.constant 0.000000e+00 : f32
      %25 = vector.broadcast %cst_23 : f32 to vector<2x128xf32>
      %26 = arith.maximumf %24, %25 : vector<2x128xf32>
      %c0_24 = arith.constant 0 : index
      %c0_25 = arith.constant 0 : index
      %27 = vector.load %arg7[%c0_24, %c0_25] : memref<128x1xf32, #tpu.memory_space<vmem>>, vector<128x1xf32>
      %cst_26 = arith.constant dense<0.000000e+00> : vector<2x1xf32>
      %28 = tpu.matmul %26, %27, %cst_26 {dimension_numbers = #tpu.dot_dimension_numbers<[1], [0], [0], [1], [0, 0, 1, 1], [], []>} : vector<2x128xf32>, vector<128x1xf32>, vector<2x1xf32> -> vector<2x1xf32>
      %c0_27 = arith.constant 0 : index
      %c0_28 = arith.constant 0 : index
      %29 = vector.load %arg8[%c0_27, %c0_28] : memref<1x1xf32, #tpu.memory_space<vmem>>, vector<1x1xf32>
      %30 = vector.broadcast %29 : vector<1x1xf32> to vector<2x1xf32>
      %31 = arith.addf %28, %30 : vector<2x1xf32>
      %c0_29 = arith.constant 0 : index
      %c0_30 = arith.constant 0 : index
      %32 = vector.load %arg10[%c0_29, %c0_30] : memref<2x1xf32, #tpu.memory_space<vmem>>, vector<2x1xf32>
      tpu.vector_store %arg10[%c0_29, %c0_30], %31 {strides = array<i32>} : memref<2x1xf32, #tpu.memory_space<vmem>>, vector<2x1xf32>,
    } else {
    }
    return
  }
  func.func @transform_0(%arg0: i32) -> (i32, i32) {
    %c0_i32 = arith.constant 0 : i32
    %c0_i32_0 = arith.constant 0 : i32
    return %c0_i32, %arg0 : i32, i32
  }
  func.func @transform_1(%arg0: i32) -> (i32, i32) {
    %c0_i32 = arith.constant 0 : i32
    %c0_i32_0 = arith.constant 0 : i32
    return %arg0, %c0_i32 : i32, i32
  }
  func.func @transform_2(%arg0: i32) -> (i32, i32) {
    %c0_i32 = arith.constant 0 : i32
    %c0_i32_0 = arith.constant 0 : i32
    %c0_i32_1 = arith.constant 0 : i32
    return %c0_i32, %c0_i32_0 : i32, i32
  }
  func.func @transform_3(%arg0: i32) -> (i32, i32) {
    %c0_i32 = arith.constant 0 : i32
    %c0_i32_0 = arith.constant 0 : i32
    %c0_i32_1 = arith.constant 0 : i32
    return %c0_i32, %c0_i32_0 : i32, i32
  }
  func.func @transform_4(%arg0: i32) -> (i32, i32) {
    %c0_i32 = arith.constant 0 : i32
    %c0_i32_0 = arith.constant 0 : i32
    %c0_i32_1 = arith.constant 0 : i32
    return %c0_i32, %c0_i32_0 : i32, i32
  }
  func.func @transform_5(%arg0: i32) -> (i32, i32) {
    %c0_i32 = arith.constant 0 : i32
    %c0_i32_0 = arith.constant 0 : i32
    %c0_i32_1 = arith.constant 0 : i32
    return %c0_i32, %c0_i32_0 : i32, i32
  }
  func.func @transform_6(%arg0: i32) -> (i32, i32) {
    %c0_i32 = arith.constant 0 : i32
    %c0_i32_0 = arith.constant 0 : i32
    %c0_i32_1 = arith.constant 0 : i32
    return %c0_i32, %c0_i32_0 : i32, i32
  }
  func.func @transform_7(%arg0: i32) -> (i32, i32) {
    %c0_i32 = arith.constant 0 : i32
    %c0_i32_0 = arith.constant 0 : i32
    %c0_i32_1 = arith.constant 0 : i32
    return %c0_i32, %c0_i32_0 : i32, i32
  }
  func.func @transform_8(%arg0: i32) -> (i32, i32) {
    %c0_i32 = arith.constant 0 : i32
    %c0_i32_0 = arith.constant 0 : i32
    %c0_i32_1 = arith.constant 0 : i32
    return %c0_i32, %c0_i32_0 : i32, i32
  }
  func.func @transform_9(%arg0: i32) -> (i32, i32) {
    %c0_i32 = arith.constant 0 : i32
    %c0_i32_0 = arith.constant 0 : i32
    %c0_i32_1 = arith.constant 0 : i32
    return %c0_i32, %c0_i32_0 : i32, i32
  }
}

</mosaic_0001>

<llo_original>
// kernel: forward.6
$region0: #{forward.6}
  #allocation0 [shape = 'u32[]', space=smem, size = 0x4, offset = 0x4, fixed_abs, tag = 'smem constant byte address 0x4 - core index']
  #allocation1 [shape = 'u32[144,128]{1,0:T(1,128)}', space=vmem, size = 0x12000, scoped, tag = 'internal scratch']
  #allocation2 [shape = 'f32[16,1]{1,0:T(8,128)}', space=vmem, size = 0x2000, scoped, tag = 'scratch operand']
  #allocation3 [shape = 'f32[16,1]{1,0:T(8,128)}', space=vmem, size = 0x2000, scoped, tag = 'scratch operand']
  #allocation4 [shape = 'f32[16,128]{1,0:T(8,128)}', space=vmem, size = 0x2000, scoped, tag = 'scratch operand']
  %s0 = inlined_call_operand.vmem [shape: bf16[16,128], index: 0, kind: input, shape index: {}]
  %s1 = inlined_call_operand.vmem [shape: f32[1,16], index: 1, kind: input, shape index: {}]
  %s2 = inlined_call_operand.vmem [shape: f32[16,1], index: 2, kind: input, shape index: {}]
  %s3 = inlined_call_operand.vmem [shape: s8[16,16], index: 3, kind: input, shape index: {}]
  %s4 = inlined_call_operand.vmem [shape: f32[1,128], index: 4, kind: input, shape index: {}]
  %s5 = inlined_call_operand.vmem [shape: f32[1,128], index: 5, kind: input, shape index: {}]
  %s6 = inlined_call_operand.vmem [shape: f32[16,128], index: 6, kind: output, shape index: {}]
  %s7 = sld [smem:[#allocation0]]
  $region42: #{forward.6} parent=0
    _
  %s9 = ssub.s32 1, %s7
  %s10 = scalar_select 0, %s9, %s7
  // Predicated region
  $region2: #{forward.6} parent=0 // pred_check
    _
  $region3: #{forward.6} parent=0 // pred_check_branch
    %12 = sbr.rel (0) target = $region5
  $region4: #{forward.6} parent=0 // pred_region
    _
  $region5: #{forward.6} parent=0 // pred_fallthru
    _
  // Predicated region
  $region6: #{forward.6} parent=0 // pred_check
    _
  $region7: #{forward.6} parent=0 // pred_check_branch
    %14 = sbr.rel (0) target = $region9
  $region8: #{forward.6} parent=0 // pred_region
    _
  $region9: #{forward.6} parent=0 // pred_fallthru
    _
  // Predicated region
  $region10: #{forward.6} parent=0 // pred_check
    _
  $region11: #{forward.6} parent=0 // pred_check_branch
    %16 = sbr.rel (0) target = $region13
  $region12: #{forward.6} parent=0 // pred_region
    _
  $region13: #{forward.6} parent=0 // pred_fallthru
    _
  // Predicated region
  $region14: #{forward.6} parent=0 // pred_check
    _
  $region15: #{forward.6} parent=0 // pred_check_branch
    %18 = sbr.rel (0) target = $region17
  $region16: #{forward.6} parent=0 // pred_region
    _
  $region17: #{forward.6} parent=0 // pred_fallthru
    _
  // Predicated region
  $region18: #{forward.6} parent=0 // pred_check
    _
  $region19: #{forward.6} parent=0 // pred_check_branch
    %20 = sbr.rel (0) target = $region21
  $region20: #{forward.6} parent=0 // pred_region
    _
  $region21: #{forward.6} parent=0 // pred_fallthru
    _
  // Predicated region
  $region22: #{forward.6} parent=0 // pred_check
    _
  $region23: #{forward.6} parent=0 // pred_check_branch
    %22 = sbr.rel (0) target = $region25
  $region24: #{forward.6} parent=0 // pred_region
    _
  $region25: #{forward.6} parent=0 // pred_fallthru
    _
  %p26 = scmp.eq.s32.totalorder 0, 0
  // Predicated region
  $region26: #{forward.6} parent=0 // pred_check
    %p27 = pneg %p26
  $region27: #{forward.6} parent=0 // pred_check_branch
    %29 = sbr.rel (%p27) target = $region29
  $region28: #{forward.6} parent=0 // pred_region
    %vm30 = vcmask 7168
    %31 = vst.msk [vmem:[#allocation2] sm:$0xff] %vm30, -inf
    %32 = vst.msk [vmem:[#allocation2 + $0x8] sm:$0xff] %vm30, -inf
    %33 = vst.msk [vmem:[#allocation3] sm:$0xff] %vm30, 0.0
    %34 = vst.msk [vmem:[#allocation3 + $0x8] sm:$0xff] %vm30, 0.0
    %35 = vst [vmem:[#allocation4] sm:$0xff] 0.0
    %36 = vst [vmem:[#allocation4 + $0x8] sm:$0xff] 0.0
  $region29: #{forward.6} parent=0 // pred_fallthru
    _
  %v37 = vld [vmem:[%s2] sm:$0xff]
  %v38 = vld [vmem:[%s2 + $0x8] sm:$0xff]
  %v39 = vld [vmem:[%s1] sm:$0x1]
  %41 = vset.pattern.permute.xlu0 0
  %42 = vperm.xlu0 %41, %v37
  %v43 = vpop.permute.xlu0 %42
  %46 = vset.pattern.permute.xlu0 0
  %47 = vperm.xlu0 %46, %v38
  %v48 = vpop.permute.xlu0 %47
  %v51 = vlaneseq
  %v52 = vshrl.u32 %v51, 7
  %v53 = vsub.s32 0, %v52
  %v54 = vrot.slane %v39, %v53
  %v56 = vadd.f32 %v43, %v54
  %v57 = vadd.f32 %v48, %v54
  %vm58 = vcmp.ge.f32.partialorder %v56, 0.0
  %vm59 = vcmp.ge.f32.partialorder %v57, 0.0
  %v60 = vmul.f32 %v56, 0.2
  %v61 = vmul.f32 %v57, 0.2
  %v62 = vsel %vm58, %v56, %v60
  %v63 = vsel %vm59, %v57, %v61
  %v64 = vld [vmem:[%s3] sm:$0x3]
  %v65 = vld [vmem:[%s3 + $0x2] sm:$0x3]
  %vm66 = vnez %v64
  %vm67 = vnez %v65
  %v68 = vsel %vm66, 16843009, 0
  %v69 = vsel %vm67, 16843009, 0
  %v70 = vunpack.c.0.s8 %v68
  %v71 = vunpack.c.0.s8 %v69
  %vm72 = vcmp.ne.s32.totalorder %v70, 0
  %vm73 = vcmp.ne.s32.totalorder %v71, 0
  %v74 = vsel %vm72, %v62, -1e+30
  %v75 = vsel %vm73, %v63, -1e+30
  %v76 = vld [vmem:[#allocation2] sm:$0xff]
  %v77 = vld [vmem:[#allocation2 + $0x8] sm:$0xff]
  %vm78 = vcmask 130048
  %v79 = vsel %vm78, %v74, -inf
  %80 = vmax.xlane.f32.xlu0 %v79
  %v81 = vpop.xlane.xlu0 %80
  %v82 = vsel %vm78, %v75, -inf
  %83 = vmax.xlane.f32.xlu0 %v82
  %v84 = vpop.xlane.xlu0 %83
  %v85 = vmax.f32 %v76, %v81
  %v86 = vmax.f32 %v77, %v84
  %v87 = vsub.f32 %v76, %v85
  %v88 = vsub.f32 %v77, %v86
  %v89 = vmul.f32 %v87, 1.442695
  %v90 = vpow.pop %v89
  %v91 = vmul.f32 %v88, 1.442695
  %v92 = vpow.pop %v91
  %94 = vset.pattern.permute.xlu0 0
  %95 = vperm.xlu0 %94, %v85
  %v96 = vpop.permute.xlu0 %95
  %99 = vset.pattern.permute.xlu0 0
  %100 = vperm.xlu0 %99, %v86
  %v101 = vpop.permute.xlu0 %100
  %v103 = vsub.f32 %v74, %v96
  %v104 = vsub.f32 %v75, %v101
  %v105 = vmul.f32 %v103, 1.442695
  %v106 = vpow.pop %v105
  %v107 = vmul.f32 %v104, 1.442695
  %v108 = vpow.pop %v107
  %v109 = vsel %vm72, %v106, 0.0
  %v110 = vsel %vm73, %v108, 0.0
  %v111 = vld [vmem:[#allocation3] sm:$0xff]
  %v112 = vld [vmem:[#allocation3 + $0x8] sm:$0xff]
  %v113 = vmul.f32 %v90, %v111
  %v114 = vmul.f32 %v92, %v112
  %v115 = vsel %vm78, %v109, 0.0
  %116 = vadd.xlane.f32.xlu0 %v115
  %v117 = vpop.xlane.xlu0 %116
  %v118 = vsel %vm78, %v110, 0.0
  %119 = vadd.xlane.f32.xlu0 %v118
  %v120 = vpop.xlane.xlu0 %119
  %v121 = vadd.f32 %v113, %v117
  %v122 = vadd.f32 %v114, %v120
  %vm123 = vcmask 7168
  %124 = vst.msk [vmem:[#allocation3] sm:$0xff] %vm123, %v121
  %125 = vst.msk [vmem:[#allocation3 + $0x8] sm:$0xff] %vm123, %v122
  %v126 = vld [vmem:[#allocation4] sm:$0xff]
  %v127 = vld [vmem:[#allocation4 + $0x8] sm:$0xff]
  %129 = vset.pattern.permute.xlu0 0
  %130 = vperm.xlu0 %129, %v90
  %v131 = vpop.permute.xlu0 %130
  %134 = vset.pattern.permute.xlu0 0
  %135 = vperm.xlu0 %134, %v92
  %v136 = vpop.permute.xlu0 %135
  %v138 = vmul.f32 %v131, %v126
  %v139 = vmul.f32 %v136, %v127
  %v140 = vpack.c.bf16 %v110, %v109
  %v141 = vld [vmem:[%s0] sm:$0xf]
  %v142 = vld [vmem:[%s0 + $0x4] sm:$0xf]
  %v145 = vunpack.c.l.b16 %v141
  %v146 = vunpack.c.l.b16 %v142
  %v147 = vpack.c.b16 %v146, %v145
  %v150 = vsel %vm78, %v140, 0
  %152 = vmatprep.subr.bf16.mxu0 0
  %153 = vmatpush1.bf16.msra.mxu0 0
  %154 = vmatprep.subr.bf16.mxu0 0
  %155 = vmatpush1.bf16.msra.mxu0 0
  %156 = vmatprep.subr.bf16.mxu0 0
  %157 = vmatpush1.bf16.msra.mxu0 0
  %158 = vmatprep.subr.bf16.mxu0 0
  %159 = vmatpush1.bf16.msra.mxu0 0
  %160 = vmatprep.subr.bf16.mxu0 0
  %161 = vmatpush1.bf16.msra.mxu0 0
  %162 = vmatprep.subr.bf16.mxu0 0
  %163 = vmatpush1.bf16.msra.mxu0 0
  %164 = vmatprep.subr.bf16.mxu0 0
  %165 = vmatpush1.bf16.msra.mxu0 0
  %166 = vmatprep.subr.bf16.mxu0 0
  %167 = vmatpush1.bf16.msra.mxu0 %v147
  %168 = vmatprep.subr.bf16.mxu0 0
  %169 = vmatpush2.bf16.msra.mxu0 0
  %170 = vmatprep.subr.bf16.mxu0 0
  %171 = vmatpush2.bf16.msra.mxu0 0
  %172 = vmatprep.subr.bf16.mxu0 0
  %173 = vmatpush2.bf16.msra.mxu0 0
  %174 = vmatprep.subr.bf16.mxu0 0
  %175 = vmatpush2.bf16.msra.mxu0 0
  %176 = vmatprep.subr.bf16.mxu0 0
  %177 = vmatpush2.bf16.msra.mxu0 0
  %178 = vmatprep.subr.bf16.mxu0 0
  %179 = vmatpush2.bf16.msra.mxu0 0
  %180 = vmatprep.subr.bf16.mxu0 0
  %181 = vmatpush2.bf16.msra.mxu0 0
  %182 = vmatprep.subr.bf16.mxu0 0
  %183 = vmatpush2.bf16.msra.mxu0 0
  %184 = vmatprep.mubr.bf16.mxu0 0
  %185 = vmatmul.mubr.bf16.gmra.mxu0 %v150
  %v186 = vpop.f32.mrf.mxu0
  %v187 = vadd.f32 0.0, %v186
  %v188 = vpop.f32.mrf.mxu0
  %v189 = vpop.f32.mrf.mxu0
  %v190 = vadd.f32 0.0, %v189
  %v191 = vpop.f32.mrf.mxu0
  %192 = vdwg.mxu0
  %v193 = vadd.f32 %v138, %v187
  %v194 = vadd.f32 %v139, %v190
  %195 = vst [vmem:[#allocation4] sm:$0xff] %v193
  %196 = vst [vmem:[#allocation4 + $0x8] sm:$0xff] %v194
  %197 = vst.msk [vmem:[#allocation2] sm:$0xff] %vm123, %v85
  %198 = vst.msk [vmem:[#allocation2 + $0x8] sm:$0xff] %vm123, %v86
  // Predicated region
  $region30: #{forward.6} parent=0 // pred_check
    %p199 = pneg %p26
  $region31: #{forward.6} parent=0 // pred_check_branch
    %201 = sbr.rel (%p199) target = $region33
  $region32: #{forward.6} parent=0 // pred_region
    %v202 = vld [vmem:[#allocation3] sm:$0xff]
    %v203 = vld [vmem:[#allocation3 + $0x8] sm:$0xff]
    %v204 = vld [vmem:[#allocation4] sm:$0xff]
    %v205 = vld [vmem:[#allocation4 + $0x8] sm:$0xff]
    %v206 = vrcp.pop %v202
    %v207 = vrcp.pop %v203
    %209 = vset.pattern.permute.xlu0 0
    %210 = vperm.xlu0 %209, %v206
    %v211 = vpop.permute.xlu0 %210
    %214 = vset.pattern.permute.xlu0 0
    %215 = vperm.xlu0 %214, %v207
    %v216 = vpop.permute.xlu0 %215
    %v218 = vmul.f32 %v204, %v211
    %v219 = vmul.f32 %v205, %v216
    %v220 = vld [vmem:[%s4] sm:$0x1]
    %v222 = vlaneseq
    %v223 = vshrl.u32 %v222, 7
    %v224 = vsub.s32 0, %v223
    %v225 = vrot.slane %v220, %v224
    %v227 = vmul.f32 %v218, %v225
    %v228 = vmul.f32 %v219, %v225
    %v229 = vld [vmem:[%s5] sm:$0x1]
    %v231 = vlaneseq
    %v232 = vshrl.u32 %v231, 7
    %v233 = vsub.s32 0, %v232
    %v234 = vrot.slane %v229, %v233
    %v236 = vadd.f32 %v227, %v234
    %v237 = vadd.f32 %v228, %v234
    %vm238 = vcmp.gt.f32.partialorder %v202, 0.0
    %vm239 = vcmp.gt.f32.partialorder %v203, 0.0
    %v240 = vsel %vm238, 1, 0
    %v241 = vsel %vm239, 1, 0
    %242 = vset.pattern.permute.xlu0 0
    %243 = vperm.xlu0 %242, %v240
    %v244 = vpop.permute.xlu0 %243
    %245 = vset.pattern.permute.xlu0 0
    %246 = vperm.xlu0 %245, %v241
    %v247 = vpop.permute.xlu0 %246
    %vm248 = vcmp.eq.s32.totalorder %v244, 1
    %vm249 = vcmp.eq.s32.totalorder %v247, 1
    %v250 = vsel %vm248, %v236, 0.0
    %v251 = vsel %vm249, %v237, 0.0
    %252 = vst [vmem:[%s6] sm:$0xff] %v250
    %253 = vst [vmem:[%s6 + $0x8] sm:$0xff] %v251
  $region33: #{forward.6} parent=0 // pred_fallthru
    _
  // Predicated region
  $region34: #{forward.6} parent=0 // pred_check
    _
  $region35: #{forward.6} parent=0 // pred_check_branch
    %255 = sbr.rel (0) target = $region37
  $region36: #{forward.6} parent=0 // pred_region
    _
  $region37: #{forward.6} parent=0 // pred_fallthru
    _
  // Predicated region
  $region38: #{forward.6} parent=0 // pred_check
    _
  $region39: #{forward.6} parent=0 // pred_check_branch
    %257 = sbr.rel (0) target = $region41
  $region40: #{forward.6} parent=0 // pred_region
    _
  $region41: #{forward.6} parent=0 // pred_fallthru
    _

// kernel: forward.5
$region0: #{forward.5}
  #allocation0 [shape = 'u32[]', space=smem, size = 0x4, offset = 0x4, fixed_abs, tag = 'smem constant byte address 0x4 - core index']
  #allocation1 [shape = 'u32[144,128]{1,0:T(1,128)}', space=vmem, size = 0x12000, scoped, tag = 'internal scratch']
  %s0 = inlined_call_operand.vmem [shape: bf16[16,1024], index: 0, kind: input, shape index: {}]
  %s1 = inlined_call_operand.hbm [shape: bf16[1024,128], index: 1, kind: input, shape index: {}]
  %s2 = inlined_call_operand.vmem [shape: bf16[16,128], index: 2, kind: input, shape index: {}]
  %s3 = inlined_call_operand.vmem [shape: bf16[128,128], index: 3, kind: input, shape index: {}]
  %s4 = inlined_call_operand.vmem [shape: f32[1,128], index: 4, kind: input, shape index: {}]
  %s5 = inlined_call_operand.vmem [shape: f32[1,128], index: 5, kind: input, shape index: {}]
  %s6 = inlined_call_operand.vmem [shape: f32[16,128], index: 6, kind: output, shape index: {0}]
  %s7 = inlined_call_operand.vmem [shape: bf16[16,128], index: 7, kind: output, shape index: {1}]
  %s8 = inlined_call_operand.vmem [shape: f32[1,16], index: 8, kind: output, shape index: {2}]
  %s9 = inlined_call_operand.vmem [shape: f32[16,1], index: 9, kind: output, shape index: {3}]
  %10 = xla_tuple %s6, %s7, %s8, %s9
  %s11 = sld [smem:[#allocation0]]
  $region62: #{forward.5} parent=0
    _
  %s13 = ssub.s32 1, %s11
  %s14 = scalar_select 0, %s13, %s11
  $region1: #{forward.5} parent=0
    #allocation2 [shape = 'u8[262144]{0}', space=vmem, size = 0x40000, scoped, tag = 'input window, operand 1, single buffered']
    #allocation3 [shape = 's32[1]{0}', space=sflag, size = 0x4, scoped, tag = 'scoped memory for forward.5']
    %15 = vsyncpa [#allocation3], 0
    // Predicated region
    $region2: #{forward.5} parent=1 // pred_check
      _
    $region3: #{forward.5} parent=1 // pred_check_branch
      %17 = sbr.rel (0) target = $region5
    $region4: #{forward.5} parent=1 // pred_region
      _
    $region5: #{forward.5} parent=1 // pred_fallthru
      _
    // Predicated region
    $region6: #{forward.5} parent=1 // pred_check
      _
    $region7: #{forward.5} parent=1 // pred_check_branch
      %19 = sbr.rel (0) target = $region9
    $region8: #{forward.5} parent=1 // pred_region
      %s21 = ssub.s32 8192, 8192
      %22 = vsyncadd [#allocation3], %s21
      %s23 = sshll.u32 [#allocation2], 4
      %s24 = int_to_ptr.vmem [resolvable:$true] %s23
      %29 = dma.hbm_to_vmem [thread:$0]  %s1, 8192, %s24, [#allocation3], 64, 64, 4
    $region9: #{forward.5} parent=1 // pred_fallthru
      _
    // Predicated region
    $region10: #{forward.5} parent=1 // pred_check
      _
    $region11: #{forward.5} parent=1 // pred_check_branch
      %31 = sbr.rel (0) target = $region13
    $region12: #{forward.5} parent=1 // pred_region
      _
    $region13: #{forward.5} parent=1 // pred_fallthru
      _
    // Predicated region
    $region14: #{forward.5} parent=1 // pred_check
      _
    $region15: #{forward.5} parent=1 // pred_check_branch
      %33 = sbr.rel (0) target = $region17
    $region16: #{forward.5} parent=1 // pred_region
      _
    $region17: #{forward.5} parent=1 // pred_fallthru
      _
    // Predicated region
    $region18: #{forward.5} parent=1 // pred_check
      _
    $region19: #{forward.5} parent=1 // pred_check_branch
      %35 = sbr.rel (0) target = $region21
    $region20: #{forward.5} parent=1 // pred_region
      _
    $region21: #{forward.5} parent=1 // pred_fallthru
      _
    // Predicated region
    $region22: #{forward.5} parent=1 // pred_check
      _
    $region23: #{forward.5} parent=1 // pred_check_branch
      %37 = sbr.rel (0) target = $region25
    $region24: #{forward.5} parent=1 // pred_region
      _
    $region25: #{forward.5} parent=1 // pred_fallthru
      _
    // Predicated region
    $region26: #{forward.5} parent=1 // pred_check
      _
    $region27: #{forward.5} parent=1 // pred_check_branch
      %39 = sbr.rel (0) target = $region29
    $region28: #{forward.5} parent=1 // pred_region
      %40 = dma.done [#allocation3], 8192
    $region29: #{forward.5} parent=1 // pred_fallthru
      _
    %v42 = vld [vmem:[%s0] sm:$0xff]
    %v43 = vld [vmem:[%s0 + $0x8] sm:$0xff]
    %v44 = vld [vmem:[%s0 + $0x10] sm:$0xff]
    %v45 = vld [vmem:[%s0 + $0x18] sm:$0xff]
    %v46 = vld [vmem:[%s0 + $0x20] sm:$0xff]
    %v47 = vld [vmem:[%s0 + $0x28] sm:$0xff]
    %v48 = vld [vmem:[%s0 + $0x30] sm:$0xff]
    %v49 = vld [vmem:[%s0 + $0x38] sm:$0xff]
    %v50 = vld [vmem:[#allocation2] sm:$0xf]
    %v51 = vld [vmem:[#allocation2 + $0x4] sm:$0xf]
    %v52 = vld [vmem:[#allocation2 + $0x8] sm:$0xf]
    %v53 = vld [vmem:[#allocation2 + $0xc] sm:$0xf]
    %v54 = vld [vmem:[#allocation2 + $0x10] sm:$0xf]
    %v55 = vld [vmem:[#allocation2 + $0x14] sm:$0xf]
    %v56 = vld [vmem:[#allocation2 + $0x18] sm:$0xf]
    %v57 = vld [vmem:[#allocation2 + $0x1c] sm:$0xf]
    %v58 = vld [vmem:[#allocation2 + $0x20] sm:$0xf]
    %v59 = vld [vmem:[#allocation2 + $0x24] sm:$0xf]
    %v60 = vld [vmem:[#allocation2 + $0x28] sm:$0xf]
    %v61 = vld [vmem:[#allocation2 + $0x2c] sm:$0xf]
    %v62 = vld [vmem:[#allocation2 + $0x30] sm:$0xf]
    %v63 = vld [vmem:[#allocation2 + $0x34] sm:$0xf]
    %v64 = vld [vmem:[#allocation2 + $0x38] sm:$0xf]
    %v65 = vld [vmem:[#allocation2 + $0x3c] sm:$0xf]
    %v66 = vld [vmem:[#allocation2 + $0x40] sm:$0xf]
    %v67 = vld [vmem:[#allocation2 + $0x44] sm:$0xf]
    %v68 = vld [vmem:[#allocation2 + $0x48] sm:$0xf]
    %v69 = vld [vmem:[#allocation2 + $0x4c] sm:$0xf]
    %v70 = vld [vmem:[#allocation2 + $0x50] sm:$0xf]
    %v71 = vld [vmem:[#allocation2 + $0x54] sm:$0xf]
    %v72 = vld [vmem:[#allocation2 + $0x58] sm:$0xf]
    %v73 = vld [vmem:[#allocation2 + $0x5c] sm:$0xf]
    %v74 = vld [vmem:[#allocation2 + $0x60] sm:$0xf]
    %v75 = vld [vmem:[#allocation2 + $0x64] sm:$0xf]
    %v76 = vld [vmem:[#allocation2 + $0x68] sm:$0xf]
    %v77 = vld [vmem:[#allocation2 + $0x6c] sm:$0xf]
    %v78 = vld [vmem:[#allocation2 + $0x70] sm:$0xf]
    %v79 = vld [vmem:[#allocation2 + $0x74] sm:$0xf]
    %v80 = vld [vmem:[#allocation2 + $0x78] sm:$0xf]
    %v81 = vld [vmem:[#allocation2 + $0x7c] sm:$0xf]
    %v82 = vld [vmem:[#allocation2 + $0x80] sm:$0xf]
    %v83 = vld [vmem:[#allocation2 + $0x84] sm:$0xf]
    %v84 = vld [vmem:[#allocation2 + $0x88] sm:$0xf]
    %v85 = vld [vmem:[#allocation2 + $0x8c] sm:$0xf]
    %v86 = vld [vmem:[#allocation2 + $0x90] sm:$0xf]
    %v87 = vld [vmem:[#allocation2 + $0x94] sm:$0xf]
    %v88 = vld [vmem:[#allocation2 + $0x98] sm:$0xf]
    %v89 = vld [vmem:[#allocation2 + $0x9c] sm:$0xf]
    %v90 = vld [vmem:[#allocation2 + $0xa0] sm:$0xf]
    %v91 = vld [vmem:[#allocation2 + $0xa4] sm:$0xf]
    %v92 = vld [vmem:[#allocation2 + $0xa8] sm:$0xf]
    %v93 = vld [vmem:[#allocation2 + $0xac] sm:$0xf]
    %v94 = vld [vmem:[#allocation2 + $0xb0] sm:$0xf]
    %v95 = vld [vmem:[#allocation2 + $0xb4] sm:$0xf]
    %v96 = vld [vmem:[#allocation2 + $0xb8] sm:$0xf]
    %v97 = vld [vmem:[#allocation2 + $0xbc] sm:$0xf]
    %v98 = vld [vmem:[#allocation2 + $0xc0] sm:$0xf]
    %v99 = vld [vmem:[#allocation2 + $0xc4] sm:$0xf]
    %v100 = vld [vmem:[#allocation2 + $0xc8] sm:$0xf]
    %v101 = vld [vmem:[#allocation2 + $0xcc] sm:$0xf]
    %v102 = vld [vmem:[#allocation2 + $0xd0] sm:$0xf]
    %v103 = vld [vmem:[#allocation2 + $0xd4] sm:$0xf]
    %v104 = vld [vmem:[#allocation2 + $0xd8] sm:$0xf]
    %v105 = vld [vmem:[#allocation2 + $0xdc] sm:$0xf]
    %v106 = vld [vmem:[#allocation2 + $0xe0] sm:$0xf]
    %v107 = vld [vmem:[#allocation2 + $0xe4] sm:$0xf]
    %v108 = vld [vmem:[#allocation2 + $0xe8] sm:$0xf]
    %v109 = vld [vmem:[#allocation2 + $0xec] sm:$0xf]
    %v110 = vld [vmem:[#allocation2 + $0xf0] sm:$0xf]
    %v111 = vld [vmem:[#allocation2 + $0xf4] sm:$0xf]
    %v112 = vld [vmem:[#allocation2 + $0xf8] sm:$0xf]
    %v113 = vld [vmem:[#allocation2 + $0xfc] sm:$0xf]
    %v114 = vld [vmem:[#allocation2 + $0x100] sm:$0xf]
    %v115 = vld [vmem:[#allocation2 + $0x104] sm:$0xf]
    %v116 = vld [vmem:[#allocation2 + $0x108] sm:$0xf]
    %v117 = vld [vmem:[#allocation2 + $0x10c] sm:$0xf]
    %v118 = vld [vmem:[#allocation2 + $0x110] sm:$0xf]
    %v119 = vld [vmem:[#allocation2 + $0x114] sm:$0xf]
    %v120 = vld [vmem:[#allocation2 + $0x118] sm:$0xf]
    %v121 = vld [vmem:[#allocation2 + $0x11c] sm:$0xf]
    %v122 = vld [vmem:[#allocation2 + $0x120] sm:$0xf]
    %v123 = vld [vmem:[#allocation2 + $0x124] sm:$0xf]
    %v124 = vld [vmem:[#allocation2 + $0x128] sm:$0xf]
    %v125 = vld [vmem:[#allocation2 + $0x12c] sm:$0xf]
    %v126 = vld [vmem:[#allocation2 + $0x130] sm:$0xf]
    %v127 = vld [vmem:[#allocation2 + $0x134] sm:$0xf]
    %v128 = vld [vmem:[#allocation2 + $0x138] sm:$0xf]
    %v129 = vld [vmem:[#allocation2 + $0x13c] sm:$0xf]
    %v130 = vld [vmem:[#allocation2 + $0x140] sm:$0xf]
    %v131 = vld [vmem:[#allocation2 + $0x144] sm:$0xf]
    %v132 = vld [vmem:[#allocation2 + $0x148] sm:$0xf]
    %v133 = vld [vmem:[#allocation2 + $0x14c] sm:$0xf]
    %v134 = vld [vmem:[#allocation2 + $0x150] sm:$0xf]
    %v135 = vld [vmem:[#allocation2 + $0x154] sm:$0xf]
    %v136 = vld [vmem:[#allocation2 + $0x158] sm:$0xf]
    %v137 = vld [vmem:[#allocation2 + $0x15c] sm:$0xf]
    %v138 = vld [vmem:[#allocation2 + $0x160] sm:$0xf]
    %v139 = vld [vmem:[#allocation2 + $0x164] sm:$0xf]
    %v140 = vld [vmem:[#allocation2 + $0x168] sm:$0xf]
    %v141 = vld [vmem:[#allocation2 + $0x16c] sm:$0xf]
    %v142 = vld [vmem:[#allocation2 + $0x170] sm:$0xf]
    %v143 = vld [vmem:[#allocation2 + $0x174] sm:$0xf]
    %v144 = vld [vmem:[#allocation2 + $0x178] sm:$0xf]
    %v145 = vld [vmem:[#allocation2 + $0x17c] sm:$0xf]
    %v146 = vld [vmem:[#allocation2 + $0x180] sm:$0xf]
    %v147 = vld [vmem:[#allocation2 + $0x184] sm:$0xf]
    %v148 = vld [vmem:[#allocation2 + $0x188] sm:$0xf]
    %v149 = vld [vmem:[#allocation2 + $0x18c] sm:$0xf]
    %v150 = vld [vmem:[#allocation2 + $0x190] sm:$0xf]
    %v151 = vld [vmem:[#allocation2 + $0x194] sm:$0xf]
    %v152 = vld [vmem:[#allocation2 + $0x198] sm:$0xf]
    %v153 = vld [vmem:[#allocation2 + $0x19c] sm:$0xf]
    %v154 = vld [vmem:[#allocation2 + $0x1a0] sm:$0xf]
    %v155 = vld [vmem:[#allocation2 + $0x1a4] sm:$0xf]
    %v156 = vld [vmem:[#allocation2 + $0x1a8] sm:$0xf]
    %v157 = vld [vmem:[#allocation2 + $0x1ac] sm:$0xf]
    %v158 = vld [vmem:[#allocation2 + $0x1b0] sm:$0xf]
    %v159 = vld [vmem:[#allocation2 + $0x1b4] sm:$0xf]
    %v160 = vld [vmem:[#allocation2 + $0x1b8] sm:$0xf]
    %v161 = vld [vmem:[#allocation2 + $0x1bc] sm:$0xf]
    %v162 = vld [vmem:[#allocation2 + $0x1c0] sm:$0xf]
    %v163 = vld [vmem:[#allocation2 + $0x1c4] sm:$0xf]
    %v164 = vld [vmem:[#allocation2 + $0x1c8] sm:$0xf]
    %v165 = vld [vmem:[#allocation2 + $0x1cc] sm:$0xf]
    %v166 = vld [vmem:[#allocation2 + $0x1d0] sm:$0xf]
    %v167 = vld [vmem:[#allocation2 + $0x1d4] sm:$0xf]
    %v168 = vld [vmem:[#allocation2 + $0x1d8] sm:$0xf]
    %v169 = vld [vmem:[#allocation2 + $0x1dc] sm:$0xf]
    %v170 = vld [vmem:[#allocation2 + $0x1e0] sm:$0xf]
    %v171 = vld [vmem:[#allocation2 + $0x1e4] sm:$0xf]
    %v172 = vld [vmem:[#allocation2 + $0x1e8] sm:$0xf]
    %v173 = vld [vmem:[#allocation2 + $0x1ec] sm:$0xf]
    %v174 = vld [vmem:[#allocation2 + $0x1f0] sm:$0xf]
    %v175 = vld [vmem:[#allocation2 + $0x1f4] sm:$0xf]
    %v176 = vld [vmem:[#allocation2 + $0x1f8] sm:$0xf]
    %v177 = vld [vmem:[#allocation2 + $0x1fc] sm:$0xf]
    %v178 = vld [vmem:[%s2] sm:$0xf]
    %v179 = vld [vmem:[%s2 + $0x4] sm:$0xf]
    %v180 = vunpack.c.l.bf16 %v178
    %v181 = vunpack.c.l.bf16 %v179
    %v190 = vunpack.c.l.b16 %v42
    %v191 = vunpack.c.h.b16 %v42
    %v192 = vunpack.c.l.b16 %v43
    %v193 = vunpack.c.h.b16 %v43
    %v194 = vunpack.c.l.b16 %v44
    %v195 = vunpack.c.h.b16 %v44
    %v196 = vunpack.c.l.b16 %v45
    %v197 = vunpack.c.h.b16 %v45
    %v198 = vunpack.c.l.b16 %v46
    %v199 = vunpack.c.h.b16 %v46
    %v200 = vunpack.c.l.b16 %v47
    %v201 = vunpack.c.h.b16 %v47
    %v202 = vunpack.c.l.b16 %v48
    %v203 = vunpack.c.h.b16 %v48
    %v204 = vunpack.c.l.b16 %v49
    %v205 = vunpack.c.h.b16 %v49
    %v206 = vpack.c.b16 %v198, %v190
    %v207 = vpack.c.b16 %v199, %v191
    %v208 = vpack.c.b16 %v200, %v192
    %v209 = vpack.c.b16 %v201, %v193
    %v210 = vpack.c.b16 %v202, %v194
    %v211 = vpack.c.b16 %v203, %v195
    %v212 = vpack.c.b16 %v204, %v196
    %v213 = vpack.c.b16 %v205, %v197
    %v350 = vunpack.c.l.b16 %v50
    %v351 = vunpack.c.l.b16 %v51
    %v352 = vunpack.c.l.b16 %v52
    %v353 = vunpack.c.l.b16 %v53
    %v354 = vunpack.c.l.b16 %v54
    %v355 = vunpack.c.l.b16 %v55
    %v356 = vunpack.c.l.b16 %v56
    %v357 = vunpack.c.l.b16 %v57
    %v358 = vunpack.c.l.b16 %v58
    %v359 = vunpack.c.l.b16 %v59
    %v360 = vunpack.c.l.b16 %v60
    %v361 = vunpack.c.l.b16 %v61
    %v362 = vunpack.c.l.b16 %v62
    %v363 = vunpack.c.l.b16 %v63
    %v364 = vunpack.c.l.b16 %v64
    %v365 = vunpack.c.l.b16 %v65
    %v366 = vunpack.c.l.b16 %v66
    %v367 = vunpack.c.l.b16 %v67
    %v368 = vunpack.c.l.b16 %v68
    %v369 = vunpack.c.l.b16 %v69
    %v370 = vunpack.c.l.b16 %v70
    %v371 = vunpack.c.l.b16 %v71
    %v372 = vunpack.c.l.b16 %v72
    %v373 = vunpack.c.l.b16 %v73
    %v374 = vunpack.c.l.b16 %v74
    %v375 = vunpack.c.l.b16 %v75
    %v376 = vunpack.c.l.b16 %v76
    %v377 = vunpack.c.l.b16 %v77
    %v378 = vunpack.c.l.b16 %v78
    %v379 = vunpack.c.l.b16 %v79
    %v380 = vunpack.c.l.b16 %v80
    %v381 = vunpack.c.l.b16 %v81
    %v382 = vunpack.c.l.b16 %v82
    %v383 = vunpack.c.l.b16 %v83
    %v384 = vunpack.c.l.b16 %v84
    %v385 = vunpack.c.l.b16 %v85
    %v386 = vunpack.c.l.b16 %v86
    %v387 = vunpack.c.l.b16 %v87
    %v388 = vunpack.c.l.b16 %v88
    %v389 = vunpack.c.l.b16 %v89
    %v390 = vunpack.c.l.b16 %v90
    %v391 = vunpack.c.l.b16 %v91
    %v392 = vunpack.c.l.b16 %v92
    %v393 = vunpack.c.l.b16 %v93
    %v394 = vunpack.c.l.b16 %v94
    %v395 = vunpack.c.l.b16 %v95
    %v396 = vunpack.c.l.b16 %v96
    %v397 = vunpack.c.l.b16 %v97
    %v398 = vunpack.c.l.b16 %v98
    %v399 = vunpack.c.l.b16 %v99
    %v400 = vunpack.c.l.b16 %v100
    %v401 = vunpack.c.l.b16 %v101
    %v402 = vunpack.c.l.b16 %v102
    %v403 = vunpack.c.l.b16 %v103
    %v404 = vunpack.c.l.b16 %v104
    %v405 = vunpack.c.l.b16 %v105
    %v406 = vunpack.c.l.b16 %v106
    %v407 = vunpack.c.l.b16 %v107
    %v408 = vunpack.c.l.b16 %v108
    %v409 = vunpack.c.l.b16 %v109
    %v410 = vunpack.c.l.b16 %v110
    %v411 = vunpack.c.l.b16 %v111
    %v412 = vunpack.c.l.b16 %v112
    %v413 = vunpack.c.l.b16 %v113
    %v414 = vunpack.c.l.b16 %v114
    %v415 = vunpack.c.l.b16 %v115
    %v416 = vunpack.c.l.b16 %v116
    %v417 = vunpack.c.l.b16 %v117
    %v418 = vunpack.c.l.b16 %v118
    %v419 = vunpack.c.l.b16 %v119
    %v420 = vunpack.c.l.b16 %v120
    %v421 = vunpack.c.l.b16 %v121
    %v422 = vunpack.c.l.b16 %v122
    %v423 = vunpack.c.l.b16 %v123
    %v424 = vunpack.c.l.b16 %v124
    %v425 = vunpack.c.l.b16 %v125
    %v426 = vunpack.c.l.b16 %v126
    %v427 = vunpack.c.l.b16 %v127
    %v428 = vunpack.c.l.b16 %v128
    %v429 = vunpack.c.l.b16 %v129
    %v430 = vunpack.c.l.b16 %v130
    %v431 = vunpack.c.l.b16 %v131
    %v432 = vunpack.c.l.b16 %v132
    %v433 = vunpack.c.l.b16 %v133
    %v434 = vunpack.c.l.b16 %v134
    %v435 = vunpack.c.l.b16 %v135
    %v436 = vunpack.c.l.b16 %v136
    %v437 = vunpack.c.l.b16 %v137
    %v438 = vunpack.c.l.b16 %v138
    %v439 = vunpack.c.l.b16 %v139
    %v440 = vunpack.c.l.b16 %v140
    %v441 = vunpack.c.l.b16 %v141
    %v442 = vunpack.c.l.b16 %v142
    %v443 = vunpack.c.l.b16 %v143
    %v444 = vunpack.c.l.b16 %v144
    %v445 = vunpack.c.l.b16 %v145
    %v446 = vunpack.c.l.b16 %v146
    %v447 = vunpack.c.l.b16 %v147
    %v448 = vunpack.c.l.b16 %v148
    %v449 = vunpack.c.l.b16 %v149
    %v450 = vunpack.c.l.b16 %v150
    %v451 = vunpack.c.l.b16 %v151
    %v452 = vunpack.c.l.b16 %v152
    %v453 = vunpack.c.l.b16 %v153
    %v454 = vunpack.c.l.b16 %v154
    %v455 = vunpack.c.l.b16 %v155
    %v456 = vunpack.c.l.b16 %v156
    %v457 = vunpack.c.l.b16 %v157
    %v458 = vunpack.c.l.b16 %v158
    %v459 = vunpack.c.l.b16 %v159
    %v460 = vunpack.c.l.b16 %v160
    %v461 = vunpack.c.l.b16 %v161
    %v462 = vunpack.c.l.b16 %v162
    %v463 = vunpack.c.l.b16 %v163
    %v464 = vunpack.c.l.b16 %v164
    %v465 = vunpack.c.l.b16 %v165
    %v466 = vunpack.c.l.b16 %v166
    %v467 = vunpack.c.l.b16 %v167
    %v468 = vunpack.c.l.b16 %v168
    %v469 = vunpack.c.l.b16 %v169
    %v470 = vunpack.c.l.b16 %v170
    %v471 = vunpack.c.l.b16 %v171
    %v472 = vunpack.c.l.b16 %v172
    %v473 = vunpack.c.l.b16 %v173
    %v474 = vunpack.c.l.b16 %v174
    %v475 = vunpack.c.l.b16 %v175
    %v476 = vunpack.c.l.b16 %v176
    %v477 = vunpack.c.l.b16 %v177
    %v478 = vpack.c.b16 %v351, %v350
    %v479 = vpack.c.b16 %v353, %v352
    %v480 = vpack.c.b16 %v355, %v354
    %v481 = vpack.c.b16 %v357, %v356
    %v482 = vpack.c.b16 %v359, %v358
    %v483 = vpack.c.b16 %v361, %v360
    %v484 = vpack.c.b16 %v363, %v362
    %v485 = vpack.c.b16 %v365, %v364
    %v486 = vpack.c.b16 %v367, %v366
    %v487 = vpack.c.b16 %v369, %v368
    %v488 = vpack.c.b16 %v371, %v370
    %v489 = vpack.c.b16 %v373, %v372
    %v490 = vpack.c.b16 %v375, %v374
    %v491 = vpack.c.b16 %v377, %v376
    %v492 = vpack.c.b16 %v379, %v378
    %v493 = vpack.c.b16 %v381, %v380
    %v494 = vpack.c.b16 %v383, %v382
    %v495 = vpack.c.b16 %v385, %v384
    %v496 = vpack.c.b16 %v387, %v386
    %v497 = vpack.c.b16 %v389, %v388
    %v498 = vpack.c.b16 %v391, %v390
    %v499 = vpack.c.b16 %v393, %v392
    %v500 = vpack.c.b16 %v395, %v394
    %v501 = vpack.c.b16 %v397, %v396
    %v502 = vpack.c.b16 %v399, %v398
    %v503 = vpack.c.b16 %v401, %v400
    %v504 = vpack.c.b16 %v403, %v402
    %v505 = vpack.c.b16 %v405, %v404
    %v506 = vpack.c.b16 %v407, %v406
    %v507 = vpack.c.b16 %v409, %v408
    %v508 = vpack.c.b16 %v411, %v410
    %v509 = vpack.c.b16 %v413, %v412
    %v510 = vpack.c.b16 %v415, %v414
    %v511 = vpack.c.b16 %v417, %v416
    %v512 = vpack.c.b16 %v419, %v418
    %v513 = vpack.c.b16 %v421, %v420
    %v514 = vpack.c.b16 %v423, %v422
    %v515 = vpack.c.b16 %v425, %v424
    %v516 = vpack.c.b16 %v427, %v426
    %v517 = vpack.c.b16 %v429, %v428
    %v518 = vpack.c.b16 %v431, %v430
    %v519 = vpack.c.b16 %v433, %v432
    %v520 = vpack.c.b16 %v435, %v434
    %v521 = vpack.c.b16 %v437, %v436
    %v522 = vpack.c.b16 %v439, %v438
    %v523 = vpack.c.b16 %v441, %v440
    %v524 = vpack.c.b16 %v443, %v442
    %v525 = vpack.c.b16 %v445, %v444
    %v526 = vpack.c.b16 %v447, %v446
    %v527 = vpack.c.b16 %v449, %v448
    %v528 = vpack.c.b16 %v451, %v450
    %v529 = vpack.c.b16 %v453, %v452
    %v530 = vpack.c.b16 %v455, %v454
    %v531 = vpack.c.b16 %v457, %v456
    %v532 = vpack.c.b16 %v459, %v458
    %v533 = vpack.c.b16 %v461, %v460
    %v534 = vpack.c.b16 %v463, %v462
    %v535 = vpack.c.b16 %v465, %v464
    %v536 = vpack.c.b16 %v467, %v466
    %v537 = vpack.c.b16 %v469, %v468
    %v538 = vpack.c.b16 %v471, %v470
    %v539 = vpack.c.b16 %v473, %v472
    %v540 = vpack.c.b16 %v475, %v474
    %v541 = vpack.c.b16 %v477, %v476
    %606 = vmatprep.subr.bf16.mxu0 0
    %607 = vmatpush1.bf16.msra.mxu0 %v485
    %608 = vmatprep.subr.bf16.mxu0 0
    %609 = vmatpush1.bf16.msra.mxu0 %v484
    %610 = vmatprep.subr.bf16.mxu0 0
    %611 = vmatpush1.bf16.msra.mxu0 %v483
    %612 = vmatprep.subr.bf16.mxu0 0
    %613 = vmatpush1.bf16.msra.mxu0 %v482
    %614 = vmatprep.subr.bf16.mxu0 0
    %615 = vmatpush1.bf16.msra.mxu0 %v481
    %616 = vmatprep.subr.bf16.mxu0 0
    %617 = vmatpush1.bf16.msra.mxu0 %v480
    %618 = vmatprep.subr.bf16.mxu0 0
    %619 = vmatpush1.bf16.msra.mxu0 %v479
    %620 = vmatprep.subr.bf16.mxu0 0
    %621 = vmatpush1.bf16.msra.mxu0 %v478
    %622 = vmatprep.subr.bf16.mxu0 0
    %623 = vmatpush2.bf16.msra.mxu0 %v493
    %624 = vmatprep.subr.bf16.mxu0 0
    %625 = vmatpush2.bf16.msra.mxu0 %v492
    %626 = vmatprep.subr.bf16.mxu0 0
    %627 = vmatpush2.bf16.msra.mxu0 %v491
    %628 = vmatprep.subr.bf16.mxu0 0
    %629 = vmatpush2.bf16.msra.mxu0 %v490
    %630 = vmatprep.subr.bf16.mxu0 0
    %631 = vmatpush2.bf16.msra.mxu0 %v489
    %632 = vmatprep.subr.bf16.mxu0 0
    %633 = vmatpush2.bf16.msra.mxu0 %v488
    %634 = vmatprep.subr.bf16.mxu0 0
    %635 = vmatpush2.bf16.msra.mxu0 %v487
    %636 = vmatprep.subr.bf16.mxu0 0
    %637 = vmatpush2.bf16.msra.mxu0 %v486
    %638 = vmatprep.mubr.bf16.mxu0 %v207
    %639 = vmatmul.mubr.bf16.gmra.mxu0 %v206
    %v640 = vpop.f32.mrf.mxu0
    %v641 = vadd.f32 %v180, %v640
    %v642 = vpop.f32.mrf.mxu0
    %v643 = vpop.f32.mrf.mxu0
    %v644 = vadd.f32 %v181, %v643
    %v645 = vpop.f32.mrf.mxu0
    %646 = vdwg.mxu0
    %647 = vmatprep.subr.bf16.mxu0 0
    %648 = vmatpush1.bf16.msra.mxu0 %v501
    %649 = vmatprep.subr.bf16.mxu0 0
    %650 = vmatpush1.bf16.msra.mxu0 %v500
    %651 = vmatprep.subr.bf16.mxu0 0
    %652 = vmatpush1.bf16.msra.mxu0 %v499
    %653 = vmatprep.subr.bf16.mxu0 0
    %654 = vmatpush1.bf16.msra.mxu0 %v498
    %655 = vmatprep.subr.bf16.mxu0 0
    %656 = vmatpush1.bf16.msra.mxu0 %v497
    %657 = vmatprep.subr.bf16.mxu0 0
    %658 = vmatpush1.bf16.msra.mxu0 %v496
    %659 = vmatprep.subr.bf16.mxu0 0
    %660 = vmatpush1.bf16.msra.mxu0 %v495
    %661 = vmatprep.subr.bf16.mxu0 0
    %662 = vmatpush1.bf16.msra.mxu0 %v494
    %663 = vmatprep.subr.bf16.mxu0 0
    %664 = vmatpush2.bf16.msra.mxu0 %v509
    %665 = vmatprep.subr.bf16.mxu0 0
    %666 = vmatpush2.bf16.msra.mxu0 %v508
    %667 = vmatprep.subr.bf16.mxu0 0
    %668 = vmatpush2.bf16.msra.mxu0 %v507
    %669 = vmatprep.subr.bf16.mxu0 0
    %670 = vmatpush2.bf16.msra.mxu0 %v506
    %671 = vmatprep.subr.bf16.mxu0 0
    %672 = vmatpush2.bf16.msra.mxu0 %v505
    %673 = vmatprep.subr.bf16.mxu0 0
    %674 = vmatpush2.bf16.msra.mxu0 %v504
    %675 = vmatprep.subr.bf16.mxu0 0
    %676 = vmatpush2.bf16.msra.mxu0 %v503
    %677 = vmatprep.subr.bf16.mxu0 0
    %678 = vmatpush2.bf16.msra.mxu0 %v502
    %679 = vmatprep.mubr.bf16.mxu0 %v209
    %680 = vmatmul.mubr.bf16.gmra.mxu0 %v208
    %v681 = vpop.f32.mrf.mxu0
    %v682 = vadd.f32 %v641, %v681
    %v683 = vpop.f32.mrf.mxu0
    %v684 = vpop.f32.mrf.mxu0
    %v685 = vadd.f32 %v644, %v684
    %v686 = vpop.f32.mrf.mxu0
    %687 = vdwg.mxu0
    %688 = vmatprep.subr.bf16.mxu0 0
    %689 = vmatpush1.bf16.msra.mxu0 %v517
    %690 = vmatprep.subr.bf16.mxu0 0
    %691 = vmatpush1.bf16.msra.mxu0 %v516
    %692 = vmatprep.subr.bf16.mxu0 0
    %693 = vmatpush1.bf16.msra.mxu0 %v515
    %694 = vmatprep.subr.bf16.mxu0 0
    %695 = vmatpush1.bf16.msra.mxu0 %v514
    %696 = vmatprep.subr.bf16.mxu0 0
    %697 = vmatpush1.bf16.msra.mxu0 %v513
    %698 = vmatprep.subr.bf16.mxu0 0
    %699 = vmatpush1.bf16.msra.mxu0 %v512
    %700 = vmatprep.subr.bf16.mxu0 0
    %701 = vmatpush1.bf16.msra.mxu0 %v511
    %702 = vmatprep.subr.bf16.mxu0 0
    %703 = vmatpush1.bf16.msra.mxu0 %v510
    %704 = vmatprep.subr.bf16.mxu0 0
    %705 = vmatpush2.bf16.msra.mxu0 %v525
    %706 = vmatprep.subr.bf16.mxu0 0
    %707 = vmatpush2.bf16.msra.mxu0 %v524
    %708 = vmatprep.subr.bf16.mxu0 0
    %709 = vmatpush2.bf16.msra.mxu0 %v523
    %710 = vmatprep.subr.bf16.mxu0 0
    %711 = vmatpush2.bf16.msra.mxu0 %v522
    %712 = vmatprep.subr.bf16.mxu0 0
    %713 = vmatpush2.bf16.msra.mxu0 %v521
    %714 = vmatprep.subr.bf16.mxu0 0
    %715 = vmatpush2.bf16.msra.mxu0 %v520
    %716 = vmatprep.subr.bf16.mxu0 0
    %717 = vmatpush2.bf16.msra.mxu0 %v519
    %718 = vmatprep.subr.bf16.mxu0 0
    %719 = vmatpush2.bf16.msra.mxu0 %v518
    %720 = vmatprep.mubr.bf16.mxu0 %v211
    %721 = vmatmul.mubr.bf16.gmra.mxu0 %v210
    %v722 = vpop.f32.mrf.mxu0
    %v723 = vadd.f32 %v682, %v722
    %v724 = vpop.f32.mrf.mxu0
    %v725 = vpop.f32.mrf.mxu0
    %v726 = vadd.f32 %v685, %v725
    %v727 = vpop.f32.mrf.mxu0
    %728 = vdwg.mxu0
    %729 = vmatprep.subr.bf16.mxu0 0
    %730 = vmatpush1.bf16.msra.mxu0 %v533
    %731 = vmatprep.subr.bf16.mxu0 0
    %732 = vmatpush1.bf16.msra.mxu0 %v532
    %733 = vmatprep.subr.bf16.mxu0 0
    %734 = vmatpush1.bf16.msra.mxu0 %v531
    %735 = vmatprep.subr.bf16.mxu0 0
    %736 = vmatpush1.bf16.msra.mxu0 %v530
    %737 = vmatprep.subr.bf16.mxu0 0
    %738 = vmatpush1.bf16.msra.mxu0 %v529
    %739 = vmatprep.subr.bf16.mxu0 0
    %740 = vmatpush1.bf16.msra.mxu0 %v528
    %741 = vmatprep.subr.bf16.mxu0 0
    %742 = vmatpush1.bf16.msra.mxu0 %v527
    %743 = vmatprep.subr.bf16.mxu0 0
    %744 = vmatpush1.bf16.msra.mxu0 %v526
    %745 = vmatprep.subr.bf16.mxu0 0
    %746 = vmatpush2.bf16.msra.mxu0 %v541
    %747 = vmatprep.subr.bf16.mxu0 0
    %748 = vmatpush2.bf16.msra.mxu0 %v540
    %749 = vmatprep.subr.bf16.mxu0 0
    %750 = vmatpush2.bf16.msra.mxu0 %v539
    %751 = vmatprep.subr.bf16.mxu0 0
    %752 = vmatpush2.bf16.msra.mxu0 %v538
    %753 = vmatprep.subr.bf16.mxu0 0
    %754 = vmatpush2.bf16.msra.mxu0 %v537
    %755 = vmatprep.subr.bf16.mxu0 0
    %756 = vmatpush2.bf16.msra.mxu0 %v536
    %757 = vmatprep.subr.bf16.mxu0 0
    %758 = vmatpush2.bf16.msra.mxu0 %v535
    %759 = vmatprep.subr.bf16.mxu0 0
    %760 = vmatpush2.bf16.msra.mxu0 %v534
    %761 = vmatprep.mubr.bf16.mxu0 %v213
    %762 = vmatmul.mubr.bf16.gmra.mxu0 %v212
    %v763 = vpop.f32.mrf.mxu0
    %v764 = vadd.f32 %v723, %v763
    %v765 = vpop.f32.mrf.mxu0
    %v766 = vpop.f32.mrf.mxu0
    %v767 = vadd.f32 %v726, %v766
    %v768 = vpop.f32.mrf.mxu0
    %769 = vdwg.mxu0
    %770 = vst [vmem:[%s6] sm:$0xff] %v764
    %771 = vst [vmem:[%s6 + $0x8] sm:$0xff] %v767
    %v772 = vpack.c.bf16 %v767, %v764
    %v773 = vld [vmem:[%s3] sm:$0xf]
    %v774 = vld [vmem:[%s3 + $0x4] sm:$0xf]
    %v775 = vld [vmem:[%s3 + $0x8] sm:$0xf]
    %v776 = vld [vmem:[%s3 + $0xc] sm:$0xf]
    %v777 = vld [vmem:[%s3 + $0x10] sm:$0xf]
    %v778 = vld [vmem:[%s3 + $0x14] sm:$0xf]
    %v779 = vld [vmem:[%s3 + $0x18] sm:$0xf]
    %v780 = vld [vmem:[%s3 + $0x1c] sm:$0xf]
    %v781 = vld [vmem:[%s3 + $0x20] sm:$0xf]
    %v782 = vld [vmem:[%s3 + $0x24] sm:$0xf]
    %v783 = vld [vmem:[%s3 + $0x28] sm:$0xf]
    %v784 = vld [vmem:[%s3 + $0x2c] sm:$0xf]
    %v785 = vld [vmem:[%s3 + $0x30] sm:$0xf]
    %v786 = vld [vmem:[%s3 + $0x34] sm:$0xf]
    %v787 = vld [vmem:[%s3 + $0x38] sm:$0xf]
    %v788 = vld [vmem:[%s3 + $0x3c] sm:$0xf]
    %v805 = vunpack.c.l.b16 %v773
    %v806 = vunpack.c.l.b16 %v774
    %v807 = vunpack.c.l.b16 %v775
    %v808 = vunpack.c.l.b16 %v776
    %v809 = vunpack.c.l.b16 %v777
    %v810 = vunpack.c.l.b16 %v778
    %v811 = vunpack.c.l.b16 %v779
    %v812 = vunpack.c.l.b16 %v780
    %v813 = vunpack.c.l.b16 %v781
    %v814 = vunpack.c.l.b16 %v782
    %v815 = vunpack.c.l.b16 %v783
    %v816 = vunpack.c.l.b16 %v784
    %v817 = vunpack.c.l.b16 %v785
    %v818 = vunpack.c.l.b16 %v786
    %v819 = vunpack.c.l.b16 %v787
    %v820 = vunpack.c.l.b16 %v788
    %v821 = vpack.c.b16 %v806, %v805
    %v822 = vpack.c.b16 %v808, %v807
    %v823 = vpack.c.b16 %v810, %v809
    %v824 = vpack.c.b16 %v812, %v811
    %v825 = vpack.c.b16 %v814, %v813
    %v826 = vpack.c.b16 %v816, %v815
    %v827 = vpack.c.b16 %v818, %v817
    %v828 = vpack.c.b16 %v820, %v819
    %837 = vmatprep.subr.bf16.mxu0 0
    %838 = vmatpush1.bf16.msra.mxu0 %v828
    %839 = vmatprep.subr.bf16.mxu0 0
    %840 = vmatpush1.bf16.msra.mxu0 %v827
    %841 = vmatprep.subr.bf16.mxu0 0
    %842 = vmatpush1.bf16.msra.mxu0 %v826
    %843 = vmatprep.subr.bf16.mxu0 0
    %844 = vmatpush1.bf16.msra.mxu0 %v825
    %845 = vmatprep.subr.bf16.mxu0 0
    %846 = vmatpush1.bf16.msra.mxu0 %v824
    %847 = vmatprep.subr.bf16.mxu0 0
    %848 = vmatpush1.bf16.msra.mxu0 %v823
    %849 = vmatprep.subr.bf16.mxu0 0
    %850 = vmatpush1.bf16.msra.mxu0 %v822
    %851 = vmatprep.subr.bf16.mxu0 0
    %852 = vmatpush1.bf16.msra.mxu0 %v821
    %853 = vmatprep.subr.bf16.mxu0 0
    %854 = vmatpush2.bf16.msra.mxu0 0
    %855 = vmatprep.subr.bf16.mxu0 0
    %856 = vmatpush2.bf16.msra.mxu0 0
    %857 = vmatprep.subr.bf16.mxu0 0
    %858 = vmatpush2.bf16.msra.mxu0 0
    %859 = vmatprep.subr.bf16.mxu0 0
    %860 = vmatpush2.bf16.msra.mxu0 0
    %861 = vmatprep.subr.bf16.mxu0 0
    %862 = vmatpush2.bf16.msra.mxu0 0
    %863 = vmatprep.subr.bf16.mxu0 0
    %864 = vmatpush2.bf16.msra.mxu0 0
    %865 = vmatprep.subr.bf16.mxu0 0
    %866 = vmatpush2.bf16.msra.mxu0 0
    %867 = vmatprep.subr.bf16.mxu0 0
    %868 = vmatpush2.bf16.msra.mxu0 0
    %869 = vmatprep.mubr.bf16.mxu0 0
    %870 = vmatmul.mubr.bf16.gmra.mxu0 %v772
    %v871 = vpop.f32.mrf.mxu0
    %v872 = vadd.f32 0.0, %v871
    %v873 = vpop.f32.mrf.mxu0
    %v874 = vpop.f32.mrf.mxu0
    %v875 = vadd.f32 0.0, %v874
    %v876 = vpop.f32.mrf.mxu0
    %877 = vdwg.mxu0
    %v878 = vpack.c.bf16 %v875, %v872
    %v880 = vunpack.c.l.b16 %v878
    %v881 = vunpack.c.h.b16 %v878
    %v882 = vpack.c.b16 %v880, %v880
    %v883 = vpack.c.b16 %v881, %v881
    %886 = vst [vmem:[%s7] sm:$0xf] %v882
    %887 = vst [vmem:[%s7 + $0x4] sm:$0xf] %v883
    %v888 = vld [vmem:[%s5] sm:$0x1]
    %v890 = vlaneseq
    %v891 = vshrl.u32 %v890, 7
    %v892 = vsub.s32 0, %v891
    %v893 = vrot.slane %v888, %v892
    %v895 = vmul.f32 %v872, %v893
    %v896 = vmul.f32 %v875, %v893
    %897 = vadd.xlane.f32.xlu0 %v895
    %v898 = vpop.xlane.xlu0 %897
    %899 = vadd.xlane.f32.xlu0 %v896
    %v900 = vpop.xlane.xlu0 %899
    %vm901 = vcmask 7168
    %902 = vst.msk [vmem:[%s9] sm:$0xff] %vm901, %v898
    %903 = vst.msk [vmem:[%s9 + $0x8] sm:$0xff] %vm901, %v900
    %v904 = vld [vmem:[%s4] sm:$0x1]
    %905 = vmatprep.subr.mxu0 0.0
    %906 = vmatpush1.xpose.msra.mxu0 0.0
    %907 = vmatprep.subr.mxu0 0.0
    %908 = vmatpush1.xpose.msra.mxu0 0.0
    %909 = vmatprep.subr.mxu0 0.0
    %910 = vmatpush1.xpose.msra.mxu0 0.0
    %911 = vmatprep.subr.mxu0 0.0
    %912 = vmatpush1.xpose.msra.mxu0 0.0
    %913 = vmatprep.subr.mxu0 0.0
    %914 = vmatpush1.xpose.msra.mxu0 0.0
    %915 = vmatprep.subr.mxu0 0.0
    %916 = vmatpush1.xpose.msra.mxu0 0.0
    %917 = vmatprep.subr.mxu0 0.0
    %918 = vmatpush1.xpose.msra.mxu0 0.0
    %919 = vmatprep.subr.mxu0 0.0
    %920 = vmatpush1.xpose.msra.mxu0 0.0
    %921 = vmatprep.subr.mxu0 0.0
    %922 = vmatpush1.xpose.msra.mxu0 0.0
    %923 = vmatprep.subr.mxu0 0.0
    %924 = vmatpush1.xpose.msra.mxu0 0.0
    %925 = vmatprep.subr.mxu0 0.0
    %926 = vmatpush1.xpose.msra.mxu0 0.0
    %927 = vmatprep.subr.mxu0 0.0
    %928 = vmatpush1.xpose.msra.mxu0 0.0
    %929 = vmatprep.subr.mxu0 0.0
    %930 = vmatpush1.xpose.msra.mxu0 0.0
    %931 = vmatprep.subr.mxu0 0.0
    %932 = vmatpush1.xpose.msra.mxu0 0.0
    %933 = vmatprep.subr.mxu0 0.0
    %934 = vmatpush1.xpose.msra.mxu0 %v875
    %935 = vmatprep.subr.mxu0 0.0
    %936 = vmatpush1.xpose.msra.mxu0 %v872
    %937 = vmatprep.subr.mxu0 0.0
    %938 = vmatpush2.xpose.msra.mxu0 0.0
    %939 = vmatprep.subr.mxu0 0.0
    %940 = vmatpush2.xpose.msra.mxu0 0.0
    %941 = vmatprep.subr.mxu0 0.0
    %942 = vmatpush2.xpose.msra.mxu0 0.0
    %943 = vmatprep.subr.mxu0 0.0
    %944 = vmatpush2.xpose.msra.mxu0 0.0
    %945 = vmatprep.subr.mxu0 0.0
    %946 = vmatpush2.xpose.msra.mxu0 0.0
    %947 = vmatprep.subr.mxu0 0.0
    %948 = vmatpush2.xpose.msra.mxu0 0.0
    %949 = vmatprep.subr.mxu0 0.0
    %950 = vmatpush2.xpose.msra.mxu0 0.0
    %951 = vmatprep.subr.mxu0 0.0
    %952 = vmatpush2.xpose.msra.mxu0 0.0
    %953 = vmatprep.subr.mxu0 0.0
    %954 = vmatpush2.xpose.msra.mxu0 0.0
    %955 = vmatprep.subr.mxu0 0.0
    %956 = vmatpush2.xpose.msra.mxu0 0.0
    %957 = vmatprep.subr.mxu0 0.0
    %958 = vmatpush2.xpose.msra.mxu0 0.0
    %959 = vmatprep.subr.mxu0 0.0
    %960 = vmatpush2.xpose.msra.mxu0 0.0
    %961 = vmatprep.subr.mxu0 0.0
    %962 = vmatpush2.xpose.msra.mxu0 0.0
    %963 = vmatprep.subr.mxu0 0.0
    %964 = vmatpush2.xpose.msra.mxu0 0.0
    %965 = vmatprep.subr.mxu0 0.0
    %966 = vmatpush2.xpose.msra.mxu0 0.0
    %967 = vmatprep.subr.mxu0 0.0
    %968 = vmatpush2.xpose.msra.mxu0 0.0
    %969 = vmatprep.mubr.f32.mxu0 0.0
    %970 = vmatmul.mubr.f32.gmra.mxu0 %v904
    %v971 = vpop.f32.mrf.mxu0
    %v972 = vadd.f32 0.0, %v971
    %v973 = vpop.f32.mrf.mxu0
    %974 = vdwg.mxu0
    %vm975 = vcmask 122880
    %976 = vst.msk [vmem:[%s8] sm:$0x1] %vm975, %v972
    // Predicated region
    $region30: #{forward.5} parent=1 // pred_check
      _
    $region31: #{forward.5} parent=1 // pred_check_branch
      %978 = sbr.rel (0) target = $region33
    $region32: #{forward.5} parent=1 // pred_region
      _
    $region33: #{forward.5} parent=1 // pred_fallthru
      _
    // Predicated region
    $region34: #{forward.5} parent=1 // pred_check
      _
    $region35: #{forward.5} parent=1 // pred_check_branch
      %980 = sbr.rel (0) target = $region37
    $region36: #{forward.5} parent=1 // pred_region
      _
    $region37: #{forward.5} parent=1 // pred_fallthru
      _
    // Predicated region
    $region38: #{forward.5} parent=1 // pred_check
      _
    $region39: #{forward.5} parent=1 // pred_check_branch
      %982 = sbr.rel (0) target = $region41
    $region40: #{forward.5} parent=1 // pred_region
      _
    $region41: #{forward.5} parent=1 // pred_fallthru
      _
    // Predicated region
    $region42: #{forward.5} parent=1 // pred_check
      _
    $region43: #{forward.5} parent=1 // pred_check_branch
      %984 = sbr.rel (0) target = $region45
    $region44: #{forward.5} parent=1 // pred_region
      _
    $region45: #{forward.5} parent=1 // pred_fallthru
      _
    // Predicated region
    $region46: #{forward.5} parent=1 // pred_check
      _
    $region47: #{forward.5} parent=1 // pred_check_branch
      %986 = sbr.rel (0) target = $region49
    $region48: #{forward.5} parent=1 // pred_region
      _
    $region49: #{forward.5} parent=1 // pred_fallthru
      _
    // Predicated region
    $region50: #{forward.5} parent=1 // pred_check
      _
    $region51: #{forward.5} parent=1 // pred_check_branch
      %988 = sbr.rel (0) target = $region53
    $region52: #{forward.5} parent=1 // pred_region
      _
    $region53: #{forward.5} parent=1 // pred_fallthru
      _
    // Predicated region
    $region54: #{forward.5} parent=1 // pred_check
      _
    $region55: #{forward.5} parent=1 // pred_check_branch
      %990 = sbr.rel (0) target = $region57
    $region56: #{forward.5} parent=1 // pred_region
      _
    $region57: #{forward.5} parent=1 // pred_fallthru
      _
    // Predicated region
    $region58: #{forward.5} parent=1 // pred_check
      _
    $region59: #{forward.5} parent=1 // pred_check_branch
      %992 = sbr.rel (0) target = $region61
    $region60: #{forward.5} parent=1 // pred_region
      _
    $region61: #{forward.5} parent=1 // pred_fallthru
      _
    %993 = vsyncpa [#allocation3], 1

// kernel: forward.7
$region0: #{forward.7}
  #allocation0 [shape = 'u32[]', space=smem, size = 0x4, offset = 0x4, fixed_abs, tag = 'smem constant byte address 0x4 - core index']
  #allocation1 [shape = 'u32[144,128]{1,0:T(1,128)}', space=vmem, size = 0x12000, scoped, tag = 'internal scratch']
  #allocation2 [shape = 'f32[7,16,128]{2,1,0:T(8,128)}', space=vmem, size = 0xe000, scoped, tag = 'scratch operand']
  #allocation3 [shape = 'f32[7,16,128]{2,1,0:T(8,128)}', space=vmem, size = 0xe000, scoped, tag = 'scratch operand']
  #allocation4 [shape = 'f32[7,16,128]{2,1,0:T(8,128)}', space=vmem, size = 0xe000, scoped, tag = 'scratch operand']
  %s0 = inlined_call_operand.vmem [shape: f32[2,7,128], index: 0, kind: input, shape index: {}]
  %s1 = inlined_call_operand.vmem [shape: f32[128,256], index: 1, kind: input, shape index: {}]
  %s2 = inlined_call_operand.vmem [shape: f32[4,128], index: 2, kind: input, shape index: {}]
  %s3 = inlined_call_operand.vmem [shape: f32[1,128], index: 3, kind: input, shape index: {}]
  %s4 = inlined_call_operand.vmem [shape: f32[128,128], index: 4, kind: input, shape index: {}]
  %s5 = inlined_call_operand.vmem [shape: f32[1,128], index: 5, kind: input, shape index: {}]
  %s6 = inlined_call_operand.vmem [shape: f32[128,16], index: 6, kind: input, shape index: {}]
  %s7 = inlined_call_operand.vmem [shape: f32[128,16], index: 7, kind: input, shape index: {}]
  %s8 = inlined_call_operand.vmem [shape: f32[16,128], index: 8, kind: input, shape index: {}]
  %s9 = inlined_call_operand.vmem [shape: f32[1,128], index: 9, kind: input, shape index: {}]
  %s10 = inlined_call_operand.vmem [shape: f32[128,128], index: 10, kind: input, shape index: {}]
  %s11 = inlined_call_operand.vmem [shape: f32[1,128], index: 11, kind: input, shape index: {}]
  %s12 = inlined_call_operand.vmem [shape: f32[2,7,128], index: 12, kind: output, shape index: {}]
  %s13 = sld [smem:[#allocation0]]
  $region81: #{forward.7} parent=0
    _
  %s15 = ssub.s32 1, %s13
  %s16 = scalar_select 0, %s15, %s13
  loop: start=0, step=1, limit=4
  $region2: #{forward.7} parent=0 // loop_pre_header
    _
  $region3: #{forward.7} parent=0 // loop_header
    %s18 = sphi 0, %s22
    %p19 = scmp.ge.s32.totalorder %s18, 4
    %s28 = sphi 0, %s30
    %s31 = sphi 0, %s28
    %s32 = sphi 0, %s31
    %s48 = sphi 0, %s32
    %s52 = sphi 0, %s52
    %s54 = sphi 0, %s52
    %s55 = sphi 0, %s54
    %s69 = sphi 0, %s55
    %s73 = sphi 0, %s73
    %s75 = sphi 0, %s73
    %s76 = sphi 0, %s75
    %s90 = sphi 0, %s76
    %s94 = sphi 0, %s94
    %s96 = sphi 0, %s94
    %s97 = sphi 0, %s96
    %s111 = sphi 0, %s97
    %s115 = sphi 0, %s115
    %s117 = sphi 0, %s115
    %s118 = sphi 0, %s117
    %s132 = sphi 0, %s118
    %s136 = sphi 0, %s136
    %s138 = sphi 0, %s136
    %s139 = sphi 0, %s138
    %s153 = sphi 0, %s139
    %s157 = sphi 0, %s157
    %s159 = sphi 0, %s157
    %s160 = sphi 0, %s159
    %s174 = sphi 0, %s160
    %s178 = sphi 0, %s178
    %s180 = sphi 0, %s178
    %s181 = sphi 0, %s180
    %s195 = sphi 0, %s181
    %s199 = sphi 0, %s199
    %s201 = sphi 0, %s199
    %s202 = sphi 0, %s201
    %s216 = sphi 0, %s202
    %s220 = sphi 0, %s220
    %s222 = sphi 0, %s220
    %s223 = sphi 0, %s222
    %s237 = sphi 0, %s223
    %s241 = sphi 0, %s241
    %s243 = sphi 0, %s241
    %s244 = sphi 0, %s243
    %s258 = sphi 0, %s244
    %s262 = sphi 0, %s262
    %s264 = sphi 0, %s262
    %s265 = sphi 0, %s264
    %s279 = sphi 0, %s265
    %s285 = sphi 0, %s287
    %s288 = sphi 0, %s285
    %s289 = sphi 0, %s288
    %s305 = sphi 0, %s289
  $region4: #{forward.7} parent=0 // loop_header_branch
    %21 = sbr.rel (%p19) target = $region8
  $region5: #{forward.7} parent=0 // loop_body
    %s23 = ssub.s32 %s18, 1
    %s24 = ssub.s32 %s18, 2
    %s25 = sadd.s32 %s18, 1
    %s26 = ssub.s32 %s18, %s25
    %p27 = scmp.eq.s32.totalorder %s26, 0
    %s29 = sadd.s32 %s28, 1
    %s30 = scalar_select %p27, %s28, %s29
    %p33 = pneg %p27
    %p34 = scmp.eq.s32.totalorder %s18, 1
    %p35 = por %p33, %p34
    %p36 = scmp.ne.s32.totalorder %s28, %s31
    %p37 = scmp.eq.s32.totalorder %s18, 0
    %p38 = por %p36, %p37
    %p39 = scmp.ne.s32.totalorder %s28, %s31
    %p40 = scmp.eq.s32.totalorder %s23, 1
    %p41 = por %p39, %p40
    %p42 = scmp.ne.s32.totalorder %s31, %s32
    %p43 = scmp.eq.s32.totalorder %s23, 0
    %p44 = por %p42, %p43
    %p45 = scmp.ne.s32.totalorder %s31, %s32
    %p46 = scmp.eq.s32.totalorder %s24, 1
    %p47 = por %p45, %p46
    %p49 = scmp.ne.s32.totalorder %s32, %s48
    %p50 = scmp.eq.s32.totalorder %s24, 0
    %p51 = por %p49, %p50
    %s53 = sadd.s32 %s52, 1
    %p56 = scmp.eq.s32.totalorder %s18, 1
    %p57 = scmp.ne.s32.totalorder %s52, %s54
    %p58 = scmp.eq.s32.totalorder %s18, 0
    %p59 = por %p57, %p58
    %p60 = scmp.ne.s32.totalorder %s52, %s54
    %p61 = scmp.eq.s32.totalorder %s23, 1
    %p62 = por %p60, %p61
    %p63 = scmp.ne.s32.totalorder %s54, %s55
    %p64 = scmp.eq.s32.totalorder %s23, 0
    %p65 = por %p63, %p64
    %p66 = scmp.ne.s32.totalorder %s54, %s55
    %p67 = scmp.eq.s32.totalorder %s24, 1
    %p68 = por %p66, %p67
    %p70 = scmp.ne.s32.totalorder %s55, %s69
    %p71 = scmp.eq.s32.totalorder %s24, 0
    %p72 = por %p70, %p71
    %s74 = sadd.s32 %s73, 1
    %p77 = scmp.eq.s32.totalorder %s18, 1
    %p78 = scmp.ne.s32.totalorder %s73, %s75
    %p79 = scmp.eq.s32.totalorder %s18, 0
    %p80 = por %p78, %p79
    %p81 = scmp.ne.s32.totalorder %s73, %s75
    %p82 = scmp.eq.s32.totalorder %s23, 1
    %p83 = por %p81, %p82
    %p84 = scmp.ne.s32.totalorder %s75, %s76
    %p85 = scmp.eq.s32.totalorder %s23, 0
    %p86 = por %p84, %p85
    %p87 = scmp.ne.s32.totalorder %s75, %s76
    %p88 = scmp.eq.s32.totalorder %s24, 1
    %p89 = por %p87, %p88
    %p91 = scmp.ne.s32.totalorder %s76, %s90
    %p92 = scmp.eq.s32.totalorder %s24, 0
    %p93 = por %p91, %p92
    %s95 = sadd.s32 %s94, 1
    %p98 = scmp.eq.s32.totalorder %s18, 1
    %p99 = scmp.ne.s32.totalorder %s94, %s96
    %p100 = scmp.eq.s32.totalorder %s18, 0
    %p101 = por %p99, %p100
    %p102 = scmp.ne.s32.totalorder %s94, %s96
    %p103 = scmp.eq.s32.totalorder %s23, 1
    %p104 = por %p102, %p103
    %p105 = scmp.ne.s32.totalorder %s96, %s97
    %p106 = scmp.eq.s32.totalorder %s23, 0
    %p107 = por %p105, %p106
    %p108 = scmp.ne.s32.totalorder %s96, %s97
    %p109 = scmp.eq.s32.totalorder %s24, 1
    %p110 = por %p108, %p109
    %p112 = scmp.ne.s32.totalorder %s97, %s111
    %p113 = scmp.eq.s32.totalorder %s24, 0
    %p114 = por %p112, %p113
    %s116 = sadd.s32 %s115, 1
    %p119 = scmp.eq.s32.totalorder %s18, 1
    %p120 = scmp.ne.s32.totalorder %s115, %s117
    %p121 = scmp.eq.s32.totalorder %s18, 0
    %p122 = por %p120, %p121
    %p123 = scmp.ne.s32.totalorder %s115, %s117
    %p124 = scmp.eq.s32.totalorder %s23, 1
    %p125 = por %p123, %p124
    %p126 = scmp.ne.s32.totalorder %s117, %s118
    %p127 = scmp.eq.s32.totalorder %s23, 0
    %p128 = por %p126, %p127
    %p129 = scmp.ne.s32.totalorder %s117, %s118
    %p130 = scmp.eq.s32.totalorder %s24, 1
    %p131 = por %p129, %p130
    %p133 = scmp.ne.s32.totalorder %s118, %s132
    %p134 = scmp.eq.s32.totalorder %s24, 0
    %p135 = por %p133, %p134
    %s137 = sadd.s32 %s136, 1
    %p140 = scmp.eq.s32.totalorder %s18, 1
    %p141 = scmp.ne.s32.totalorder %s136, %s138
    %p142 = scmp.eq.s32.totalorder %s18, 0
    %p143 = por %p141, %p142
    %p144 = scmp.ne.s32.totalorder %s136, %s138
    %p145 = scmp.eq.s32.totalorder %s23, 1
    %p146 = por %p144, %p145
    %p147 = scmp.ne.s32.totalorder %s138, %s139
    %p148 = scmp.eq.s32.totalorder %s23, 0
    %p149 = por %p147, %p148
    %p150 = scmp.ne.s32.totalorder %s138, %s139
    %p151 = scmp.eq.s32.totalorder %s24, 1
    %p152 = por %p150, %p151
    %p154 = scmp.ne.s32.totalorder %s139, %s153
    %p155 = scmp.eq.s32.totalorder %s24, 0
    %p156 = por %p154, %p155
    %s158 = sadd.s32 %s157, 1
    %p161 = scmp.eq.s32.totalorder %s18, 1
    %p162 = scmp.ne.s32.totalorder %s157, %s159
    %p163 = scmp.eq.s32.totalorder %s18, 0
    %p164 = por %p162, %p163
    %p165 = scmp.ne.s32.totalorder %s157, %s159
    %p166 = scmp.eq.s32.totalorder %s23, 1
    %p167 = por %p165, %p166
    %p168 = scmp.ne.s32.totalorder %s159, %s160
    %p169 = scmp.eq.s32.totalorder %s23, 0
    %p170 = por %p168, %p169
    %p171 = scmp.ne.s32.totalorder %s159, %s160
    %p172 = scmp.eq.s32.totalorder %s24, 1
    %p173 = por %p171, %p172
    %p175 = scmp.ne.s32.totalorder %s160, %s174
    %p176 = scmp.eq.s32.totalorder %s24, 0
    %p177 = por %p175, %p176
    %s179 = sadd.s32 %s178, 1
    %p182 = scmp.eq.s32.totalorder %s18, 1
    %p183 = scmp.ne.s32.totalorder %s178, %s180
    %p184 = scmp.eq.s32.totalorder %s18, 0
    %p185 = por %p183, %p184
    %p186 = scmp.ne.s32.totalorder %s178, %s180
    %p187 = scmp.eq.s32.totalorder %s23, 1
    %p188 = por %p186, %p187
    %p189 = scmp.ne.s32.totalorder %s180, %s181
    %p190 = scmp.eq.s32.totalorder %s23, 0
    %p191 = por %p189, %p190
    %p192 = scmp.ne.s32.totalorder %s180, %s181
    %p193 = scmp.eq.s32.totalorder %s24, 1
    %p194 = por %p192, %p193
    %p196 = scmp.ne.s32.totalorder %s181, %s195
    %p197 = scmp.eq.s32.totalorder %s24, 0
    %p198 = por %p196, %p197
    %s200 = sadd.s32 %s199, 1
    %p203 = scmp.eq.s32.totalorder %s18, 1
    %p204 = scmp.ne.s32.totalorder %s199, %s201
    %p205 = scmp.eq.s32.totalorder %s18, 0
    %p206 = por %p204, %p205
    %p207 = scmp.ne.s32.totalorder %s199, %s201
    %p208 = scmp.eq.s32.totalorder %s23, 1
    %p209 = por %p207, %p208
    %p210 = scmp.ne.s32.totalorder %s201, %s202
    %p211 = scmp.eq.s32.totalorder %s23, 0
    %p212 = por %p210, %p211
    %p213 = scmp.ne.s32.totalorder %s201, %s202
    %p214 = scmp.eq.s32.totalorder %s24, 1
    %p215 = por %p213, %p214
    %p217 = scmp.ne.s32.totalorder %s202, %s216
    %p218 = scmp.eq.s32.totalorder %s24, 0
    %p219 = por %p217, %p218
    %s221 = sadd.s32 %s220, 1
    %p224 = scmp.eq.s32.totalorder %s18, 1
    %p225 = scmp.ne.s32.totalorder %s220, %s222
    %p226 = scmp.eq.s32.totalorder %s18, 0
    %p227 = por %p225, %p226
    %p228 = scmp.ne.s32.totalorder %s220, %s222
    %p229 = scmp.eq.s32.totalorder %s23, 1
    %p230 = por %p228, %p229
    %p231 = scmp.ne.s32.totalorder %s222, %s223
    %p232 = scmp.eq.s32.totalorder %s23, 0
    %p233 = por %p231, %p232
    %p234 = scmp.ne.s32.totalorder %s222, %s223
    %p235 = scmp.eq.s32.totalorder %s24, 1
    %p236 = por %p234, %p235
    %p238 = scmp.ne.s32.totalorder %s223, %s237
    %p239 = scmp.eq.s32.totalorder %s24, 0
    %p240 = por %p238, %p239
    %s242 = sadd.s32 %s241, 1
    %p245 = scmp.eq.s32.totalorder %s18, 1
    %p246 = scmp.ne.s32.totalorder %s241, %s243
    %p247 = scmp.eq.s32.totalorder %s18, 0
    %p248 = por %p246, %p247
    %p249 = scmp.ne.s32.totalorder %s241, %s243
    %p250 = scmp.eq.s32.totalorder %s23, 1
    %p251 = por %p249, %p250
    %p252 = scmp.ne.s32.totalorder %s243, %s244
    %p253 = scmp.eq.s32.totalorder %s23, 0
    %p254 = por %p252, %p253
    %p255 = scmp.ne.s32.totalorder %s243, %s244
    %p256 = scmp.eq.s32.totalorder %s24, 1
    %p257 = por %p255, %p256
    %p259 = scmp.ne.s32.totalorder %s244, %s258
    %p260 = scmp.eq.s32.totalorder %s24, 0
    %p261 = por %p259, %p260
    %s263 = sadd.s32 %s262, 1
    %p266 = scmp.eq.s32.totalorder %s18, 1
    %p267 = scmp.ne.s32.totalorder %s262, %s264
    %p268 = scmp.eq.s32.totalorder %s18, 0
    %p269 = por %p267, %p268
    %p270 = scmp.ne.s32.totalorder %s262, %s264
    %p271 = scmp.eq.s32.totalorder %s23, 1
    %p272 = por %p270, %p271
    %p273 = scmp.ne.s32.totalorder %s264, %s265
    %p274 = scmp.eq.s32.totalorder %s23, 0
    %p275 = por %p273, %p274
    %p276 = scmp.ne.s32.totalorder %s264, %s265
    %p277 = scmp.eq.s32.totalorder %s24, 1
    %p278 = por %p276, %p277
    %p280 = scmp.ne.s32.totalorder %s265, %s279
    %p281 = scmp.eq.s32.totalorder %s24, 0
    %p282 = por %p280, %p281
    %s283 = ssub.s32 %s18, %s25
    %p284 = scmp.eq.s32.totalorder %s283, 0
    %s286 = sadd.s32 %s285, 1
    %s287 = scalar_select %p284, %s285, %s286
    %p290 = pneg %p284
    %p291 = scmp.eq.s32.totalorder %s18, 1
    %p292 = por %p290, %p291
    %p293 = scmp.ne.s32.totalorder %s285, %s288
    %p294 = scmp.eq.s32.totalorder %s18, 0
    %p295 = por %p293, %p294
    %p296 = scmp.ne.s32.totalorder %s285, %s288
    %p297 = scmp.eq.s32.totalorder %s23, 1
    %p298 = por %p296, %p297
    %p299 = scmp.ne.s32.totalorder %s288, %s289
    %p300 = scmp.eq.s32.totalorder %s23, 0
    %p301 = por %p299, %p300
    %p302 = scmp.ne.s32.totalorder %s288, %s289
    %p303 = scmp.eq.s32.totalorder %s24, 1
    %p304 = por %p302, %p303
    %p306 = scmp.ne.s32.totalorder %s289, %s305
    %p307 = scmp.eq.s32.totalorder %s24, 0
    %p308 = por %p306, %p307
    %p309 = scmp.le.s32.totalorder 1, %s18
    %p310 = scmp.lt.s32.totalorder %s18, 3
    %p311 = pnand %p309, %p310
    %p312 = pneg %p311
    // Predicated region
    $region9: #{forward.7} parent=5 // pred_check
      _
    $region10: #{forward.7} parent=5 // pred_check_branch
      %314 = sbr.rel (%p311) target = $region12
    $region11: #{forward.7} parent=5 // pred_region
      %s315 = ssub.s32 %s18, 1
      // Predicated region
      $region13: #{forward.7} parent=11 // pred_check
        %p316 = pneg %p65
      $region14: #{forward.7} parent=11 // pred_check_branch
        %318 = sbr.rel (%p316) target = $region16
      $region15: #{forward.7} parent=11 // pred_region
        _
      $region16: #{forward.7} parent=11 // pred_fallthru
        _
      // Predicated region
      $region17: #{forward.7} parent=11 // pred_check
        %p319 = pneg %p86
      $region18: #{forward.7} parent=11 // pred_check_branch
        %321 = sbr.rel (%p319) target = $region20
      $region19: #{forward.7} parent=11 // pred_region
        _
      $region20: #{forward.7} parent=11 // pred_fallthru
        _
      // Predicated region
      $region21: #{forward.7} parent=11 // pred_check
        %p322 = pneg %p107
      $region22: #{forward.7} parent=11 // pred_check_branch
        %324 = sbr.rel (%p322) target = $region24
      $region23: #{forward.7} parent=11 // pred_region
        _
      $region24: #{forward.7} parent=11 // pred_fallthru
        _
      // Predicated region
      $region25: #{forward.7} parent=11 // pred_check
        %p325 = pneg %p128
      $region26: #{forward.7} parent=11 // pred_check_branch
        %327 = sbr.rel (%p325) target = $region28
      $region27: #{forward.7} parent=11 // pred_region
        _
      $region28: #{forward.7} parent=11 // pred_fallthru
        _
      // Predicated region
      $region29: #{forward.7} parent=11 // pred_check
        %p328 = pneg %p149
      $region30: #{forward.7} parent=11 // pred_check_branch
        %330 = sbr.rel (%p328) target = $region32
      $region31: #{forward.7} parent=11 // pred_region
        _
      $region32: #{forward.7} parent=11 // pred_fallthru
        _
      // Predicated region
      $region33: #{forward.7} parent=11 // pred_check
        %p331 = pneg %p170
      $region34: #{forward.7} parent=11 // pred_check_branch
        %333 = sbr.rel (%p331) target = $region36
      $region35: #{forward.7} parent=11 // pred_region
        _
      $region36: #{forward.7} parent=11 // pred_fallthru
        _
      // Predicated region
      $region37: #{forward.7} parent=11 // pred_check
        %p334 = pneg %p191
      $region38: #{forward.7} parent=11 // pred_check_branch
        %336 = sbr.rel (%p334) target = $region40
      $region39: #{forward.7} parent=11 // pred_region
        _
      $region40: #{forward.7} parent=11 // pred_fallthru
        _
      // Predicated region
      $region41: #{forward.7} parent=11 // pred_check
        %p337 = pneg %p212
      $region42: #{forward.7} parent=11 // pred_check_branch
        %339 = sbr.rel (%p337) target = $region44
      $region43: #{forward.7} parent=11 // pred_region
        _
      $region44: #{forward.7} parent=11 // pred_fallthru
        _
      // Predicated region
      $region45: #{forward.7} parent=11 // pred_check
        %p340 = pneg %p233
      $region46: #{forward.7} parent=11 // pred_check_branch
        %342 = sbr.rel (%p340) target = $region48
      $region47: #{forward.7} parent=11 // pred_region
        _
      $region48: #{forward.7} parent=11 // pred_fallthru
        _
      // Predicated region
      $region49: #{forward.7} parent=11 // pred_check
        %p343 = pneg %p254
      $region50: #{forward.7} parent=11 // pred_check_branch
        %345 = sbr.rel (%p343) target = $region52
      $region51: #{forward.7} parent=11 // pred_region
        _
      $region52: #{forward.7} parent=11 // pred_fallthru
        _
      // Predicated region
      $region53: #{forward.7} parent=11 // pred_check
        %p346 = pneg %p275
      $region54: #{forward.7} parent=11 // pred_check_branch
        %348 = sbr.rel (%p346) target = $region56
      $region55: #{forward.7} parent=11 // pred_region
        _
      $region56: #{forward.7} parent=11 // pred_fallthru
        _
    $region12: #{forward.7} parent=5 // pred_fallthru
      _
    %p349 = scmp.lt.s32.totalorder %s18, 2
    // Predicated region
    $region57: #{forward.7} parent=5 // pred_check
      %p350 = pneg %p349
    $region58: #{forward.7} parent=5 // pred_check_branch
      %352 = sbr.rel (%p350) target = $region60
    $region59: #{forward.7} parent=5 // pred_region
      // Predicated region
      $region61: #{forward.7} parent=59 // pred_check
        %p353 = pneg %p38
      $region62: #{forward.7} parent=59 // pred_check_branch
        %355 = sbr.rel (%p353) target = $region64
      $region63: #{forward.7} parent=59 // pred_region
        %p356 = scmp.lt.s32.totalorder %s18, 1
        %s357 = scalar_select %p356, %s18, 1
        %s358 = smul.addr %s357, 8
        %s359 = scalar_lea.vmem %s0, %s358
      $region64: #{forward.7} parent=59 // pred_fallthru
        _
    $region60: #{forward.7} parent=5 // pred_fallthru
      _
    %p360 = scmp.le.s32.totalorder 1, %s18
    %p361 = scmp.lt.s32.totalorder %s18, 3
    %p362 = pnand %p360, %p361
    %p363 = pneg %p362
    // Predicated region
    $region65: #{forward.7} parent=5 // pred_check
      _
    $region66: #{forward.7} parent=5 // pred_check_branch
      %365 = sbr.rel (%p362) target = $region68
    $region67: #{forward.7} parent=5 // pred_region
      %s366 = ssub.s32 %s18, 1
      %p367 = scmp.lt.s32.totalorder %s23, 1
      %s368 = scalar_select %p367, %s23, 1
      %s369 = smul.addr %s368, 8
      %s370 = scalar_lea.vmem %s0, %s369
      %p371 = pneg %p44
      %p372 = pneg %p41
      %p373 = pneg %p65
      %p374 = pneg %p62
      %p375 = pneg %p86
      %p376 = pneg %p83
      %p377 = pneg %p107
      %p378 = pneg %p104
      %p379 = pneg %p128
      %p380 = pneg %p125
      %p381 = pneg %p149
      %p382 = pneg %p146
      %p383 = pneg %p170
      %p384 = pneg %p167
      %p385 = pneg %p191
      %p386 = pneg %p188
      %p387 = pneg %p212
      %p388 = pneg %p209
      %p389 = pneg %p233
      %p390 = pneg %p230
      %p391 = pneg %p254
      %p392 = pneg %p251
      %p393 = pneg %p275
      %p394 = pneg %p272
      %p395 = pneg %p301
      %p396 = pneg %p298
      %p397 = scmp.lt.s32.totalorder %s23, 1
      %s398 = scalar_select %p397, %s23, 1
      %s399 = smul.addr %s398, 8
      %s400 = scalar_lea.vmem %s12, %s399
      %p401 = scmp.lt.s32.totalorder %s23, 1
      %s402 = scalar_select %p401, %s23, 1
      %s403 = smul.addr %s402, 8
      %s404 = scalar_lea.vmem %s0, %s403
      %p405 = scmp.lt.s32.totalorder %s23, 1
      %s406 = scalar_select %p405, %s23, 1
      %s407 = smul.addr %s406, 8
      %s408 = scalar_lea.vmem %s12, %s407
      %v409 = vld [vmem:[%s404] sm:$0x7f]
      %v410 = vld [vmem:[%s1] sm:$0xff]
      %v411 = vld [vmem:[%s1 + $0x8] sm:$0xff]
      %v412 = vld [vmem:[%s1 + $0x10] sm:$0xff]
      %v413 = vld [vmem:[%s1 + $0x18] sm:$0xff]
      %v414 = vld [vmem:[%s1 + $0x20] sm:$0xff]
      %v415 = vld [vmem:[%s1 + $0x28] sm:$0xff]
      %v416 = vld [vmem:[%s1 + $0x30] sm:$0xff]
      %v417 = vld [vmem:[%s1 + $0x38] sm:$0xff]
      %v418 = vld [vmem:[%s1 + $0x40] sm:$0xff]
      %v419 = vld [vmem:[%s1 + $0x48] sm:$0xff]
      %v420 = vld [vmem:[%s1 + $0x50] sm:$0xff]
      %v421 = vld [vmem:[%s1 + $0x58] sm:$0xff]
      %v422 = vld [vmem:[%s1 + $0x60] sm:$0xff]
      %v423 = vld [vmem:[%s1 + $0x68] sm:$0xff]
      %v424 = vld [vmem:[%s1 + $0x70] sm:$0xff]
      %v425 = vld [vmem:[%s1 + $0x78] sm:$0xff]
      %v426 = vld [vmem:[%s1 + $0x80] sm:$0xff]
      %v427 = vld [vmem:[%s1 + $0x88] sm:$0xff]
      %v428 = vld [vmem:[%s1 + $0x90] sm:$0xff]
      %v429 = vld [vmem:[%s1 + $0x98] sm:$0xff]
      %v430 = vld [vmem:[%s1 + $0xa0] sm:$0xff]
      %v431 = vld [vmem:[%s1 + $0xa8] sm:$0xff]
      %v432 = vld [vmem:[%s1 + $0xb0] sm:$0xff]
      %v433 = vld [vmem:[%s1 + $0xb8] sm:$0xff]
      %v434 = vld [vmem:[%s1 + $0xc0] sm:$0xff]
      %v435 = vld [vmem:[%s1 + $0xc8] sm:$0xff]
      %v436 = vld [vmem:[%s1 + $0xd0] sm:$0xff]
      %v437 = vld [vmem:[%s1 + $0xd8] sm:$0xff]
      %v438 = vld [vmem:[%s1 + $0xe0] sm:$0xff]
      %v439 = vld [vmem:[%s1 + $0xe8] sm:$0xff]
      %v440 = vld [vmem:[%s1 + $0xf0] sm:$0xff]
      %v441 = vld [vmem:[%s1 + $0xf8] sm:$0xff]
      %442 = vmatprep.subr.mxu0 %v441
      %443 = vmatpush1.msra.mxu0 %v440
      %444 = vmatprep.subr.mxu0 %v439
      %445 = vmatpush1.msra.mxu0 %v438
      %446 = vmatprep.subr.mxu0 %v437
      %447 = vmatpush1.msra.mxu0 %v436
      %448 = vmatprep.subr.mxu0 %v435
      %449 = vmatpush1.msra.mxu0 %v434
      %450 = vmatprep.subr.mxu0 %v433
      %451 = vmatpush1.msra.mxu0 %v432
      %452 = vmatprep.subr.mxu0 %v431
      %453 = vmatpush1.msra.mxu0 %v430
      %454 = vmatprep.subr.mxu0 %v429
      %455 = vmatpush1.msra.mxu0 %v428
      %456 = vmatprep.subr.mxu0 %v427
      %457 = vmatpush1.msra.mxu0 %v426
      %458 = vmatprep.subr.mxu0 %v425
      %459 = vmatpush1.msra.mxu0 %v424
      %460 = vmatprep.subr.mxu0 %v423
      %461 = vmatpush1.msra.mxu0 %v422
      %462 = vmatprep.subr.mxu0 %v421
      %463 = vmatpush1.msra.mxu0 %v420
      %464 = vmatprep.subr.mxu0 %v419
      %465 = vmatpush1.msra.mxu0 %v418
      %466 = vmatprep.subr.mxu0 %v417
      %467 = vmatpush1.msra.mxu0 %v416
      %468 = vmatprep.subr.mxu0 %v415
      %469 = vmatpush1.msra.mxu0 %v414
      %470 = vmatprep.subr.mxu0 %v413
      %471 = vmatpush1.msra.mxu0 %v412
      %472 = vmatprep.subr.mxu0 %v411
      %473 = vmatpush1.msra.mxu0 %v410
      %474 = vmatprep.subr.mxu0 0.0
      %475 = vmatpush2.msra.mxu0 0.0
      %476 = vmatprep.subr.mxu0 0.0
      %477 = vmatpush2.msra.mxu0 0.0
      %478 = vmatprep.subr.mxu0 0.0
      %479 = vmatpush2.msra.mxu0 0.0
      %480 = vmatprep.subr.mxu0 0.0
      %481 = vmatpush2.msra.mxu0 0.0
      %482 = vmatprep.subr.mxu0 0.0
      %483 = vmatpush2.msra.mxu0 0.0
      %484 = vmatprep.subr.mxu0 0.0
      %485 = vmatpush2.msra.mxu0 0.0
      %486 = vmatprep.subr.mxu0 0.0
      %487 = vmatpush2.msra.mxu0 0.0
      %488 = vmatprep.subr.mxu0 0.0
      %489 = vmatpush2.msra.mxu0 0.0
      %490 = vmatprep.subr.mxu0 0.0
      %491 = vmatpush2.msra.mxu0 0.0
      %492 = vmatprep.subr.mxu0 0.0
      %493 = vmatpush2.msra.mxu0 0.0
      %494 = vmatprep.subr.mxu0 0.0
      %495 = vmatpush2.msra.mxu0 0.0
      %496 = vmatprep.subr.mxu0 0.0
      %497 = vmatpush2.msra.mxu0 0.0
      %498 = vmatprep.subr.mxu0 0.0
      %499 = vmatpush2.msra.mxu0 0.0
      %500 = vmatprep.subr.mxu0 0.0
      %501 = vmatpush2.msra.mxu0 0.0
      %502 = vmatprep.subr.mxu0 0.0
      %503 = vmatpush2.msra.mxu0 0.0
      %504 = vmatprep.subr.mxu0 0.0
      %505 = vmatpush2.msra.mxu0 0.0
      %506 = vmatprep.mubr.f32.mxu0 0.0
      %507 = vmatmul.mubr.f32.gmra.mxu0 %v409
      %v508 = vpop.f32.mrf.mxu0
      %v509 = vadd.f32 0.0, %v508
      %v510 = vpop.f32.mrf.mxu0
      %v511 = vadd.f32 0.0, %v510
      %512 = vdwg.mxu0
      %v513 = vld [vmem:[%s2] sm:$0xf]
      %v514 = vld [vmem:[%s3] sm:$0x1]
      %v516 = vlaneseq
      %v517 = vshrl.u32 %v516, 7
      %v518 = vsub.s32 0, %v517
      %v519 = vrot.slane %v514, %v518
      %v521 = vadd.f32 %v519, 0.0
      %v523 = vrot.slane %v509, 5
      %vm525 = vcmask 1042432
      %v526 = vsel %vm525, 0.0, %v523
      %v527 = vlaneseq
      %v528 = vshrl.u32 %v527, 7
      %v529 = vsub.s32 0, %v528
      %v530 = vrot.slane %v513, %v529
      %v531 = vmul.f32 %v530, %v526
      %v532 = vadd.f32 %v521, %v531
      %v533 = vrot.slane %v509, 6
      %vm535 = vcmask 1041408
      %v536 = vsel %vm535, 0.0, %v533
      %v537 = vlaneseq
      %v538 = vshrl.u32 %v537, 7
      %v539 = vsub.s32 1, %v538
      %v540 = vrot.slane %v513, %v539
      %v541 = vmul.f32 %v540, %v536
      %v542 = vadd.f32 %v532, %v541
      %v543 = vrot.slane %v509, 7
      %vm545 = vcmask 1040384
      %v546 = vsel %vm545, 0.0, %v543
      %v547 = vlaneseq
      %v548 = vshrl.u32 %v547, 7
      %v549 = vsub.s32 2, %v548
      %v550 = vrot.slane %v513, %v549
      %v551 = vmul.f32 %v550, %v546
      %v552 = vadd.f32 %v542, %v551
      %v553 = vlaneseq
      %v554 = vshrl.u32 %v553, 7
      %v555 = vsub.s32 3, %v554
      %v556 = vrot.slane %v513, %v555
      %v557 = vmul.f32 %v556, %v509
      %v558 = vadd.f32 %v552, %v557
      %v559 = vsub.f32 0.0, %v558
      %v560 = vmul.f32 %v559, 1.442695
      %v561 = vpow.pop %v560
      %v562 = vadd.f32 %v561, 1.0
      %v563 = vrcp.pop %v562
      %v564 = vmul.f32 1.0, %v563
      %v565 = vmul.f32 %v558, %v564
      %v566 = vld [vmem:[%s4] sm:$0xff]
      %v567 = vld [vmem:[%s4 + $0x8] sm:$0xff]
      %v568 = vld [vmem:[%s4 + $0x10] sm:$0xff]
      %v569 = vld [vmem:[%s4 + $0x18] sm:$0xff]
      %v570 = vld [vmem:[%s4 + $0x20] sm:$0xff]
      %v571 = vld [vmem:[%s4 + $0x28] sm:$0xff]
      %v572 = vld [vmem:[%s4 + $0x30] sm:$0xff]
      %v573 = vld [vmem:[%s4 + $0x38] sm:$0xff]
      %v574 = vld [vmem:[%s4 + $0x40] sm:$0xff]
      %v575 = vld [vmem:[%s4 + $0x48] sm:$0xff]
      %v576 = vld [vmem:[%s4 + $0x50] sm:$0xff]
      %v577 = vld [vmem:[%s4 + $0x58] sm:$0xff]
      %v578 = vld [vmem:[%s4 + $0x60] sm:$0xff]
      %v579 = vld [vmem:[%s4 + $0x68] sm:$0xff]
      %v580 = vld [vmem:[%s4 + $0x70] sm:$0xff]
      %v581 = vld [vmem:[%s4 + $0x78] sm:$0xff]
      %v582 = vld [vmem:[%s5] sm:$0x1]
      %v584 = vlaneseq
      %v585 = vshrl.u32 %v584, 7
      %v586 = vsub.s32 0, %v585
      %v587 = vrot.slane %v582, %v586
      %589 = vmatprep.subr.mxu0 0.0
      %590 = vmatpush1.msra.mxu0 %v581
      %591 = vmatprep.subr.mxu0 0.0
      %592 = vmatpush1.msra.mxu0 %v580
      %593 = vmatprep.subr.mxu0 0.0
      %594 = vmatpush1.msra.mxu0 %v579
      %595 = vmatprep.subr.mxu0 0.0
      %596 = vmatpush1.msra.mxu0 %v578
      %597 = vmatprep.subr.mxu0 0.0
      %598 = vmatpush1.msra.mxu0 %v577
      %599 = vmatprep.subr.mxu0 0.0
      %600 = vmatpush1.msra.mxu0 %v576
      %601 = vmatprep.subr.mxu0 0.0
      %602 = vmatpush1.msra.mxu0 %v575
      %603 = vmatprep.subr.mxu0 0.0
      %604 = vmatpush1.msra.mxu0 %v574
      %605 = vmatprep.subr.mxu0 0.0
      %606 = vmatpush1.msra.mxu0 %v573
      %607 = vmatprep.subr.mxu0 0.0
      %608 = vmatpush1.msra.mxu0 %v572
      %609 = vmatprep.subr.mxu0 0.0
      %610 = vmatpush1.msra.mxu0 %v571
      %611 = vmatprep.subr.mxu0 0.0
      %612 = vmatpush1.msra.mxu0 %v570
      %613 = vmatprep.subr.mxu0 0.0
      %614 = vmatpush1.msra.mxu0 %v569
      %615 = vmatprep.subr.mxu0 0.0
      %616 = vmatpush1.msra.mxu0 %v568
      %617 = vmatprep.subr.mxu0 0.0
      %618 = vmatpush1.msra.mxu0 %v567
      %619 = vmatprep.subr.mxu0 0.0
      %620 = vmatpush1.msra.mxu0 %v566
      %621 = vmatprep.subr.mxu0 0.0
      %622 = vmatpush2.msra.mxu0 0.0
      %623 = vmatprep.subr.mxu0 0.0
      %624 = vmatpush2.msra.mxu0 0.0
      %625 = vmatprep.subr.mxu0 0.0
      %626 = vmatpush2.msra.mxu0 0.0
      %627 = vmatprep.subr.mxu0 0.0
      %628 = vmatpush2.msra.mxu0 0.0
      %629 = vmatprep.subr.mxu0 0.0
      %630 = vmatpush2.msra.mxu0 0.0
      %631 = vmatprep.subr.mxu0 0.0
      %632 = vmatpush2.msra.mxu0 0.0
      %633 = vmatprep.subr.mxu0 0.0
      %634 = vmatpush2.msra.mxu0 0.0
      %635 = vmatprep.subr.mxu0 0.0
      %636 = vmatpush2.msra.mxu0 0.0
      %637 = vmatprep.subr.mxu0 0.0
      %638 = vmatpush2.msra.mxu0 0.0
      %639 = vmatprep.subr.mxu0 0.0
      %640 = vmatpush2.msra.mxu0 0.0
      %641 = vmatprep.subr.mxu0 0.0
      %642 = vmatpush2.msra.mxu0 0.0
      %643 = vmatprep.subr.mxu0 0.0
      %644 = vmatpush2.msra.mxu0 0.0
      %645 = vmatprep.subr.mxu0 0.0
      %646 = vmatpush2.msra.mxu0 0.0
      %647 = vmatprep.subr.mxu0 0.0
      %648 = vmatpush2.msra.mxu0 0.0
      %649 = vmatprep.subr.mxu0 0.0
      %650 = vmatpush2.msra.mxu0 0.0
      %651 = vmatprep.subr.mxu0 0.0
      %652 = vmatpush2.msra.mxu0 0.0
      %653 = vmatprep.mubr.f32.mxu0 0.0
      %654 = vmatmul.mubr.f32.gmra.mxu0 %v565
      %v655 = vpop.f32.mrf.mxu0
      %v656 = vadd.f32 %v587, %v655
      %v657 = vpop.f32.mrf.mxu0
      %658 = vdwg.mxu0
      %vm659 = vcmp.gt.f32.partialorder %v656, 20.0
      %v660 = vmin.f32 %v656, 20.0
      %v661 = vmul.f32 %v660, 1.442695
      %v662 = vpow.pop %v661
      %v663 = vadd.f32 %v662, 1.0
      %v664 = vlog2.pop %v663
      %v665 = vmul.f32 %v664, 0.6931472
      %v666 = vsel %vm659, %v656, %v665
      %v667 = vld [vmem:[%s6] sm:$0xff]
      %v668 = vld [vmem:[%s6 + $0x8] sm:$0xff]
      %v669 = vld [vmem:[%s6 + $0x10] sm:$0xff]
      %v670 = vld [vmem:[%s6 + $0x18] sm:$0xff]
      %v671 = vld [vmem:[%s6 + $0x20] sm:$0xff]
      %v672 = vld [vmem:[%s6 + $0x28] sm:$0xff]
      %v673 = vld [vmem:[%s6 + $0x30] sm:$0xff]
      %v674 = vld [vmem:[%s6 + $0x38] sm:$0xff]
      %v675 = vld [vmem:[%s6 + $0x40] sm:$0xff]
      %v676 = vld [vmem:[%s6 + $0x48] sm:$0xff]
      %v677 = vld [vmem:[%s6 + $0x50] sm:$0xff]
      %v678 = vld [vmem:[%s6 + $0x58] sm:$0xff]
      %v679 = vld [vmem:[%s6 + $0x60] sm:$0xff]
      %v680 = vld [vmem:[%s6 + $0x68] sm:$0xff]
      %v681 = vld [vmem:[%s6 + $0x70] sm:$0xff]
      %v682 = vld [vmem:[%s6 + $0x78] sm:$0xff]
      %683 = vmatprep.subr.mxu0 0.0
      %684 = vmatpush1.msra.mxu0 %v682
      %685 = vmatprep.subr.mxu0 0.0
      %686 = vmatpush1.msra.mxu0 %v681
      %687 = vmatprep.subr.mxu0 0.0
      %688 = vmatpush1.msra.mxu0 %v680
      %689 = vmatprep.subr.mxu0 0.0
      %690 = vmatpush1.msra.mxu0 %v679
      %691 = vmatprep.subr.mxu0 0.0
      %692 = vmatpush1.msra.mxu0 %v678
      %693 = vmatprep.subr.mxu0 0.0
      %694 = vmatpush1.msra.mxu0 %v677
      %695 = vmatprep.subr.mxu0 0.0
      %696 = vmatpush1.msra.mxu0 %v676
      %697 = vmatprep.subr.mxu0 0.0
      %698 = vmatpush1.msra.mxu0 %v675
      %699 = vmatprep.subr.mxu0 0.0
      %700 = vmatpush1.msra.mxu0 %v674
      %701 = vmatprep.subr.mxu0 0.0
      %702 = vmatpush1.msra.mxu0 %v673
      %703 = vmatprep.subr.mxu0 0.0
      %704 = vmatpush1.msra.mxu0 %v672
      %705 = vmatprep.subr.mxu0 0.0
      %706 = vmatpush1.msra.mxu0 %v671
      %707 = vmatprep.subr.mxu0 0.0
      %708 = vmatpush1.msra.mxu0 %v670
      %709 = vmatprep.subr.mxu0 0.0
      %710 = vmatpush1.msra.mxu0 %v669
      %711 = vmatprep.subr.mxu0 0.0
      %712 = vmatpush1.msra.mxu0 %v668
      %713 = vmatprep.subr.mxu0 0.0
      %714 = vmatpush1.msra.mxu0 %v667
      %715 = vmatprep.subr.mxu0 0.0
      %716 = vmatpush2.msra.mxu0 0.0
      %717 = vmatprep.subr.mxu0 0.0
      %718 = vmatpush2.msra.mxu0 0.0
      %719 = vmatprep.subr.mxu0 0.0
      %720 = vmatpush2.msra.mxu0 0.0
      %721 = vmatprep.subr.mxu0 0.0
      %722 = vmatpush2.msra.mxu0 0.0
      %723 = vmatprep.subr.mxu0 0.0
      %724 = vmatpush2.msra.mxu0 0.0
      %725 = vmatprep.subr.mxu0 0.0
      %726 = vmatpush2.msra.mxu0 0.0
      %727 = vmatprep.subr.mxu0 0.0
      %728 = vmatpush2.msra.mxu0 0.0
      %729 = vmatprep.subr.mxu0 0.0
      %730 = vmatpush2.msra.mxu0 0.0
      %731 = vmatprep.subr.mxu0 0.0
      %732 = vmatpush2.msra.mxu0 0.0
      %733 = vmatprep.subr.mxu0 0.0
      %734 = vmatpush2.msra.mxu0 0.0
      %735 = vmatprep.subr.mxu0 0.0
      %736 = vmatpush2.msra.mxu0 0.0
      %737 = vmatprep.subr.mxu0 0.0
      %738 = vmatpush2.msra.mxu0 0.0
      %739 = vmatprep.subr.mxu0 0.0
      %740 = vmatpush2.msra.mxu0 0.0
      %741 = vmatprep.subr.mxu0 0.0
      %742 = vmatpush2.msra.mxu0 0.0
      %743 = vmatprep.subr.mxu0 0.0
      %744 = vmatpush2.msra.mxu0 0.0
      %745 = vmatprep.subr.mxu0 0.0
      %746 = vmatpush2.msra.mxu0 0.0
      %747 = vmatprep.mubr.f32.mxu0 0.0
      %748 = vmatmul.mubr.f32.gmra.mxu0 %v565
      %v749 = vpop.f32.mrf.mxu0
      %v750 = vadd.f32 0.0, %v749
      %v751 = vpop.f32.mrf.mxu0
      %752 = vdwg.mxu0
      %v753 = vld [vmem:[%s7] sm:$0xff]
      %v754 = vld [vmem:[%s7 + $0x8] sm:$0xff]
      %v755 = vld [vmem:[%s7 + $0x10] sm:$0xff]
      %v756 = vld [vmem:[%s7 + $0x18] sm:$0xff]
      %v757 = vld [vmem:[%s7 + $0x20] sm:$0xff]
      %v758 = vld [vmem:[%s7 + $0x28] sm:$0xff]
      %v759 = vld [vmem:[%s7 + $0x30] sm:$0xff]
      %v760 = vld [vmem:[%s7 + $0x38] sm:$0xff]
      %v761 = vld [vmem:[%s7 + $0x40] sm:$0xff]
      %v762 = vld [vmem:[%s7 + $0x48] sm:$0xff]
      %v763 = vld [vmem:[%s7 + $0x50] sm:$0xff]
      %v764 = vld [vmem:[%s7 + $0x58] sm:$0xff]
      %v765 = vld [vmem:[%s7 + $0x60] sm:$0xff]
      %v766 = vld [vmem:[%s7 + $0x68] sm:$0xff]
      %v767 = vld [vmem:[%s7 + $0x70] sm:$0xff]
      %v768 = vld [vmem:[%s7 + $0x78] sm:$0xff]
      %769 = vmatprep.subr.mxu0 0.0
      %770 = vmatpush1.msra.mxu0 %v768
      %771 = vmatprep.subr.mxu0 0.0
      %772 = vmatpush1.msra.mxu0 %v767
      %773 = vmatprep.subr.mxu0 0.0
      %774 = vmatpush1.msra.mxu0 %v766
      %775 = vmatprep.subr.mxu0 0.0
      %776 = vmatpush1.msra.mxu0 %v765
      %777 = vmatprep.subr.mxu0 0.0
      %778 = vmatpush1.msra.mxu0 %v764
      %779 = vmatprep.subr.mxu0 0.0
      %780 = vmatpush1.msra.mxu0 %v763
      %781 = vmatprep.subr.mxu0 0.0
      %782 = vmatpush1.msra.mxu0 %v762
      %783 = vmatprep.subr.mxu0 0.0
      %784 = vmatpush1.msra.mxu0 %v761
      %785 = vmatprep.subr.mxu0 0.0
      %786 = vmatpush1.msra.mxu0 %v760
      %787 = vmatprep.subr.mxu0 0.0
      %788 = vmatpush1.msra.mxu0 %v759
      %789 = vmatprep.subr.mxu0 0.0
      %790 = vmatpush1.msra.mxu0 %v758
      %791 = vmatprep.subr.mxu0 0.0
      %792 = vmatpush1.msra.mxu0 %v757
      %793 = vmatprep.subr.mxu0 0.0
      %794 = vmatpush1.msra.mxu0 %v756
      %795 = vmatprep.subr.mxu0 0.0
      %796 = vmatpush1.msra.mxu0 %v755
      %797 = vmatprep.subr.mxu0 0.0
      %798 = vmatpush1.msra.mxu0 %v754
      %799 = vmatprep.subr.mxu0 0.0
      %800 = vmatpush1.msra.mxu0 %v753
      %801 = vmatprep.subr.mxu0 0.0
      %802 = vmatpush2.msra.mxu0 0.0
      %803 = vmatprep.subr.mxu0 0.0
      %804 = vmatpush2.msra.mxu0 0.0
      %805 = vmatprep.subr.mxu0 0.0
      %806 = vmatpush2.msra.mxu0 0.0
      %807 = vmatprep.subr.mxu0 0.0
      %808 = vmatpush2.msra.mxu0 0.0
      %809 = vmatprep.subr.mxu0 0.0
      %810 = vmatpush2.msra.mxu0 0.0
      %811 = vmatprep.subr.mxu0 0.0
      %812 = vmatpush2.msra.mxu0 0.0
      %813 = vmatprep.subr.mxu0 0.0
      %814 = vmatpush2.msra.mxu0 0.0
      %815 = vmatprep.subr.mxu0 0.0
      %816 = vmatpush2.msra.mxu0 0.0
      %817 = vmatprep.subr.mxu0 0.0
      %818 = vmatpush2.msra.mxu0 0.0
      %819 = vmatprep.subr.mxu0 0.0
      %820 = vmatpush2.msra.mxu0 0.0
      %821 = vmatprep.subr.mxu0 0.0
      %822 = vmatpush2.msra.mxu0 0.0
      %823 = vmatprep.subr.mxu0 0.0
      %824 = vmatpush2.msra.mxu0 0.0
      %825 = vmatprep.subr.mxu0 0.0
      %826 = vmatpush2.msra.mxu0 0.0
      %827 = vmatprep.subr.mxu0 0.0
      %828 = vmatpush2.msra.mxu0 0.0
      %829 = vmatprep.subr.mxu0 0.0
      %830 = vmatpush2.msra.mxu0 0.0
      %831 = vmatprep.subr.mxu0 0.0
      %832 = vmatpush2.msra.mxu0 0.0
      %833 = vmatprep.mubr.f32.mxu0 0.0
      %834 = vmatmul.mubr.f32.gmra.mxu0 %v565
      %v835 = vpop.f32.mrf.mxu0
      %v836 = vadd.f32 0.0, %v835
      %v837 = vpop.f32.mrf.mxu0
      %838 = vdwg.mxu0
      %v839 = vld [vmem:[%s8] sm:$0xff]
      %v840 = vld [vmem:[%s8 + $0x8] sm:$0xff]
      %v841 = vmul.f32 %v839, 1.442695
      %v842 = vpow.pop %v841
      %v843 = vmul.f32 %v840, 1.442695
      %v844 = vpow.pop %v843
      %v845 = vsub.f32 0.0, %v842
      %v846 = vsub.f32 0.0, %v844
      %v848 = vcombine.high %v666, %v666
      %v850 = vunpack.c.l.s4 1966171168
      %v851 = vunpack.c.0.s8 %v850
      %v852 = vlaneseq
      %v853 = vshrl.u32 %v852, 7
      %v854 = vsub.s32 %v851, %v853
      %v855 = vrot.slane %v666, %v854
      %v857 = vunpack.c.l.s4 1966171168
      %v858 = vunpack.c.0.s8 %v857
      %v859 = vlaneseq
      %v860 = vshrl.u32 %v859, 7
      %v861 = vsub.s32 %v858, %v860
      %v862 = vrot.slane %v848, %v861
      %v863 = vcombine.high %v855, %v855
      %v864 = vcombine.high %v862, %v862
      %v866 = vunpack.c.l.s4 1966171168
      %v867 = vunpack.c.0.s8 %v866
      %v868 = vlaneseq
      %v869 = vshrl.u32 %v868, 7
      %v870 = vsub.s32 %v867, %v869
      %v871 = vrot.slane %v855, %v870
      %v873 = vunpack.c.l.s4 1966171168
      %v874 = vunpack.c.0.s8 %v873
      %v875 = vlaneseq
      %v876 = vshrl.u32 %v875, 7
      %v877 = vsub.s32 %v874, %v876
      %v878 = vrot.slane %v862, %v877
      %v880 = vunpack.c.l.s4 1966171168
      %v881 = vunpack.c.0.s8 %v880
      %v882 = vlaneseq
      %v883 = vshrl.u32 %v882, 7
      %v884 = vsub.s32 %v881, %v883
      %v885 = vrot.slane %v863, %v884
      %v887 = vunpack.c.l.s4 1966171168
      %v888 = vunpack.c.0.s8 %v887
      %v889 = vlaneseq
      %v890 = vshrl.u32 %v889, 7
      %v891 = vsub.s32 %v888, %v890
      %v892 = vrot.slane %v864, %v891
      %v893 = vcombine.high %v871, %v871
      %v894 = vcombine.high %v878, %v878
      %v895 = vcombine.high %v885, %v885
      %v896 = vlaneseq
      %v897 = vshrl.u32 %v896, 7
      %v898 = vsub.s32 0, %v897
      %v899 = vrot.slane %v871, %v898
      %v900 = vlaneseq
      %v901 = vshrl.u32 %v900, 7
      %v902 = vsub.s32 0, %v901
      %v903 = vrot.slane %v885, %v902
      %v904 = vlaneseq
      %v905 = vshrl.u32 %v904, 7
      %v906 = vsub.s32 0, %v905
      %v907 = vrot.slane %v893, %v906
      %v908 = vlaneseq
      %v909 = vshrl.u32 %v908, 7
      %v910 = vsub.s32 0, %v909
      %v911 = vrot.slane %v895, %v910
      %v912 = vlaneseq
      %v913 = vshrl.u32 %v912, 7
      %v914 = vsub.s32 0, %v913
      %v915 = vrot.slane %v878, %v914
      %v916 = vlaneseq
      %v917 = vshrl.u32 %v916, 7
      %v918 = vsub.s32 0, %v917
      %v919 = vrot.slane %v892, %v918
      %v920 = vlaneseq
      %v921 = vshrl.u32 %v920, 7
      %v922 = vsub.s32 0, %v921
      %v923 = vrot.slane %v894, %v922
      %v931 = vmul.f32 %v899, %v845
      %v932 = vmul.f32 %v899, %v846
      %v933 = vmul.f32 %v903, %v845
      %v934 = vmul.f32 %v903, %v846
      %v935 = vmul.f32 %v907, %v845
      %v936 = vmul.f32 %v907, %v846
      %v937 = vmul.f32 %v911, %v845
      %v938 = vmul.f32 %v911, %v846
      %v939 = vmul.f32 %v915, %v845
      %v940 = vmul.f32 %v915, %v846
      %v941 = vmul.f32 %v919, %v845
      %v942 = vmul.f32 %v919, %v846
      %v943 = vmul.f32 %v923, %v845
      %v944 = vmul.f32 %v923, %v846
      %v945 = vmul.f32 %v931, 1.442695
      %v946 = vpow.pop %v945
      %v947 = vmul.f32 %v932, 1.442695
      %v948 = vpow.pop %v947
      %v949 = vmul.f32 %v933, 1.442695
      %v950 = vpow.pop %v949
      %v951 = vmul.f32 %v934, 1.442695
      %v952 = vpow.pop %v951
      %v953 = vmul.f32 %v935, 1.442695
      %v954 = vpow.pop %v953
      %v955 = vmul.f32 %v936, 1.442695
      %v956 = vpow.pop %v955
      %v957 = vmul.f32 %v937, 1.442695
      %v958 = vpow.pop %v957
      %v959 = vmul.f32 %v938, 1.442695
      %v960 = vpow.pop %v959
      %v961 = vmul.f32 %v939, 1.442695
      %v962 = vpow.pop %v961
      %v963 = vmul.f32 %v940, 1.442695
      %v964 = vpow.pop %v963
      %v965 = vmul.f32 %v941, 1.442695
      %v966 = vpow.pop %v965
      %v967 = vmul.f32 %v942, 1.442695
      %v968 = vpow.pop %v967
      %v969 = vmul.f32 %v943, 1.442695
      %v970 = vpow.pop %v969
      %v971 = vmul.f32 %v944, 1.442695
      %v972 = vpow.pop %v971
      %973 = vst [vmem:[#allocation2] sm:$0xff] %v946
      %974 = vst [vmem:[#allocation2 + $0x8] sm:$0xff] %v948
      %975 = vst [vmem:[#allocation2 + $0x10] sm:$0xff] %v950
      %976 = vst [vmem:[#allocation2 + $0x18] sm:$0xff] %v952
      %977 = vst [vmem:[#allocation2 + $0x20] sm:$0xff] %v954
      %978 = vst [vmem:[#allocation2 + $0x28] sm:$0xff] %v956
      %979 = vst [vmem:[#allocation2 + $0x30] sm:$0xff] %v958
      %980 = vst [vmem:[#allocation2 + $0x38] sm:$0xff] %v960
      %981 = vst [vmem:[#allocation2 + $0x40] sm:$0xff] %v962
      %982 = vst [vmem:[#allocation2 + $0x48] sm:$0xff] %v964
      %983 = vst [vmem:[#allocation2 + $0x50] sm:$0xff] %v966
      %984 = vst [vmem:[#allocation2 + $0x58] sm:$0xff] %v968
      %985 = vst [vmem:[#allocation2 + $0x60] sm:$0xff] %v970
      %986 = vst [vmem:[#allocation2 + $0x68] sm:$0xff] %v972
      %v987 = vmul.f32 %v666, %v565
      %v989 = vcombine.high %v987, %v987
      %v991 = vunpack.c.l.s4 1966171168
      %v992 = vunpack.c.0.s8 %v991
      %v993 = vlaneseq
      %v994 = vshrl.u32 %v993, 7
      %v995 = vsub.s32 %v992, %v994
      %v996 = vrot.slane %v987, %v995
      %v998 = vunpack.c.l.s4 1966171168
      %v999 = vunpack.c.0.s8 %v998
      %v1000 = vlaneseq
      %v1001 = vshrl.u32 %v1000, 7
      %v1002 = vsub.s32 %v999, %v1001
      %v1003 = vrot.slane %v989, %v1002
      %v1004 = vcombine.high %v996, %v996
      %v1005 = vcombine.high %v1003, %v1003
      %v1007 = vunpack.c.l.s4 1966171168
      %v1008 = vunpack.c.0.s8 %v1007
      %v1009 = vlaneseq
      %v1010 = vshrl.u32 %v1009, 7
      %v1011 = vsub.s32 %v1008, %v1010
      %v1012 = vrot.slane %v996, %v1011
      %v1014 = vunpack.c.l.s4 1966171168
      %v1015 = vunpack.c.0.s8 %v1014
      %v1016 = vlaneseq
      %v1017 = vshrl.u32 %v1016, 7
      %v1018 = vsub.s32 %v1015, %v1017
      %v1019 = vrot.slane %v1003, %v1018
      %v1021 = vunpack.c.l.s4 1966171168
      %v1022 = vunpack.c.0.s8 %v1021
      %v1023 = vlaneseq
      %v1024 = vshrl.u32 %v1023, 7
      %v1025 = vsub.s32 %v1022, %v1024
      %v1026 = vrot.slane %v1004, %v1025
      %v1028 = vunpack.c.l.s4 1966171168
      %v1029 = vunpack.c.0.s8 %v1028
      %v1030 = vlaneseq
      %v1031 = vshrl.u32 %v1030, 7
      %v1032 = vsub.s32 %v1029, %v1031
      %v1033 = vrot.slane %v1005, %v1032
      %v1034 = vcombine.high %v1012, %v1012
      %v1035 = vcombine.high %v1019, %v1019
      %v1036 = vcombine.high %v1026, %v1026
      %v1037 = vlaneseq
      %v1038 = vshrl.u32 %v1037, 7
      %v1039 = vsub.s32 0, %v1038
      %v1040 = vrot.slane %v750, %v1039
      %1042 = vbcast.lane.b32.xlu0 %v1040, 256
      %v1043 = vpop.permute.xlu0 %1042
      %s1045 = sor.u32 256, 8
      %1046 = vbcast.lane.b32.xlu0 %v1040, %s1045
      %v1047 = vpop.permute.xlu0 %1046
      %v1048 = vlaneseq
      %v1049 = vshrl.u32 %v1048, 7
      %v1050 = vsub.s32 1, %v1049
      %v1051 = vrot.slane %v750, %v1050
      %1053 = vbcast.lane.b32.xlu0 %v1051, 256
      %v1054 = vpop.permute.xlu0 %1053
      %s1056 = sor.u32 256, 8
      %1057 = vbcast.lane.b32.xlu0 %v1051, %s1056
      %v1058 = vpop.permute.xlu0 %1057
      %v1059 = vlaneseq
      %v1060 = vshrl.u32 %v1059, 7
      %v1061 = vsub.s32 2, %v1060
      %v1062 = vrot.slane %v750, %v1061
      %1064 = vbcast.lane.b32.xlu0 %v1062, 256
      %v1065 = vpop.permute.xlu0 %1064
      %s1067 = sor.u32 256, 8
      %1068 = vbcast.lane.b32.xlu0 %v1062, %s1067
      %v1069 = vpop.permute.xlu0 %1068
      %v1070 = vlaneseq
      %v1071 = vshrl.u32 %v1070, 7
      %v1072 = vsub.s32 3, %v1071
      %v1073 = vrot.slane %v750, %v1072
      %1075 = vbcast.lane.b32.xlu0 %v1073, 256
      %v1076 = vpop.permute.xlu0 %1075
      %s1078 = sor.u32 256, 8
      %1079 = vbcast.lane.b32.xlu0 %v1073, %s1078
      %v1080 = vpop.permute.xlu0 %1079
      %v1081 = vlaneseq
      %v1082 = vshrl.u32 %v1081, 7
      %v1083 = vsub.s32 4, %v1082
      %v1084 = vrot.slane %v750, %v1083
      %1086 = vbcast.lane.b32.xlu0 %v1084, 256
      %v1087 = vpop.permute.xlu0 %1086
      %s1089 = sor.u32 256, 8
      %1090 = vbcast.lane.b32.xlu0 %v1084, %s1089
      %v1091 = vpop.permute.xlu0 %1090
      %v1092 = vlaneseq
      %v1093 = vshrl.u32 %v1092, 7
      %v1094 = vsub.s32 5, %v1093
      %v1095 = vrot.slane %v750, %v1094
      %1097 = vbcast.lane.b32.xlu0 %v1095, 256
      %v1098 = vpop.permute.xlu0 %1097
      %s1100 = sor.u32 256, 8
      %1101 = vbcast.lane.b32.xlu0 %v1095, %s1100
      %v1102 = vpop.permute.xlu0 %1101
      %v1103 = vlaneseq
      %v1104 = vshrl.u32 %v1103, 7
      %v1105 = vsub.s32 6, %v1104
      %v1106 = vrot.slane %v750, %v1105
      %1108 = vbcast.lane.b32.xlu0 %v1106, 256
      %v1109 = vpop.permute.xlu0 %1108
      %s1111 = sor.u32 256, 8
      %1112 = vbcast.lane.b32.xlu0 %v1106, %s1111
      %v1113 = vpop.permute.xlu0 %1112
      %v1114 = vlaneseq
      %v1115 = vshrl.u32 %v1114, 7
      %v1116 = vsub.s32 0, %v1115
      %v1117 = vrot.slane %v1012, %v1116
      %v1118 = vlaneseq
      %v1119 = vshrl.u32 %v1118, 7
      %v1120 = vsub.s32 0, %v1119
      %v1121 = vrot.slane %v1026, %v1120
      %v1122 = vlaneseq
      %v1123 = vshrl.u32 %v1122, 7
      %v1124 = vsub.s32 0, %v1123
      %v1125 = vrot.slane %v1034, %v1124
      %v1126 = vlaneseq
      %v1127 = vshrl.u32 %v1126, 7
      %v1128 = vsub.s32 0, %v1127
      %v1129 = vrot.slane %v1036, %v1128
      %v1130 = vlaneseq
      %v1131 = vshrl.u32 %v1130, 7
      %v1132 = vsub.s32 0, %v1131
      %v1133 = vrot.slane %v1019, %v1132
      %v1134 = vlaneseq
      %v1135 = vshrl.u32 %v1134, 7
      %v1136 = vsub.s32 0, %v1135
      %v1137 = vrot.slane %v1033, %v1136
      %v1138 = vlaneseq
      %v1139 = vshrl.u32 %v1138, 7
      %v1140 = vsub.s32 0, %v1139
      %v1141 = vrot.slane %v1035, %v1140
      %v1149 = vmul.f32 %v1117, %v1043
      %v1150 = vmul.f32 %v1117, %v1047
      %v1151 = vmul.f32 %v1121, %v1054
      %v1152 = vmul.f32 %v1121, %v1058
      %v1153 = vmul.f32 %v1125, %v1065
      %v1154 = vmul.f32 %v1125, %v1069
      %v1155 = vmul.f32 %v1129, %v1076
      %v1156 = vmul.f32 %v1129, %v1080
      %v1157 = vmul.f32 %v1133, %v1087
      %v1158 = vmul.f32 %v1133, %v1091
      %v1159 = vmul.f32 %v1137, %v1098
      %v1160 = vmul.f32 %v1137, %v1102
      %v1161 = vmul.f32 %v1141, %v1109
      %v1162 = vmul.f32 %v1141, %v1113
      %1163 = vst [vmem:[#allocation3] sm:$0xff] %v1149
      %1164 = vst [vmem:[#allocation3 + $0x8] sm:$0xff] %v1150
      %1165 = vst [vmem:[#allocation3 + $0x10] sm:$0xff] %v1151
      %1166 = vst [vmem:[#allocation3 + $0x18] sm:$0xff] %v1152
      %1167 = vst [vmem:[#allocation3 + $0x20] sm:$0xff] %v1153
      %1168 = vst [vmem:[#allocation3 + $0x28] sm:$0xff] %v1154
      %1169 = vst [vmem:[#allocation3 + $0x30] sm:$0xff] %v1155
      %1170 = vst [vmem:[#allocation3 + $0x38] sm:$0xff] %v1156
      %1171 = vst [vmem:[#allocation3 + $0x40] sm:$0xff] %v1157
      %1172 = vst [vmem:[#allocation3 + $0x48] sm:$0xff] %v1158
      %1173 = vst [vmem:[#allocation3 + $0x50] sm:$0xff] %v1159
      %1174 = vst [vmem:[#allocation3 + $0x58] sm:$0xff] %v1160
      %1175 = vst [vmem:[#allocation3 + $0x60] sm:$0xff] %v1161
      %1176 = vst [vmem:[#allocation3 + $0x68] sm:$0xff] %v1162
      %v1177 = vld [vmem:[#allocation2] sm:$0xff]
      %v1178 = vld [vmem:[#allocation2 + $0x8] sm:$0xff]
      %v1179 = vmul.f32 %v1177, 0.0
      %v1180 = vmul.f32 %v1178, 0.0
      %v1181 = vld [vmem:[#allocation3] sm:$0xff]
      %v1182 = vld [vmem:[#allocation3 + $0x8] sm:$0xff]
      %v1183 = vadd.f32 %v1179, %v1181
      %v1184 = vadd.f32 %v1180, %v1182
      %1185 = vst [vmem:[#allocation4] sm:$0xff] %v1183
      %1186 = vst [vmem:[#allocation4 + $0x8] sm:$0xff] %v1184
      %s1187 = scalar_lea.vmem [#allocation2], 16
      %v1188 = vld [vmem:[%s1187] sm:$0xff]
      %v1189 = vld [vmem:[%s1187 + $0x8] sm:$0xff]
      %v1190 = vmul.f32 %v1188, %v1183
      %v1191 = vmul.f32 %v1189, %v1184
      %s1192 = scalar_lea.vmem [#allocation3], 16
      %v1193 = vld [vmem:[%s1192] sm:$0xff]
      %v1194 = vld [vmem:[%s1192 + $0x8] sm:$0xff]
      %v1195 = vadd.f32 %v1190, %v1193
      %v1196 = vadd.f32 %v1191, %v1194
      %s1197 = scalar_lea.vmem [#allocation4], 16
      %1198 = vst [vmem:[%s1197] sm:$0xff] %v1195
      %1199 = vst [vmem:[%s1197 + $0x8] sm:$0xff] %v1196
      %s1200 = scalar_lea.vmem [#allocation2], 32
      %v1201 = vld [vmem:[%s1200] sm:$0xff]
      %v1202 = vld [vmem:[%s1200 + $0x8] sm:$0xff]
      %v1203 = vmul.f32 %v1201, %v1195
      %v1204 = vmul.f32 %v1202, %v1196
      %s1205 = scalar_lea.vmem [#allocation3], 32
      %v1206 = vld [vmem:[%s1205] sm:$0xff]
      %v1207 = vld [vmem:[%s1205 + $0x8] sm:$0xff]
      %v1208 = vadd.f32 %v1203, %v1206
      %v1209 = vadd.f32 %v1204, %v1207
      %s1210 = scalar_lea.vmem [#allocation4], 32
      %1211 = vst [vmem:[%s1210] sm:$0xff] %v1208
      %1212 = vst [vmem:[%s1210 + $0x8] sm:$0xff] %v1209
      %s1213 = scalar_lea.vmem [#allocation2], 48
      %v1214 = vld [vmem:[%s1213] sm:$0xff]
      %v1215 = vld [vmem:[%s1213 + $0x8] sm:$0xff]
      %v1216 = vmul.f32 %v1214, %v1208
      %v1217 = vmul.f32 %v1215, %v1209
      %s1218 = scalar_lea.vmem [#allocation3], 48
      %v1219 = vld [vmem:[%s1218] sm:$0xff]
      %v1220 = vld [vmem:[%s1218 + $0x8] sm:$0xff]
      %v1221 = vadd.f32 %v1216, %v1219
      %v1222 = vadd.f32 %v1217, %v1220
      %s1223 = scalar_lea.vmem [#allocation4], 48
      %1224 = vst [vmem:[%s1223] sm:$0xff] %v1221
      %1225 = vst [vmem:[%s1223 + $0x8] sm:$0xff] %v1222
      %s1226 = scalar_lea.vmem [#allocation2], 64
      %v1227 = vld [vmem:[%s1226] sm:$0xff]
      %v1228 = vld [vmem:[%s1226 + $0x8] sm:$0xff]
      %v1229 = vmul.f32 %v1227, %v1221
      %v1230 = vmul.f32 %v1228, %v1222
      %s1231 = scalar_lea.vmem [#allocation3], 64
      %v1232 = vld [vmem:[%s1231] sm:$0xff]
      %v1233 = vld [vmem:[%s1231 + $0x8] sm:$0xff]
      %v1234 = vadd.f32 %v1229, %v1232
      %v1235 = vadd.f32 %v1230, %v1233
      %s1236 = scalar_lea.vmem [#allocation4], 64
      %1237 = vst [vmem:[%s1236] sm:$0xff] %v1234
      %1238 = vst [vmem:[%s1236 + $0x8] sm:$0xff] %v1235
      %s1239 = scalar_lea.vmem [#allocation2], 80
      %v1240 = vld [vmem:[%s1239] sm:$0xff]
      %v1241 = vld [vmem:[%s1239 + $0x8] sm:$0xff]
      %v1242 = vmul.f32 %v1240, %v1234
      %v1243 = vmul.f32 %v1241, %v1235
      %s1244 = scalar_lea.vmem [#allocation3], 80
      %v1245 = vld [vmem:[%s1244] sm:$0xff]
      %v1246 = vld [vmem:[%s1244 + $0x8] sm:$0xff]
      %v1247 = vadd.f32 %v1242, %v1245
      %v1248 = vadd.f32 %v1243, %v1246
      %s1249 = scalar_lea.vmem [#allocation4], 80
      %1250 = vst [vmem:[%s1249] sm:$0xff] %v1247
      %1251 = vst [vmem:[%s1249 + $0x8] sm:$0xff] %v1248
      %s1252 = scalar_lea.vmem [#allocation2], 96
      %v1253 = vld [vmem:[%s1252] sm:$0xff]
      %v1254 = vld [vmem:[%s1252 + $0x8] sm:$0xff]
      %v1255 = vmul.f32 %v1253, %v1247
      %v1256 = vmul.f32 %v1254, %v1248
      %s1257 = scalar_lea.vmem [#allocation3], 96
      %v1258 = vld [vmem:[%s1257] sm:$0xff]
      %v1259 = vld [vmem:[%s1257 + $0x8] sm:$0xff]
      %v1260 = vadd.f32 %v1255, %v1258
      %v1261 = vadd.f32 %v1256, %v1259
      %s1262 = scalar_lea.vmem [#allocation4], 96
      %1263 = vst [vmem:[%s1262] sm:$0xff] %v1260
      %1264 = vst [vmem:[%s1262 + $0x8] sm:$0xff] %v1261
      %v1265 = vld [vmem:[#allocation4] sm:$0xff]
      %v1266 = vld [vmem:[#allocation4 + $0x8] sm:$0xff]
      %v1267 = vld [vmem:[#allocation4 + $0x10] sm:$0xff]
      %v1268 = vld [vmem:[#allocation4 + $0x18] sm:$0xff]
      %v1269 = vld [vmem:[#allocation4 + $0x20] sm:$0xff]
      %v1270 = vld [vmem:[#allocation4 + $0x28] sm:$0xff]
      %v1271 = vld [vmem:[#allocation4 + $0x30] sm:$0xff]
      %v1272 = vld [vmem:[#allocation4 + $0x38] sm:$0xff]
      %v1273 = vld [vmem:[#allocation4 + $0x40] sm:$0xff]
      %v1274 = vld [vmem:[#allocation4 + $0x48] sm:$0xff]
      %v1275 = vld [vmem:[#allocation4 + $0x50] sm:$0xff]
      %v1276 = vld [vmem:[#allocation4 + $0x58] sm:$0xff]
      %v1277 = vld [vmem:[#allocation4 + $0x60] sm:$0xff]
      %v1278 = vld [vmem:[#allocation4 + $0x68] sm:$0xff]
      %v1279 = vlaneseq
      %v1280 = vshrl.u32 %v1279, 7
      %v1281 = vsub.s32 0, %v1280
      %v1282 = vrot.slane %v836, %v1281
      %1284 = vbcast.lane.b32.xlu0 %v1282, 256
      %v1285 = vpop.permute.xlu0 %1284
      %s1287 = sor.u32 256, 8
      %1288 = vbcast.lane.b32.xlu0 %v1282, %s1287
      %v1289 = vpop.permute.xlu0 %1288
      %v1290 = vlaneseq
      %v1291 = vshrl.u32 %v1290, 7
      %v1292 = vsub.s32 1, %v1291
      %v1293 = vrot.slane %v836, %v1292
      %1295 = vbcast.lane.b32.xlu0 %v1293, 256
      %v1296 = vpop.permute.xlu0 %1295
      %s1298 = sor.u32 256, 8
      %1299 = vbcast.lane.b32.xlu0 %v1293, %s1298
      %v1300 = vpop.permute.xlu0 %1299
      %v1301 = vlaneseq
      %v1302 = vshrl.u32 %v1301, 7
      %v1303 = vsub.s32 2, %v1302
      %v1304 = vrot.slane %v836, %v1303
      %1306 = vbcast.lane.b32.xlu0 %v1304, 256
      %v1307 = vpop.permute.xlu0 %1306
      %s1309 = sor.u32 256, 8
      %1310 = vbcast.lane.b32.xlu0 %v1304, %s1309
      %v1311 = vpop.permute.xlu0 %1310
      %v1312 = vlaneseq
      %v1313 = vshrl.u32 %v1312, 7
      %v1314 = vsub.s32 3, %v1313
      %v1315 = vrot.slane %v836, %v1314
      %1317 = vbcast.lane.b32.xlu0 %v1315, 256
      %v1318 = vpop.permute.xlu0 %1317
      %s1320 = sor.u32 256, 8
      %1321 = vbcast.lane.b32.xlu0 %v1315, %s1320
      %v1322 = vpop.permute.xlu0 %1321
      %v1323 = vlaneseq
      %v1324 = vshrl.u32 %v1323, 7
      %v1325 = vsub.s32 4, %v1324
      %v1326 = vrot.slane %v836, %v1325
      %1328 = vbcast.lane.b32.xlu0 %v1326, 256
      %v1329 = vpop.permute.xlu0 %1328
      %s1331 = sor.u32 256, 8
      %1332 = vbcast.lane.b32.xlu0 %v1326, %s1331
      %v1333 = vpop.permute.xlu0 %1332
      %v1334 = vlaneseq
      %v1335 = vshrl.u32 %v1334, 7
      %v1336 = vsub.s32 5, %v1335
      %v1337 = vrot.slane %v836, %v1336
      %1339 = vbcast.lane.b32.xlu0 %v1337, 256
      %v1340 = vpop.permute.xlu0 %1339
      %s1342 = sor.u32 256, 8
      %1343 = vbcast.lane.b32.xlu0 %v1337, %s1342
      %v1344 = vpop.permute.xlu0 %1343
      %v1345 = vlaneseq
      %v1346 = vshrl.u32 %v1345, 7
      %v1347 = vsub.s32 6, %v1346
      %v1348 = vrot.slane %v836, %v1347
      %1350 = vbcast.lane.b32.xlu0 %v1348, 256
      %v1351 = vpop.permute.xlu0 %1350
      %s1353 = sor.u32 256, 8
      %1354 = vbcast.lane.b32.xlu0 %v1348, %s1353
      %v1355 = vpop.permute.xlu0 %1354
      %v1356 = vmul.f32 %v1265, %v1285
      %v1357 = vmul.f32 %v1266, %v1289
      %v1358 = vmul.f32 %v1267, %v1296
      %v1359 = vmul.f32 %v1268, %v1300
      %v1360 = vmul.f32 %v1269, %v1307
      %v1361 = vmul.f32 %v1270, %v1311
      %v1362 = vmul.f32 %v1271, %v1318
      %v1363 = vmul.f32 %v1272, %v1322
      %v1364 = vmul.f32 %v1273, %v1329
      %v1365 = vmul.f32 %v1274, %v1333
      %v1366 = vmul.f32 %v1275, %v1340
      %v1367 = vmul.f32 %v1276, %v1344
      %v1368 = vmul.f32 %v1277, %v1351
      %v1369 = vmul.f32 %v1278, %v1355
      %v1370 = vadd.f32 %v1356, %v1357
      %v1371 = vrot.slane %v1370, 4
      %v1372 = vadd.f32 %v1370, %v1371
      %v1373 = vrot.slane %v1372, 2
      %v1374 = vadd.f32 %v1372, %v1373
      %v1375 = vrot.slane %v1374, 1
      %v1376 = vadd.f32 %v1374, %v1375
      %v1377 = vadd.f32 %v1358, %v1359
      %v1378 = vrot.slane %v1377, 4
      %v1379 = vadd.f32 %v1377, %v1378
      %v1380 = vrot.slane %v1379, 2
      %v1381 = vadd.f32 %v1379, %v1380
      %v1382 = vrot.slane %v1381, 1
      %v1383 = vadd.f32 %v1381, %v1382
      %v1384 = vadd.f32 %v1360, %v1361
      %v1385 = vrot.slane %v1384, 4
      %v1386 = vadd.f32 %v1384, %v1385
      %v1387 = vrot.slane %v1386, 2
      %v1388 = vadd.f32 %v1386, %v1387
      %v1389 = vrot.slane %v1388, 1
      %v1390 = vadd.f32 %v1388, %v1389
      %v1391 = vadd.f32 %v1362, %v1363
      %v1392 = vrot.slane %v1391, 4
      %v1393 = vadd.f32 %v1391, %v1392
      %v1394 = vrot.slane %v1393, 2
      %v1395 = vadd.f32 %v1393, %v1394
      %v1396 = vrot.slane %v1395, 1
      %v1397 = vadd.f32 %v1395, %v1396
      %v1398 = vadd.f32 %v1364, %v1365
      %v1399 = vrot.slane %v1398, 4
      %v1400 = vadd.f32 %v1398, %v1399
      %v1401 = vrot.slane %v1400, 2
      %v1402 = vadd.f32 %v1400, %v1401
      %v1403 = vrot.slane %v1402, 1
      %v1404 = vadd.f32 %v1402, %v1403
      %v1405 = vadd.f32 %v1366, %v1367
      %v1406 = vrot.slane %v1405, 4
      %v1407 = vadd.f32 %v1405, %v1406
      %v1408 = vrot.slane %v1407, 2
      %v1409 = vadd.f32 %v1407, %v1408
      %v1410 = vrot.slane %v1409, 1
      %v1411 = vadd.f32 %v1409, %v1410
      %v1412 = vadd.f32 %v1368, %v1369
      %v1413 = vrot.slane %v1412, 4
      %v1414 = vadd.f32 %v1412, %v1413
      %v1415 = vrot.slane %v1414, 2
      %v1416 = vadd.f32 %v1414, %v1415
      %v1417 = vrot.slane %v1416, 1
      %v1418 = vadd.f32 %v1416, %v1417
      %v1419 = vld [vmem:[%s9] sm:$0x1]
      %v1421 = vlaneseq
      %v1422 = vshrl.u32 %v1421, 7
      %v1423 = vsub.s32 0, %v1422
      %v1424 = vrot.slane %v1419, %v1423
      %v1426 = vmul.f32 %v1424, %v565
      %v1428 = vrot.slane %v1426, 1
      %v1429 = vrot.slane %v1426, 2
      %v1430 = vrot.slane %v1426, 3
      %v1431 = vrot.slane %v1426, 4
      %v1432 = vrot.slane %v1426, 5
      %v1433 = vrot.slane %v1426, 6
      %v1441 = vadd.f32 %v1376, %v1426
      %v1442 = vadd.f32 %v1383, %v1428
      %v1443 = vadd.f32 %v1390, %v1429
      %v1444 = vadd.f32 %v1397, %v1430
      %v1445 = vadd.f32 %v1404, %v1431
      %v1446 = vadd.f32 %v1411, %v1432
      %v1447 = vadd.f32 %v1418, %v1433
      %v1448 = vsub.f32 0.0, %v511
      %v1449 = vmul.f32 %v1448, 1.442695
      %v1450 = vpow.pop %v1449
      %v1451 = vadd.f32 %v1450, 1.0
      %v1452 = vrcp.pop %v1451
      %v1453 = vmul.f32 1.0, %v1452
      %v1454 = vmul.f32 %v511, %v1453
      %v1456 = vrot.slane %v1454, 1
      %v1457 = vrot.slane %v1454, 2
      %v1458 = vrot.slane %v1454, 3
      %v1459 = vrot.slane %v1454, 4
      %v1460 = vrot.slane %v1454, 5
      %v1461 = vrot.slane %v1454, 6
      %v1469 = vmul.f32 %v1441, %v1454
      %v1470 = vmul.f32 %v1442, %v1456
      %v1471 = vmul.f32 %v1443, %v1457
      %v1472 = vmul.f32 %v1444, %v1458
      %v1473 = vmul.f32 %v1445, %v1459
      %v1474 = vmul.f32 %v1446, %v1460
      %v1475 = vmul.f32 %v1447, %v1461
      %v1476 = vld [vmem:[%s10] sm:$0xff]
      %v1477 = vld [vmem:[%s10 + $0x8] sm:$0xff]
      %v1478 = vld [vmem:[%s10 + $0x10] sm:$0xff]
      %v1479 = vld [vmem:[%s10 + $0x18] sm:$0xff]
      %v1480 = vld [vmem:[%s10 + $0x20] sm:$0xff]
      %v1481 = vld [vmem:[%s10 + $0x28] sm:$0xff]
      %v1482 = vld [vmem:[%s10 + $0x30] sm:$0xff]
      %v1483 = vld [vmem:[%s10 + $0x38] sm:$0xff]
      %v1484 = vld [vmem:[%s10 + $0x40] sm:$0xff]
      %v1485 = vld [vmem:[%s10 + $0x48] sm:$0xff]
      %v1486 = vld [vmem:[%s10 + $0x50] sm:$0xff]
      %v1487 = vld [vmem:[%s10 + $0x58] sm:$0xff]
      %v1488 = vld [vmem:[%s10 + $0x60] sm:$0xff]
      %v1489 = vld [vmem:[%s10 + $0x68] sm:$0xff]
      %v1490 = vld [vmem:[%s10 + $0x70] sm:$0xff]
      %v1491 = vld [vmem:[%s10 + $0x78] sm:$0xff]
      %v1492 = vld [vmem:[%s11] sm:$0x1]
      %v1494 = vlaneseq
      %v1495 = vshrl.u32 %v1494, 7
      %v1496 = vsub.s32 0, %v1495
      %v1497 = vrot.slane %v1492, %v1496
      %v1506 = vrot.slane %v1470, 7
      %vm1507 = vcmask 1041409
      %v1508 = vsel %vm1507, %v1506, %v1469
      %v1509 = vrot.slane %v1471, 6
      %vm1510 = vcmask 1042434
      %v1511 = vsel %vm1510, %v1509, %v1508
      %v1512 = vrot.slane %v1472, 5
      %vm1513 = vcmask 1043459
      %v1514 = vsel %vm1513, %v1512, %v1511
      %v1515 = vrot.slane %v1473, 4
      %vm1516 = vcmask 1044484
      %v1517 = vsel %vm1516, %v1515, %v1514
      %v1518 = vrot.slane %v1474, 3
      %vm1519 = vcmask 1045509
      %v1520 = vsel %vm1519, %v1518, %v1517
      %v1521 = vrot.slane %v1475, 2
      %vm1522 = vcmask 1046534
      %v1523 = vsel %vm1522, %v1521, %v1520
      %1525 = vmatprep.subr.mxu0 0.0
      %1526 = vmatpush1.msra.mxu0 %v1491
      %1527 = vmatprep.subr.mxu0 0.0
      %1528 = vmatpush1.msra.mxu0 %v1490
      %1529 = vmatprep.subr.mxu0 0.0
      %1530 = vmatpush1.msra.mxu0 %v1489
      %1531 = vmatprep.subr.mxu0 0.0
      %1532 = vmatpush1.msra.mxu0 %v1488
      %1533 = vmatprep.subr.mxu0 0.0
      %1534 = vmatpush1.msra.mxu0 %v1487
      %1535 = vmatprep.subr.mxu0 0.0
      %1536 = vmatpush1.msra.mxu0 %v1486
      %1537 = vmatprep.subr.mxu0 0.0
      %1538 = vmatpush1.msra.mxu0 %v1485
      %1539 = vmatprep.subr.mxu0 0.0
      %1540 = vmatpush1.msra.mxu0 %v1484
      %1541 = vmatprep.subr.mxu0 0.0
      %1542 = vmatpush1.msra.mxu0 %v1483
      %1543 = vmatprep.subr.mxu0 0.0
      %1544 = vmatpush1.msra.mxu0 %v1482
      %1545 = vmatprep.subr.mxu0 0.0
      %1546 = vmatpush1.msra.mxu0 %v1481
      %1547 = vmatprep.subr.mxu0 0.0
      %1548 = vmatpush1.msra.mxu0 %v1480
      %1549 = vmatprep.subr.mxu0 0.0
      %1550 = vmatpush1.msra.mxu0 %v1479
      %1551 = vmatprep.subr.mxu0 0.0
      %1552 = vmatpush1.msra.mxu0 %v1478
      %1553 = vmatprep.subr.mxu0 0.0
      %1554 = vmatpush1.msra.mxu0 %v1477
      %1555 = vmatprep.subr.mxu0 0.0
      %1556 = vmatpush1.msra.mxu0 %v1476
      %1557 = vmatprep.subr.mxu0 0.0
      %1558 = vmatpush2.msra.mxu0 0.0
      %1559 = vmatprep.subr.mxu0 0.0
      %1560 = vmatpush2.msra.mxu0 0.0
      %1561 = vmatprep.subr.mxu0 0.0
      %1562 = vmatpush2.msra.mxu0 0.0
      %1563 = vmatprep.subr.mxu0 0.0
      %1564 = vmatpush2.msra.mxu0 0.0
      %1565 = vmatprep.subr.mxu0 0.0
      %1566 = vmatpush2.msra.mxu0 0.0
      %1567 = vmatprep.subr.mxu0 0.0
      %1568 = vmatpush2.msra.mxu0 0.0
      %1569 = vmatprep.subr.mxu0 0.0
      %1570 = vmatpush2.msra.mxu0 0.0
      %1571 = vmatprep.subr.mxu0 0.0
      %1572 = vmatpush2.msra.mxu0 0.0
      %1573 = vmatprep.subr.mxu0 0.0
      %1574 = vmatpush2.msra.mxu0 0.0
      %1575 = vmatprep.subr.mxu0 0.0
      %1576 = vmatpush2.msra.mxu0 0.0
      %1577 = vmatprep.subr.mxu0 0.0
      %1578 = vmatpush2.msra.mxu0 0.0
      %1579 = vmatprep.subr.mxu0 0.0
      %1580 = vmatpush2.msra.mxu0 0.0
      %1581 = vmatprep.subr.mxu0 0.0
      %1582 = vmatpush2.msra.mxu0 0.0
      %1583 = vmatprep.subr.mxu0 0.0
      %1584 = vmatpush2.msra.mxu0 0.0
      %1585 = vmatprep.subr.mxu0 0.0
      %1586 = vmatpush2.msra.mxu0 0.0
      %1587 = vmatprep.subr.mxu0 0.0
      %1588 = vmatpush2.msra.mxu0 0.0
      %1589 = vmatprep.mubr.f32.mxu0 0.0
      %1590 = vmatmul.mubr.f32.gmra.mxu0 %v1523
      %v1591 = vpop.f32.mrf.mxu0
      %v1592 = vadd.f32 %v1497, %v1591
      %v1593 = vpop.f32.mrf.mxu0
      %1594 = vdwg.mxu0
      %1595 = vst [vmem:[%s408] sm:$0x7f] %v1592
      %p1596 = scmp.lt.s32.totalorder %s23, 1
      %s1597 = scalar_select %p1596, %s23, 1
      %s1598 = smul.addr %s1597, 8
      %s1599 = scalar_lea.vmem %s12, %s1598
      // Predicated region
      $region69: #{forward.7} parent=67 // pred_check
        %p1600 = pneg %p298
      $region70: #{forward.7} parent=67 // pred_check_branch
        %1602 = sbr.rel (%p1600) target = $region72
      $region71: #{forward.7} parent=67 // pred_region
        _
      $region72: #{forward.7} parent=67 // pred_fallthru
        _
    $region68: #{forward.7} parent=5 // pred_fallthru
      _
    %p1603 = scmp.le.s32.totalorder 2, %s18
    // Predicated region
    $region73: #{forward.7} parent=5 // pred_check
      %p1604 = pneg %p1603
    $region74: #{forward.7} parent=5 // pred_check_branch
      %1606 = sbr.rel (%p1604) target = $region76
    $region75: #{forward.7} parent=5 // pred_region
      %s1607 = ssub.s32 %s18, 2
      // Predicated region
      $region77: #{forward.7} parent=75 // pred_check
        %p1608 = pneg %p304
      $region78: #{forward.7} parent=75 // pred_check_branch
        %1610 = sbr.rel (%p1608) target = $region80
      $region79: #{forward.7} parent=75 // pred_region
        %p1611 = scmp.lt.s32.totalorder %s24, 1
        %s1612 = scalar_select %p1611, %s24, 1
        %s1613 = smul.addr %s1612, 8
        %s1614 = scalar_lea.vmem %s12, %s1613
      $region80: #{forward.7} parent=75 // pred_fallthru
        _
    $region76: #{forward.7} parent=5 // pred_fallthru
      _
  $region6: #{forward.7} parent=0 // loop_footer
    %s22 = sadd.s32 1, %s18
  $region7: #{forward.7} parent=0 // loop_footer_branch
    %17 = sbr.rel target = $region3
  $region8: #{forward.7} parent=0 // loop_exit
    _

// kernel: forward.8
$region0: #{forward.8}
  #allocation0 [shape = 'u32[]', space=smem, size = 0x4, offset = 0x4, fixed_abs, tag = 'smem constant byte address 0x4 - core index']
  #allocation1 [shape = 'u32[144,128]{1,0:T(1,128)}', space=vmem, size = 0x12000, scoped, tag = 'internal scratch']
  %s0 = inlined_call_operand.vmem [shape: f32[16,128], index: 0, kind: input, shape index: {}]
  %s1 = inlined_call_operand.vmem [shape: f32[16,128], index: 1, kind: input, shape index: {}]
  %s2 = inlined_call_operand.vmem [shape: f32[16,1], index: 2, kind: input, shape index: {}]
  %s3 = inlined_call_operand.vmem [shape: bf16[128,256], index: 3, kind: input, shape index: {}]
  %s4 = inlined_call_operand.vmem [shape: f32[1,256], index: 4, kind: input, shape index: {}]
  %s5 = inlined_call_operand.vmem [shape: bf16[256,128], index: 5, kind: input, shape index: {}]
  %s6 = inlined_call_operand.vmem [shape: f32[1,128], index: 6, kind: input, shape index: {}]
  %s7 = inlined_call_operand.vmem [shape: f32[1,128], index: 7, kind: input, shape index: {}]
  %s8 = inlined_call_operand.vmem [shape: f32[1,128], index: 8, kind: input, shape index: {}]
  %s9 = inlined_call_operand.vmem [shape: f32[16,128], index: 9, kind: output, shape index: {}]
  %s10 = sld [smem:[#allocation0]]
  $region46: #{forward.8} parent=0
    _
  %s12 = ssub.s32 1, %s10
  %s13 = scalar_select 0, %s12, %s10
  // Predicated region
  $region2: #{forward.8} parent=0 // pred_check
    _
  $region3: #{forward.8} parent=0 // pred_check_branch
    %15 = sbr.rel (0) target = $region5
  $region4: #{forward.8} parent=0 // pred_region
    _
  $region5: #{forward.8} parent=0 // pred_fallthru
    _
  // Predicated region
  $region6: #{forward.8} parent=0 // pred_check
    _
  $region7: #{forward.8} parent=0 // pred_check_branch
    %17 = sbr.rel (0) target = $region9
  $region8: #{forward.8} parent=0 // pred_region
    _
  $region9: #{forward.8} parent=0 // pred_fallthru
    _
  // Predicated region
  $region10: #{forward.8} parent=0 // pred_check
    _
  $region11: #{forward.8} parent=0 // pred_check_branch
    %19 = sbr.rel (0) target = $region13
  $region12: #{forward.8} parent=0 // pred_region
    _
  $region13: #{forward.8} parent=0 // pred_fallthru
    _
  // Predicated region
  $region14: #{forward.8} parent=0 // pred_check
    _
  $region15: #{forward.8} parent=0 // pred_check_branch
    %21 = sbr.rel (0) target = $region17
  $region16: #{forward.8} parent=0 // pred_region
    _
  $region17: #{forward.8} parent=0 // pred_fallthru
    _
  // Predicated region
  $region18: #{forward.8} parent=0 // pred_check
    _
  $region19: #{forward.8} parent=0 // pred_check_branch
    %23 = sbr.rel (0) target = $region21
  $region20: #{forward.8} parent=0 // pred_region
    _
  $region21: #{forward.8} parent=0 // pred_fallthru
    _
  // Predicated region
  $region22: #{forward.8} parent=0 // pred_check
    _
  $region23: #{forward.8} parent=0 // pred_check_branch
    %25 = sbr.rel (0) target = $region25
  $region24: #{forward.8} parent=0 // pred_region
    _
  $region25: #{forward.8} parent=0 // pred_fallthru
    _
  // Predicated region
  $region26: #{forward.8} parent=0 // pred_check
    _
  $region27: #{forward.8} parent=0 // pred_check_branch
    %27 = sbr.rel (0) target = $region29
  $region28: #{forward.8} parent=0 // pred_region
    _
  $region29: #{forward.8} parent=0 // pred_fallthru
    _
  // Predicated region
  $region30: #{forward.8} parent=0 // pred_check
    _
  $region31: #{forward.8} parent=0 // pred_check_branch
    %29 = sbr.rel (0) target = $region33
  $region32: #{forward.8} parent=0 // pred_region
    _
  $region33: #{forward.8} parent=0 // pred_fallthru
    _
  // Predicated region
  $region34: #{forward.8} parent=0 // pred_check
    _
  $region35: #{forward.8} parent=0 // pred_check_branch
    %31 = sbr.rel (0) target = $region37
  $region36: #{forward.8} parent=0 // pred_region
    _
  $region37: #{forward.8} parent=0 // pred_fallthru
    _
  %v33 = vld [vmem:[%s0] sm:$0xff]
  %v34 = vld [vmem:[%s0 + $0x8] sm:$0xff]
  %v35 = vld [vmem:[%s1] sm:$0xff]
  %v36 = vld [vmem:[%s1 + $0x8] sm:$0xff]
  %v37 = vadd.f32 %v33, %v35
  %v38 = vadd.f32 %v34, %v36
  %v39 = vpack.c.bf16 %v38, %v37
  %v40 = vld [vmem:[%s3] sm:$0xff]
  %v41 = vld [vmem:[%s3 + $0x8] sm:$0xff]
  %v42 = vld [vmem:[%s3 + $0x10] sm:$0xff]
  %v43 = vld [vmem:[%s3 + $0x18] sm:$0xff]
  %v44 = vld [vmem:[%s3 + $0x20] sm:$0xff]
  %v45 = vld [vmem:[%s3 + $0x28] sm:$0xff]
  %v46 = vld [vmem:[%s3 + $0x30] sm:$0xff]
  %v47 = vld [vmem:[%s3 + $0x38] sm:$0xff]
  %v48 = vld [vmem:[%s3 + $0x40] sm:$0xff]
  %v49 = vld [vmem:[%s3 + $0x48] sm:$0xff]
  %v50 = vld [vmem:[%s3 + $0x50] sm:$0xff]
  %v51 = vld [vmem:[%s3 + $0x58] sm:$0xff]
  %v52 = vld [vmem:[%s3 + $0x60] sm:$0xff]
  %v53 = vld [vmem:[%s3 + $0x68] sm:$0xff]
  %v54 = vld [vmem:[%s3 + $0x70] sm:$0xff]
  %v55 = vld [vmem:[%s3 + $0x78] sm:$0xff]
  %v56 = vld [vmem:[%s4] sm:$0x3]
  %v58 = vlaneseq
  %v59 = vshrl.u32 %v58, 7
  %v60 = vsub.s32 0, %v59
  %v61 = vrot.slane %v56, %v60
  %v62 = vlaneseq
  %v63 = vshrl.u32 %v62, 7
  %v64 = vsub.s32 1, %v63
  %v65 = vrot.slane %v56, %v64
  %v84 = vunpack.c.l.b16 %v40
  %v85 = vunpack.c.h.b16 %v40
  %v86 = vunpack.c.l.b16 %v41
  %v87 = vunpack.c.h.b16 %v41
  %v88 = vunpack.c.l.b16 %v42
  %v89 = vunpack.c.h.b16 %v42
  %v90 = vunpack.c.l.b16 %v43
  %v91 = vunpack.c.h.b16 %v43
  %v92 = vunpack.c.l.b16 %v44
  %v93 = vunpack.c.h.b16 %v44
  %v94 = vunpack.c.l.b16 %v45
  %v95 = vunpack.c.h.b16 %v45
  %v96 = vunpack.c.l.b16 %v46
  %v97 = vunpack.c.h.b16 %v46
  %v98 = vunpack.c.l.b16 %v47
  %v99 = vunpack.c.h.b16 %v47
  %v100 = vunpack.c.l.b16 %v48
  %v101 = vunpack.c.h.b16 %v48
  %v102 = vunpack.c.l.b16 %v49
  %v103 = vunpack.c.h.b16 %v49
  %v104 = vunpack.c.l.b16 %v50
  %v105 = vunpack.c.h.b16 %v50
  %v106 = vunpack.c.l.b16 %v51
  %v107 = vunpack.c.h.b16 %v51
  %v108 = vunpack.c.l.b16 %v52
  %v109 = vunpack.c.h.b16 %v52
  %v110 = vunpack.c.l.b16 %v53
  %v111 = vunpack.c.h.b16 %v53
  %v112 = vunpack.c.l.b16 %v54
  %v113 = vunpack.c.h.b16 %v54
  %v114 = vunpack.c.l.b16 %v55
  %v115 = vunpack.c.h.b16 %v55
  %v116 = vpack.c.b16 %v86, %v84
  %v117 = vpack.c.b16 %v87, %v85
  %v118 = vpack.c.b16 %v90, %v88
  %v119 = vpack.c.b16 %v91, %v89
  %v120 = vpack.c.b16 %v94, %v92
  %v121 = vpack.c.b16 %v95, %v93
  %v122 = vpack.c.b16 %v98, %v96
  %v123 = vpack.c.b16 %v99, %v97
  %v124 = vpack.c.b16 %v102, %v100
  %v125 = vpack.c.b16 %v103, %v101
  %v126 = vpack.c.b16 %v106, %v104
  %v127 = vpack.c.b16 %v107, %v105
  %v128 = vpack.c.b16 %v110, %v108
  %v129 = vpack.c.b16 %v111, %v109
  %v130 = vpack.c.b16 %v114, %v112
  %v131 = vpack.c.b16 %v115, %v113
  %148 = vmatprep.subr.bf16.mxu0 %v131
  %149 = vmatpush1.bf16.msra.mxu0 %v130
  %150 = vmatprep.subr.bf16.mxu0 %v129
  %151 = vmatpush1.bf16.msra.mxu0 %v128
  %152 = vmatprep.subr.bf16.mxu0 %v127
  %153 = vmatpush1.bf16.msra.mxu0 %v126
  %154 = vmatprep.subr.bf16.mxu0 %v125
  %155 = vmatpush1.bf16.msra.mxu0 %v124
  %156 = vmatprep.subr.bf16.mxu0 %v123
  %157 = vmatpush1.bf16.msra.mxu0 %v122
  %158 = vmatprep.subr.bf16.mxu0 %v121
  %159 = vmatpush1.bf16.msra.mxu0 %v120
  %160 = vmatprep.subr.bf16.mxu0 %v119
  %161 = vmatpush1.bf16.msra.mxu0 %v118
  %162 = vmatprep.subr.bf16.mxu0 %v117
  %163 = vmatpush1.bf16.msra.mxu0 %v116
  %164 = vmatprep.subr.bf16.mxu0 0
  %165 = vmatpush2.bf16.msra.mxu0 0
  %166 = vmatprep.subr.bf16.mxu0 0
  %167 = vmatpush2.bf16.msra.mxu0 0
  %168 = vmatprep.subr.bf16.mxu0 0
  %169 = vmatpush2.bf16.msra.mxu0 0
  %170 = vmatprep.subr.bf16.mxu0 0
  %171 = vmatpush2.bf16.msra.mxu0 0
  %172 = vmatprep.subr.bf16.mxu0 0
  %173 = vmatpush2.bf16.msra.mxu0 0
  %174 = vmatprep.subr.bf16.mxu0 0
  %175 = vmatpush2.bf16.msra.mxu0 0
  %176 = vmatprep.subr.bf16.mxu0 0
  %177 = vmatpush2.bf16.msra.mxu0 0
  %178 = vmatprep.subr.bf16.mxu0 0
  %179 = vmatpush2.bf16.msra.mxu0 0
  %180 = vmatprep.mubr.bf16.mxu0 0
  %181 = vmatmul.mubr.bf16.gmra.mxu0 %v39
  %v182 = vpop.f32.mrf.mxu0
  %v183 = vadd.f32 %v61, %v182
  %v184 = vpop.f32.mrf.mxu0
  %v185 = vadd.f32 %v65, %v184
  %v186 = vpop.f32.mrf.mxu0
  %v187 = vadd.f32 %v61, %v186
  %v188 = vpop.f32.mrf.mxu0
  %v189 = vadd.f32 %v65, %v188
  %190 = vdwg.mxu0
  %v191 = vmax.f32 %v183, 0.0
  %v192 = vmax.f32 %v185, 0.0
  %v193 = vmax.f32 %v187, 0.0
  %v194 = vmax.f32 %v189, 0.0
  %v195 = vpack.c.bf16 %v193, %v191
  %v196 = vpack.c.bf16 %v194, %v192
  %v197 = vld [vmem:[%s5] sm:$0xf]
  %v198 = vld [vmem:[%s5 + $0x4] sm:$0xf]
  %v199 = vld [vmem:[%s5 + $0x8] sm:$0xf]
  %v200 = vld [vmem:[%s5 + $0xc] sm:$0xf]
  %v201 = vld [vmem:[%s5 + $0x10] sm:$0xf]
  %v202 = vld [vmem:[%s5 + $0x14] sm:$0xf]
  %v203 = vld [vmem:[%s5 + $0x18] sm:$0xf]
  %v204 = vld [vmem:[%s5 + $0x1c] sm:$0xf]
  %v205 = vld [vmem:[%s5 + $0x20] sm:$0xf]
  %v206 = vld [vmem:[%s5 + $0x24] sm:$0xf]
  %v207 = vld [vmem:[%s5 + $0x28] sm:$0xf]
  %v208 = vld [vmem:[%s5 + $0x2c] sm:$0xf]
  %v209 = vld [vmem:[%s5 + $0x30] sm:$0xf]
  %v210 = vld [vmem:[%s5 + $0x34] sm:$0xf]
  %v211 = vld [vmem:[%s5 + $0x38] sm:$0xf]
  %v212 = vld [vmem:[%s5 + $0x3c] sm:$0xf]
  %v213 = vld [vmem:[%s5 + $0x40] sm:$0xf]
  %v214 = vld [vmem:[%s5 + $0x44] sm:$0xf]
  %v215 = vld [vmem:[%s5 + $0x48] sm:$0xf]
  %v216 = vld [vmem:[%s5 + $0x4c] sm:$0xf]
  %v217 = vld [vmem:[%s5 + $0x50] sm:$0xf]
  %v218 = vld [vmem:[%s5 + $0x54] sm:$0xf]
  %v219 = vld [vmem:[%s5 + $0x58] sm:$0xf]
  %v220 = vld [vmem:[%s5 + $0x5c] sm:$0xf]
  %v221 = vld [vmem:[%s5 + $0x60] sm:$0xf]
  %v222 = vld [vmem:[%s5 + $0x64] sm:$0xf]
  %v223 = vld [vmem:[%s5 + $0x68] sm:$0xf]
  %v224 = vld [vmem:[%s5 + $0x6c] sm:$0xf]
  %v225 = vld [vmem:[%s5 + $0x70] sm:$0xf]
  %v226 = vld [vmem:[%s5 + $0x74] sm:$0xf]
  %v227 = vld [vmem:[%s5 + $0x78] sm:$0xf]
  %v228 = vld [vmem:[%s5 + $0x7c] sm:$0xf]
  %v229 = vld [vmem:[%s6] sm:$0x1]
  %v231 = vlaneseq
  %v232 = vshrl.u32 %v231, 7
  %v233 = vsub.s32 0, %v232
  %v234 = vrot.slane %v229, %v233
  %v268 = vunpack.c.l.b16 %v197
  %v269 = vunpack.c.l.b16 %v198
  %v270 = vunpack.c.l.b16 %v199
  %v271 = vunpack.c.l.b16 %v200
  %v272 = vunpack.c.l.b16 %v201
  %v273 = vunpack.c.l.b16 %v202
  %v274 = vunpack.c.l.b16 %v203
  %v275 = vunpack.c.l.b16 %v204
  %v276 = vunpack.c.l.b16 %v205
  %v277 = vunpack.c.l.b16 %v206
  %v278 = vunpack.c.l.b16 %v207
  %v279 = vunpack.c.l.b16 %v208
  %v280 = vunpack.c.l.b16 %v209
  %v281 = vunpack.c.l.b16 %v210
  %v282 = vunpack.c.l.b16 %v211
  %v283 = vunpack.c.l.b16 %v212
  %v284 = vunpack.c.l.b16 %v213
  %v285 = vunpack.c.l.b16 %v214
  %v286 = vunpack.c.l.b16 %v215
  %v287 = vunpack.c.l.b16 %v216
  %v288 = vunpack.c.l.b16 %v217
  %v289 = vunpack.c.l.b16 %v218
  %v290 = vunpack.c.l.b16 %v219
  %v291 = vunpack.c.l.b16 %v220
  %v292 = vunpack.c.l.b16 %v221
  %v293 = vunpack.c.l.b16 %v222
  %v294 = vunpack.c.l.b16 %v223
  %v295 = vunpack.c.l.b16 %v224
  %v296 = vunpack.c.l.b16 %v225
  %v297 = vunpack.c.l.b16 %v226
  %v298 = vunpack.c.l.b16 %v227
  %v299 = vunpack.c.l.b16 %v228
  %v300 = vpack.c.b16 %v269, %v268
  %v301 = vpack.c.b16 %v271, %v270
  %v302 = vpack.c.b16 %v273, %v272
  %v303 = vpack.c.b16 %v275, %v274
  %v304 = vpack.c.b16 %v277, %v276
  %v305 = vpack.c.b16 %v279, %v278
  %v306 = vpack.c.b16 %v281, %v280
  %v307 = vpack.c.b16 %v283, %v282
  %v308 = vpack.c.b16 %v285, %v284
  %v309 = vpack.c.b16 %v287, %v286
  %v310 = vpack.c.b16 %v289, %v288
  %v311 = vpack.c.b16 %v291, %v290
  %v312 = vpack.c.b16 %v293, %v292
  %v313 = vpack.c.b16 %v295, %v294
  %v314 = vpack.c.b16 %v297, %v296
  %v315 = vpack.c.b16 %v299, %v298
  %332 = vmatprep.subr.bf16.mxu0 0
  %333 = vmatpush1.bf16.msra.mxu0 %v307
  %334 = vmatprep.subr.bf16.mxu0 0
  %335 = vmatpush1.bf16.msra.mxu0 %v306
  %336 = vmatprep.subr.bf16.mxu0 0
  %337 = vmatpush1.bf16.msra.mxu0 %v305
  %338 = vmatprep.subr.bf16.mxu0 0
  %339 = vmatpush1.bf16.msra.mxu0 %v304
  %340 = vmatprep.subr.bf16.mxu0 0
  %341 = vmatpush1.bf16.msra.mxu0 %v303
  %342 = vmatprep.subr.bf16.mxu0 0
  %343 = vmatpush1.bf16.msra.mxu0 %v302
  %344 = vmatprep.subr.bf16.mxu0 0
  %345 = vmatpush1.bf16.msra.mxu0 %v301
  %346 = vmatprep.subr.bf16.mxu0 0
  %347 = vmatpush1.bf16.msra.mxu0 %v300
  %348 = vmatprep.subr.bf16.mxu0 0
  %349 = vmatpush2.bf16.msra.mxu0 %v315
  %350 = vmatprep.subr.bf16.mxu0 0
  %351 = vmatpush2.bf16.msra.mxu0 %v314
  %352 = vmatprep.subr.bf16.mxu0 0
  %353 = vmatpush2.bf16.msra.mxu0 %v313
  %354 = vmatprep.subr.bf16.mxu0 0
  %355 = vmatpush2.bf16.msra.mxu0 %v312
  %356 = vmatprep.subr.bf16.mxu0 0
  %357 = vmatpush2.bf16.msra.mxu0 %v311
  %358 = vmatprep.subr.bf16.mxu0 0
  %359 = vmatpush2.bf16.msra.mxu0 %v310
  %360 = vmatprep.subr.bf16.mxu0 0
  %361 = vmatpush2.bf16.msra.mxu0 %v309
  %362 = vmatprep.subr.bf16.mxu0 0
  %363 = vmatpush2.bf16.msra.mxu0 %v308
  %364 = vmatprep.mubr.bf16.mxu0 %v196
  %365 = vmatmul.mubr.bf16.gmra.mxu0 %v195
  %v366 = vpop.f32.mrf.mxu0
  %v367 = vadd.f32 %v234, %v366
  %v368 = vpop.f32.mrf.mxu0
  %v369 = vpop.f32.mrf.mxu0
  %v370 = vadd.f32 %v234, %v369
  %v371 = vpop.f32.mrf.mxu0
  %372 = vdwg.mxu0
  %v373 = vadd.f32 %v37, %v367
  %v374 = vadd.f32 %v38, %v370
  %v375 = vld [vmem:[%s7] sm:$0x1]
  %v377 = vlaneseq
  %v378 = vshrl.u32 %v377, 7
  %v379 = vsub.s32 0, %v378
  %v380 = vrot.slane %v375, %v379
  %v382 = vmul.f32 %v373, %v380
  %v383 = vmul.f32 %v374, %v380
  %v384 = vld [vmem:[%s8] sm:$0x1]
  %v386 = vlaneseq
  %v387 = vshrl.u32 %v386, 7
  %v388 = vsub.s32 0, %v387
  %v389 = vrot.slane %v384, %v388
  %v391 = vadd.f32 %v382, %v389
  %v392 = vadd.f32 %v383, %v389
  %v393 = vmax.f32 %v391, 0.0
  %v394 = vmax.f32 %v392, 0.0
  %v395 = vld [vmem:[%s2] sm:$0xff]
  %v396 = vld [vmem:[%s2 + $0x8] sm:$0xff]
  %398 = vset.pattern.permute.xlu0 0
  %399 = vperm.xlu0 %398, %v395
  %v400 = vpop.permute.xlu0 %399
  %403 = vset.pattern.permute.xlu0 0
  %404 = vperm.xlu0 %403, %v396
  %v405 = vpop.permute.xlu0 %404
  %v407 = vmul.f32 %v393, %v400
  %v408 = vmul.f32 %v394, %v405
  %409 = vst [vmem:[%s9] sm:$0xff] %v407
  %410 = vst [vmem:[%s9 + $0x8] sm:$0xff] %v408
  // Predicated region
  $region38: #{forward.8} parent=0 // pred_check
    _
  $region39: #{forward.8} parent=0 // pred_check_branch
    %412 = sbr.rel (0) target = $region41
  $region40: #{forward.8} parent=0 // pred_region
    _
  $region41: #{forward.8} parent=0 // pred_fallthru
    _
  // Predicated region
  $region42: #{forward.8} parent=0 // pred_check
    _
  $region43: #{forward.8} parent=0 // pred_check_branch
    %414 = sbr.rel (0) target = $region45
  $region44: #{forward.8} parent=0 // pred_region
    _
  $region45: #{forward.8} parent=0 // pred_fallthru
    _

// kernel: forward.9
$region0: #{forward.9}
  #allocation0 [shape = 'u32[]', space=smem, size = 0x4, offset = 0x4, fixed_abs, tag = 'smem constant byte address 0x4 - core index']
  #allocation1 [shape = 'u32[144,128]{1,0:T(1,128)}', space=vmem, size = 0x12000, scoped, tag = 'internal scratch']
  #allocation2 [shape = 'f32[1,1]{1,0:T(1,128)S(1)}', space=vmem, size = 0x200, scoped, tag = 'scoped memory for forward.9']
  %s0 = inlined_call_operand.vmem [shape: f32[2,16], index: 0, kind: input, shape index: {}]
  %s1 = inlined_call_operand.vmem [shape: f32[16,128], index: 1, kind: input, shape index: {}]
  %s2 = inlined_call_operand.vmem [shape: f32[128,128], index: 2, kind: input, shape index: {}]
  %s3 = inlined_call_operand.vmem [shape: f32[1,128], index: 3, kind: input, shape index: {}]
  %s4 = inlined_call_operand.vmem [shape: f32[128,128], index: 4, kind: input, shape index: {}]
  %s5 = inlined_call_operand.vmem [shape: f32[1,128], index: 5, kind: input, shape index: {}]
  %s6 = inlined_call_operand.vmem [shape: f32[128,1], index: 6, kind: input, shape index: {}]
  %s7 = inlined_call_operand.<no memory space> [shape: f32[1,1], index: 7, kind: input, shape index: {}]
  %s8 = inlined_call_operand.hbm [shape: f32[2,128], index: 8, kind: output, shape index: {0}]
  %s9 = inlined_call_operand.vmem [shape: f32[2,1], index: 9, kind: output, shape index: {1}]
  %10 = xla_tuple %s8, %s9
  %s11 = sld [smem:[#allocation0]]
  $region58: #{forward.9} parent=0
    _
  %s13 = ssub.s32 1, %s11
  %s14 = scalar_select 0, %s13, %s11
  %v15 = vstv %s7
  %16 = vst [vmem:[#allocation2] sm:$0x1] %v15
  $region1: #{forward.9} parent=0
    #allocation3 [shape = 'u8[1024]{0}', space=vmem, size = 0x400, scoped, tag = 'output window, operand 0, single buffered']
    #allocation4 [shape = 's32[1]{0}', space=sflag, size = 0x4, scoped, tag = 'scoped memory for forward.9']
    %17 = vsyncpa [#allocation4], 0
    // Predicated region
    $region2: #{forward.9} parent=1 // pred_check
      _
    $region3: #{forward.9} parent=1 // pred_check_branch
      %19 = sbr.rel (0) target = $region5
    $region4: #{forward.9} parent=1 // pred_region
      _
    $region5: #{forward.9} parent=1 // pred_fallthru
      _
    // Predicated region
    $region6: #{forward.9} parent=1 // pred_check
      _
    $region7: #{forward.9} parent=1 // pred_check_branch
      %21 = sbr.rel (0) target = $region9
    $region8: #{forward.9} parent=1 // pred_region
      _
    $region9: #{forward.9} parent=1 // pred_fallthru
      _
    // Predicated region
    $region10: #{forward.9} parent=1 // pred_check
      _
    $region11: #{forward.9} parent=1 // pred_check_branch
      %23 = sbr.rel (0) target = $region13
    $region12: #{forward.9} parent=1 // pred_region
      _
    $region13: #{forward.9} parent=1 // pred_fallthru
      _
    // Predicated region
    $region14: #{forward.9} parent=1 // pred_check
      _
    $region15: #{forward.9} parent=1 // pred_check_branch
      %25 = sbr.rel (0) target = $region17
    $region16: #{forward.9} parent=1 // pred_region
      _
    $region17: #{forward.9} parent=1 // pred_fallthru
      _
    // Predicated region
    $region18: #{forward.9} parent=1 // pred_check
      _
    $region19: #{forward.9} parent=1 // pred_check_branch
      %27 = sbr.rel (0) target = $region21
    $region20: #{forward.9} parent=1 // pred_region
      _
    $region21: #{forward.9} parent=1 // pred_fallthru
      _
    // Predicated region
    $region22: #{forward.9} parent=1 // pred_check
      _
    $region23: #{forward.9} parent=1 // pred_check_branch
      %29 = sbr.rel (0) target = $region25
    $region24: #{forward.9} parent=1 // pred_region
      _
    $region25: #{forward.9} parent=1 // pred_fallthru
      _
    // Predicated region
    $region26: #{forward.9} parent=1 // pred_check
      _
    $region27: #{forward.9} parent=1 // pred_check_branch
      %31 = sbr.rel (0) target = $region29
    $region28: #{forward.9} parent=1 // pred_region
      _
    $region29: #{forward.9} parent=1 // pred_fallthru
      _
    // Predicated region
    $region30: #{forward.9} parent=1 // pred_check
      _
    $region31: #{forward.9} parent=1 // pred_check_branch
      %33 = sbr.rel (0) target = $region33
    $region32: #{forward.9} parent=1 // pred_region
      _
    $region33: #{forward.9} parent=1 // pred_fallthru
      _
    %p34 = scmp.eq.s32.totalorder 0, 0
    // Predicated region
    $region34: #{forward.9} parent=1 // pred_check
      %p35 = pneg %p34
    $region35: #{forward.9} parent=1 // pred_check_branch
      %37 = sbr.rel (%p35) target = $region37
    $region36: #{forward.9} parent=1 // pred_region
      %38 = vst [vmem:[#allocation3] sm:$0x3] 0.0
    $region37: #{forward.9} parent=1 // pred_fallthru
      _
    %v39 = vld [vmem:[#allocation3] sm:$0x3]
    %v40 = vld [vmem:[%s0] sm:$0x3]
    %v41 = vld [vmem:[%s1] sm:$0xff]
    %v42 = vld [vmem:[%s1 + $0x8] sm:$0xff]
    %vm43 = vcmask 130048
    %v45 = vsel %vm43, %v40, 0
    %47 = vmatprep.subr.mxu0 0.0
    %48 = vmatpush1.msra.mxu0 0.0
    %49 = vmatprep.subr.mxu0 0.0
    %50 = vmatpush1.msra.mxu0 0.0
    %51 = vmatprep.subr.mxu0 0.0
    %52 = vmatpush1.msra.mxu0 0.0
    %53 = vmatprep.subr.mxu0 0.0
    %54 = vmatpush1.msra.mxu0 0.0
    %55 = vmatprep.subr.mxu0 0.0
    %56 = vmatpush1.msra.mxu0 0.0
    %57 = vmatprep.subr.mxu0 0.0
    %58 = vmatpush1.msra.mxu0 0.0
    %59 = vmatprep.subr.mxu0 0.0
    %60 = vmatpush1.msra.mxu0 0.0
    %61 = vmatprep.subr.mxu0 0.0
    %62 = vmatpush1.msra.mxu0 0.0
    %63 = vmatprep.subr.mxu0 0.0
    %64 = vmatpush1.msra.mxu0 0.0
    %65 = vmatprep.subr.mxu0 0.0
    %66 = vmatpush1.msra.mxu0 0.0
    %67 = vmatprep.subr.mxu0 0.0
    %68 = vmatpush1.msra.mxu0 0.0
    %69 = vmatprep.subr.mxu0 0.0
    %70 = vmatpush1.msra.mxu0 0.0
    %71 = vmatprep.subr.mxu0 0.0
    %72 = vmatpush1.msra.mxu0 0.0
    %73 = vmatprep.subr.mxu0 0.0
    %74 = vmatpush1.msra.mxu0 0.0
    %75 = vmatprep.subr.mxu0 0.0
    %76 = vmatpush1.msra.mxu0 %v42
    %77 = vmatprep.subr.mxu0 0.0
    %78 = vmatpush1.msra.mxu0 %v41
    %79 = vmatprep.subr.mxu0 0.0
    %80 = vmatpush2.msra.mxu0 0.0
    %81 = vmatprep.subr.mxu0 0.0
    %82 = vmatpush2.msra.mxu0 0.0
    %83 = vmatprep.subr.mxu0 0.0
    %84 = vmatpush2.msra.mxu0 0.0
    %85 = vmatprep.subr.mxu0 0.0
    %86 = vmatpush2.msra.mxu0 0.0
    %87 = vmatprep.subr.mxu0 0.0
    %88 = vmatpush2.msra.mxu0 0.0
    %89 = vmatprep.subr.mxu0 0.0
    %90 = vmatpush2.msra.mxu0 0.0
    %91 = vmatprep.subr.mxu0 0.0
    %92 = vmatpush2.msra.mxu0 0.0
    %93 = vmatprep.subr.mxu0 0.0
    %94 = vmatpush2.msra.mxu0 0.0
    %95 = vmatprep.subr.mxu0 0.0
    %96 = vmatpush2.msra.mxu0 0.0
    %97 = vmatprep.subr.mxu0 0.0
    %98 = vmatpush2.msra.mxu0 0.0
    %99 = vmatprep.subr.mxu0 0.0
    %100 = vmatpush2.msra.mxu0 0.0
    %101 = vmatprep.subr.mxu0 0.0
    %102 = vmatpush2.msra.mxu0 0.0
    %103 = vmatprep.subr.mxu0 0.0
    %104 = vmatpush2.msra.mxu0 0.0
    %105 = vmatprep.subr.mxu0 0.0
    %106 = vmatpush2.msra.mxu0 0.0
    %107 = vmatprep.subr.mxu0 0.0
    %108 = vmatpush2.msra.mxu0 0.0
    %109 = vmatprep.subr.mxu0 0.0
    %110 = vmatpush2.msra.mxu0 0.0
    %111 = vmatprep.mubr.f32.mxu0 0.0
    %112 = vmatmul.mubr.f32.gmra.mxu0 %v45
    %v113 = vpop.f32.mrf.mxu0
    %v114 = vadd.f32 0.0, %v113
    %v115 = vpop.f32.mrf.mxu0
    %116 = vdwg.mxu0
    %v117 = vadd.f32 %v39, %v114
    %118 = vst [vmem:[#allocation3] sm:$0x3] %v117
    // Predicated region
    $region38: #{forward.9} parent=1 // pred_check
      %p119 = pneg %p34
    $region39: #{forward.9} parent=1 // pred_check_branch
      %121 = sbr.rel (%p119) target = $region41
    $region40: #{forward.9} parent=1 // pred_region
      %v122 = vld [vmem:[#allocation3] sm:$0x3]
      %v123 = vld [vmem:[%s2] sm:$0xff]
      %v124 = vld [vmem:[%s2 + $0x8] sm:$0xff]
      %v125 = vld [vmem:[%s2 + $0x10] sm:$0xff]
      %v126 = vld [vmem:[%s2 + $0x18] sm:$0xff]
      %v127 = vld [vmem:[%s2 + $0x20] sm:$0xff]
      %v128 = vld [vmem:[%s2 + $0x28] sm:$0xff]
      %v129 = vld [vmem:[%s2 + $0x30] sm:$0xff]
      %v130 = vld [vmem:[%s2 + $0x38] sm:$0xff]
      %v131 = vld [vmem:[%s2 + $0x40] sm:$0xff]
      %v132 = vld [vmem:[%s2 + $0x48] sm:$0xff]
      %v133 = vld [vmem:[%s2 + $0x50] sm:$0xff]
      %v134 = vld [vmem:[%s2 + $0x58] sm:$0xff]
      %v135 = vld [vmem:[%s2 + $0x60] sm:$0xff]
      %v136 = vld [vmem:[%s2 + $0x68] sm:$0xff]
      %v137 = vld [vmem:[%s2 + $0x70] sm:$0xff]
      %v138 = vld [vmem:[%s2 + $0x78] sm:$0xff]
      %v139 = vld [vmem:[%s3] sm:$0x1]
      %v141 = vlaneseq
      %v142 = vshrl.u32 %v141, 7
      %v143 = vsub.s32 0, %v142
      %v144 = vrot.slane %v139, %v143
      %146 = vmatprep.subr.mxu0 0.0
      %147 = vmatpush1.msra.mxu0 %v138
      %148 = vmatprep.subr.mxu0 0.0
      %149 = vmatpush1.msra.mxu0 %v137
      %150 = vmatprep.subr.mxu0 0.0
      %151 = vmatpush1.msra.mxu0 %v136
      %152 = vmatprep.subr.mxu0 0.0
      %153 = vmatpush1.msra.mxu0 %v135
      %154 = vmatprep.subr.mxu0 0.0
      %155 = vmatpush1.msra.mxu0 %v134
      %156 = vmatprep.subr.mxu0 0.0
      %157 = vmatpush1.msra.mxu0 %v133
      %158 = vmatprep.subr.mxu0 0.0
      %159 = vmatpush1.msra.mxu0 %v132
      %160 = vmatprep.subr.mxu0 0.0
      %161 = vmatpush1.msra.mxu0 %v131
      %162 = vmatprep.subr.mxu0 0.0
      %163 = vmatpush1.msra.mxu0 %v130
      %164 = vmatprep.subr.mxu0 0.0
      %165 = vmatpush1.msra.mxu0 %v129
      %166 = vmatprep.subr.mxu0 0.0
      %167 = vmatpush1.msra.mxu0 %v128
      %168 = vmatprep.subr.mxu0 0.0
      %169 = vmatpush1.msra.mxu0 %v127
      %170 = vmatprep.subr.mxu0 0.0
      %171 = vmatpush1.msra.mxu0 %v126
      %172 = vmatprep.subr.mxu0 0.0
      %173 = vmatpush1.msra.mxu0 %v125
      %174 = vmatprep.subr.mxu0 0.0
      %175 = vmatpush1.msra.mxu0 %v124
      %176 = vmatprep.subr.mxu0 0.0
      %177 = vmatpush1.msra.mxu0 %v123
      %178 = vmatprep.subr.mxu0 0.0
      %179 = vmatpush2.msra.mxu0 0.0
      %180 = vmatprep.subr.mxu0 0.0
      %181 = vmatpush2.msra.mxu0 0.0
      %182 = vmatprep.subr.mxu0 0.0
      %183 = vmatpush2.msra.mxu0 0.0
      %184 = vmatprep.subr.mxu0 0.0
      %185 = vmatpush2.msra.mxu0 0.0
      %186 = vmatprep.subr.mxu0 0.0
      %187 = vmatpush2.msra.mxu0 0.0
      %188 = vmatprep.subr.mxu0 0.0
      %189 = vmatpush2.msra.mxu0 0.0
      %190 = vmatprep.subr.mxu0 0.0
      %191 = vmatpush2.msra.mxu0 0.0
      %192 = vmatprep.subr.mxu0 0.0
      %193 = vmatpush2.msra.mxu0 0.0
      %194 = vmatprep.subr.mxu0 0.0
      %195 = vmatpush2.msra.mxu0 0.0
      %196 = vmatprep.subr.mxu0 0.0
      %197 = vmatpush2.msra.mxu0 0.0
      %198 = vmatprep.subr.mxu0 0.0
      %199 = vmatpush2.msra.mxu0 0.0
      %200 = vmatprep.subr.mxu0 0.0
      %201 = vmatpush2.msra.mxu0 0.0
      %202 = vmatprep.subr.mxu0 0.0
      %203 = vmatpush2.msra.mxu0 0.0
      %204 = vmatprep.subr.mxu0 0.0
      %205 = vmatpush2.msra.mxu0 0.0
      %206 = vmatprep.subr.mxu0 0.0
      %207 = vmatpush2.msra.mxu0 0.0
      %208 = vmatprep.subr.mxu0 0.0
      %209 = vmatpush2.msra.mxu0 0.0
      %210 = vmatprep.mubr.f32.mxu0 0.0
      %211 = vmatmul.mubr.f32.gmra.mxu0 %v122
      %v212 = vpop.f32.mrf.mxu0
      %v213 = vadd.f32 %v144, %v212
      %v214 = vpop.f32.mrf.mxu0
      %215 = vdwg.mxu0
      %v216 = vmax.f32 %v213, 0.0
      %v217 = vld [vmem:[%s4] sm:$0xff]
      %v218 = vld [vmem:[%s4 + $0x8] sm:$0xff]
      %v219 = vld [vmem:[%s4 + $0x10] sm:$0xff]
      %v220 = vld [vmem:[%s4 + $0x18] sm:$0xff]
      %v221 = vld [vmem:[%s4 + $0x20] sm:$0xff]
      %v222 = vld [vmem:[%s4 + $0x28] sm:$0xff]
      %v223 = vld [vmem:[%s4 + $0x30] sm:$0xff]
      %v224 = vld [vmem:[%s4 + $0x38] sm:$0xff]
      %v225 = vld [vmem:[%s4 + $0x40] sm:$0xff]
      %v226 = vld [vmem:[%s4 + $0x48] sm:$0xff]
      %v227 = vld [vmem:[%s4 + $0x50] sm:$0xff]
      %v228 = vld [vmem:[%s4 + $0x58] sm:$0xff]
      %v229 = vld [vmem:[%s4 + $0x60] sm:$0xff]
      %v230 = vld [vmem:[%s4 + $0x68] sm:$0xff]
      %v231 = vld [vmem:[%s4 + $0x70] sm:$0xff]
      %v232 = vld [vmem:[%s4 + $0x78] sm:$0xff]
      %v233 = vld [vmem:[%s5] sm:$0x1]
      %v235 = vlaneseq
      %v236 = vshrl.u32 %v235, 7
      %v237 = vsub.s32 0, %v236
      %v238 = vrot.slane %v233, %v237
      %240 = vmatprep.subr.mxu0 0.0
      %241 = vmatpush1.msra.mxu0 %v232
      %242 = vmatprep.subr.mxu0 0.0
      %243 = vmatpush1.msra.mxu0 %v231
      %244 = vmatprep.subr.mxu0 0.0
      %245 = vmatpush1.msra.mxu0 %v230
      %246 = vmatprep.subr.mxu0 0.0
      %247 = vmatpush1.msra.mxu0 %v229
      %248 = vmatprep.subr.mxu0 0.0
      %249 = vmatpush1.msra.mxu0 %v228
      %250 = vmatprep.subr.mxu0 0.0
      %251 = vmatpush1.msra.mxu0 %v227
      %252 = vmatprep.subr.mxu0 0.0
      %253 = vmatpush1.msra.mxu0 %v226
      %254 = vmatprep.subr.mxu0 0.0
      %255 = vmatpush1.msra.mxu0 %v225
      %256 = vmatprep.subr.mxu0 0.0
      %257 = vmatpush1.msra.mxu0 %v224
      %258 = vmatprep.subr.mxu0 0.0
      %259 = vmatpush1.msra.mxu0 %v223
      %260 = vmatprep.subr.mxu0 0.0
      %261 = vmatpush1.msra.mxu0 %v222
      %262 = vmatprep.subr.mxu0 0.0
      %263 = vmatpush1.msra.mxu0 %v221
      %264 = vmatprep.subr.mxu0 0.0
      %265 = vmatpush1.msra.mxu0 %v220
      %266 = vmatprep.subr.mxu0 0.0
      %267 = vmatpush1.msra.mxu0 %v219
      %268 = vmatprep.subr.mxu0 0.0
      %269 = vmatpush1.msra.mxu0 %v218
      %270 = vmatprep.subr.mxu0 0.0
      %271 = vmatpush1.msra.mxu0 %v217
      %272 = vmatprep.subr.mxu0 0.0
      %273 = vmatpush2.msra.mxu0 0.0
      %274 = vmatprep.subr.mxu0 0.0
      %275 = vmatpush2.msra.mxu0 0.0
      %276 = vmatprep.subr.mxu0 0.0
      %277 = vmatpush2.msra.mxu0 0.0
      %278 = vmatprep.subr.mxu0 0.0
      %279 = vmatpush2.msra.mxu0 0.0
      %280 = vmatprep.subr.mxu0 0.0
      %281 = vmatpush2.msra.mxu0 0.0
      %282 = vmatprep.subr.mxu0 0.0
      %283 = vmatpush2.msra.mxu0 0.0
      %284 = vmatprep.subr.mxu0 0.0
      %285 = vmatpush2.msra.mxu0 0.0
      %286 = vmatprep.subr.mxu0 0.0
      %287 = vmatpush2.msra.mxu0 0.0
      %288 = vmatprep.subr.mxu0 0.0
      %289 = vmatpush2.msra.mxu0 0.0
      %290 = vmatprep.subr.mxu0 0.0
      %291 = vmatpush2.msra.mxu0 0.0
      %292 = vmatprep.subr.mxu0 0.0
      %293 = vmatpush2.msra.mxu0 0.0
      %294 = vmatprep.subr.mxu0 0.0
      %295 = vmatpush2.msra.mxu0 0.0
      %296 = vmatprep.subr.mxu0 0.0
      %297 = vmatpush2.msra.mxu0 0.0
      %298 = vmatprep.subr.mxu0 0.0
      %299 = vmatpush2.msra.mxu0 0.0
      %300 = vmatprep.subr.mxu0 0.0
      %301 = vmatpush2.msra.mxu0 0.0
      %302 = vmatprep.subr.mxu0 0.0
      %303 = vmatpush2.msra.mxu0 0.0
      %304 = vmatprep.mubr.f32.mxu0 0.0
      %305 = vmatmul.mubr.f32.gmra.mxu0 %v216
      %v306 = vpop.f32.mrf.mxu0
      %v307 = vadd.f32 %v238, %v306
      %v308 = vpop.f32.mrf.mxu0
      %309 = vdwg.mxu0
      %v310 = vmax.f32 %v307, 0.0
      %v311 = vld [vmem:[%s6] sm:$0xff]
      %v312 = vld [vmem:[%s6 + $0x8] sm:$0xff]
      %v313 = vld [vmem:[%s6 + $0x10] sm:$0xff]
      %v314 = vld [vmem:[%s6 + $0x18] sm:$0xff]
      %v315 = vld [vmem:[%s6 + $0x20] sm:$0xff]
      %v316 = vld [vmem:[%s6 + $0x28] sm:$0xff]
      %v317 = vld [vmem:[%s6 + $0x30] sm:$0xff]
      %v318 = vld [vmem:[%s6 + $0x38] sm:$0xff]
      %v319 = vld [vmem:[%s6 + $0x40] sm:$0xff]
      %v320 = vld [vmem:[%s6 + $0x48] sm:$0xff]
      %v321 = vld [vmem:[%s6 + $0x50] sm:$0xff]
      %v322 = vld [vmem:[%s6 + $0x58] sm:$0xff]
      %v323 = vld [vmem:[%s6 + $0x60] sm:$0xff]
      %v324 = vld [vmem:[%s6 + $0x68] sm:$0xff]
      %v325 = vld [vmem:[%s6 + $0x70] sm:$0xff]
      %v326 = vld [vmem:[%s6 + $0x78] sm:$0xff]
      %v327 = vld [vmem:[#allocation2] sm:$0x1]
      %v329 = vlaneseq
      %v330 = vshrl.u32 %v329, 7
      %v331 = vsub.s32 0, %v330
      %v332 = vrot.slane %v327, %v331
      %334 = vmatprep.subr.mxu0 0.0
      %335 = vmatpush1.msra.mxu0 %v326
      %336 = vmatprep.subr.mxu0 0.0
      %337 = vmatpush1.msra.mxu0 %v325
      %338 = vmatprep.subr.mxu0 0.0
      %339 = vmatpush1.msra.mxu0 %v324
      %340 = vmatprep.subr.mxu0 0.0
      %341 = vmatpush1.msra.mxu0 %v323
      %342 = vmatprep.subr.mxu0 0.0
      %343 = vmatpush1.msra.mxu0 %v322
      %344 = vmatprep.subr.mxu0 0.0
      %345 = vmatpush1.msra.mxu0 %v321
      %346 = vmatprep.subr.mxu0 0.0
      %347 = vmatpush1.msra.mxu0 %v320
      %348 = vmatprep.subr.mxu0 0.0
      %349 = vmatpush1.msra.mxu0 %v319
      %350 = vmatprep.subr.mxu0 0.0
      %351 = vmatpush1.msra.mxu0 %v318
      %352 = vmatprep.subr.mxu0 0.0
      %353 = vmatpush1.msra.mxu0 %v317
      %354 = vmatprep.subr.mxu0 0.0
      %355 = vmatpush1.msra.mxu0 %v316
      %356 = vmatprep.subr.mxu0 0.0
      %357 = vmatpush1.msra.mxu0 %v315
      %358 = vmatprep.subr.mxu0 0.0
      %359 = vmatpush1.msra.mxu0 %v314
      %360 = vmatprep.subr.mxu0 0.0
      %361 = vmatpush1.msra.mxu0 %v313
      %362 = vmatprep.subr.mxu0 0.0
      %363 = vmatpush1.msra.mxu0 %v312
      %364 = vmatprep.subr.mxu0 0.0
      %365 = vmatpush1.msra.mxu0 %v311
      %366 = vmatprep.subr.mxu0 0.0
      %367 = vmatpush2.msra.mxu0 0.0
      %368 = vmatprep.subr.mxu0 0.0
      %369 = vmatpush2.msra.mxu0 0.0
      %370 = vmatprep.subr.mxu0 0.0
      %371 = vmatpush2.msra.mxu0 0.0
      %372 = vmatprep.subr.mxu0 0.0
      %373 = vmatpush2.msra.mxu0 0.0
      %374 = vmatprep.subr.mxu0 0.0
      %375 = vmatpush2.msra.mxu0 0.0
      %376 = vmatprep.subr.mxu0 0.0
      %377 = vmatpush2.msra.mxu0 0.0
      %378 = vmatprep.subr.mxu0 0.0
      %379 = vmatpush2.msra.mxu0 0.0
      %380 = vmatprep.subr.mxu0 0.0
      %381 = vmatpush2.msra.mxu0 0.0
      %382 = vmatprep.subr.mxu0 0.0
      %383 = vmatpush2.msra.mxu0 0.0
      %384 = vmatprep.subr.mxu0 0.0
      %385 = vmatpush2.msra.mxu0 0.0
      %386 = vmatprep.subr.mxu0 0.0
      %387 = vmatpush2.msra.mxu0 0.0
      %388 = vmatprep.subr.mxu0 0.0
      %389 = vmatpush2.msra.mxu0 0.0
      %390 = vmatprep.subr.mxu0 0.0
      %391 = vmatpush2.msra.mxu0 0.0
      %392 = vmatprep.subr.mxu0 0.0
      %393 = vmatpush2.msra.mxu0 0.0
      %394 = vmatprep.subr.mxu0 0.0
      %395 = vmatpush2.msra.mxu0 0.0
      %396 = vmatprep.subr.mxu0 0.0
      %397 = vmatpush2.msra.mxu0 0.0
      %398 = vmatprep.mubr.f32.mxu0 0.0
      %399 = vmatmul.mubr.f32.gmra.mxu0 %v310
      %v400 = vpop.f32.mrf.mxu0
      %v401 = vadd.f32 %v332, %v400
      %v402 = vpop.f32.mrf.mxu0
      %403 = vdwg.mxu0
      %vm404 = vcmask 1024
      %405 = vst.msk [vmem:[%s9] sm:$0x3] %vm404, %v401
    $region41: #{forward.9} parent=1 // pred_fallthru
      _
    // Predicated region
    $region42: #{forward.9} parent=1 // pred_check
      _
    $region43: #{forward.9} parent=1 // pred_check_branch
      %407 = sbr.rel (0) target = $region45
    $region44: #{forward.9} parent=1 // pred_region
      %s409 = ssub.s32 32, 32
      %410 = vsyncadd [#allocation4], %s409
      %s412 = sshll.u32 [#allocation3], 4
      %s413 = int_to_ptr.vmem [resolvable:$true] %s412
      %415 = dma.vmem_to_hbm [thread:$0]  %s413, 32, %s8, [#allocation4]
    $region45: #{forward.9} parent=1 // pred_fallthru
      _
    // Predicated region
    $region46: #{forward.9} parent=1 // pred_check
      _
    $region47: #{forward.9} parent=1 // pred_check_branch
      %417 = sbr.rel (0) target = $region49
    $region48: #{forward.9} parent=1 // pred_region
      _
    $region49: #{forward.9} parent=1 // pred_fallthru
      _
    // Predicated region
    $region50: #{forward.9} parent=1 // pred_check
      _
    $region51: #{forward.9} parent=1 // pred_check_branch
      %419 = sbr.rel (0) target = $region53
    $region52: #{forward.9} parent=1 // pred_region
      %420 = dma.done [#allocation4], 32
    $region53: #{forward.9} parent=1 // pred_fallthru
      _
    // Predicated region
    $region54: #{forward.9} parent=1 // pred_check
      _
    $region55: #{forward.9} parent=1 // pred_check_branch
      %422 = sbr.rel (0) target = $region57
    $region56: #{forward.9} parent=1 // pred_region
      _
    $region57: #{forward.9} parent=1 // pred_fallthru
      _
    %423 = vsyncpa [#allocation4], 1

</llo_original>
